<compile_context>
chip_gen: v7x
topology: tpu7x:2x2x1
jax: 0.10.0
libtpu: 0.0.40
codegen_flags: <defaults>
</compile_context>

<pallas_src>
import functools

import jax
import jax.numpy as jnp
from jax import lax
from jax.experimental import pallas as pl
from jax.experimental.pallas import tpu as pltpu


def _round_up(x, m):
    return ((x + m - 1) // m) * m


def rnn_chunk_kernel(max_len_ref,                                    # SMEM prefetch: per-tile max len
                     len_ref, x_ref, h0_ref, wih_ref, whh_ref, b_ref,  # inputs
                     out_ref, hN_ref,                                # outputs
                     h_scr, pre_scr,                                 # VMEM scratch
                     *, n_chains):
    """One grid step = (batch tile, time chunk): t_blk timesteps of the recurrence."""
    t_blk, b_blk, e = x_ref.shape
    hp = h0_ref.shape[1]
    ch = b_blk // n_chains
    bt = pl.program_id(0)            # batch tile index ("parallel" axis)
    tc = pl.program_id(1)            # time-chunk index (trailing, "arbitrary" axis)
    t0 = tc * t_blk

    # (Re)initialize the hidden-state carry at the first time chunk of each batch tile.
    @pl.when(tc == 0)
    def _init():
        h_scr[...] = h0_ref[...].astype(jnp.float32)

    tile_max = max_len_ref[bt]       # per-batch-tile max length (skip work on short tiles)

    # Dead-tail chunks (entirely past this tile's max length) produce only zeros: skip compute.
    @pl.when(t0 >= tile_max)
    def _skip():
        out_ref[...] = jnp.zeros(out_ref.shape, out_ref.dtype)

    @pl.when(t0 < tile_max)
    def _compute():
        # Hoisted input projection (+ f32 bias) for the whole chunk: one lane/sublane-aligned
        # GEMM (bf16 operands, f32 accumulation).  Result parked in VMEM scratch so it is NOT
        # a live vreg value through the serial loop (bounds register pressure).
        x2d = x_ref[...].reshape(t_blk * b_blk, e)        # free merge (b_blk % 8 == 0)
        pre2d = jnp.dot(x2d, wih_ref[...], preferred_element_type=jnp.float32) + b_ref[...]
        pre_scr[...] = pre2d.reshape(t_blk, b_blk, hp)    # (T, B, Hp) f32 scratch

        whh = whh_ref[...]                                # hoisted; f32 or bf16 (flag)
        cast_h = whh.dtype != jnp.float32

        # Per-chain state, loaded once: hidden carries (f32) and lengths.
        hs = [h_scr[pl.ds(c * ch, ch), :] for c in range(n_chains)]
        lens = [len_ref[pl.ds(c * ch, ch), :] for c in range(n_chains)]

        # Fully-unrolled serial recurrence with `n_chains` INDEPENDENT sub-chains per step:
        # the LLO scheduler can overlap chain A's h@W_hh (MXU) with chain B's tanh (EUP).
        # Static t -> pre_scr[t] / out_ref[t] lower to static VMEM accesses.
        for t in range(t_blk):
            step = t0 + t
            h_new = []
            for c in range(n_chains):
                h_in = hs[c].astype(whh.dtype) if cast_h else hs[c]
                h_new.append(jnp.tanh(
                    pre_scr[t, pl.ds(c * ch, ch), :]
                    + jnp.dot(h_in, whh, preferred_element_type=jnp.float32)))
            for c in range(n_chains):
                valid = step < lens[c]                    # (ch, 1), broadcasts over Hp lanes
                hs[c] = jnp.where(valid, h_new[c], hs[c])                      # freeze past len
                out_ref[t, pl.ds(c * ch, ch), :] = jnp.where(
                    valid, h_new[c], 0.0).astype(out_ref.dtype)                # zeros past len

        for c in range(n_chains):
            h_scr[pl.ds(c * ch, ch), :] = hs[c]

    # Final hidden state: single VMEM write on the last time chunk; the block is written back
    # to HBM only when the batch tile changes.
    @pl.when(tc == pl.num_programs(1) - 1)
    def _final():
        hN_ref[...] = h_scr[...].astype(hN_ref.dtype)


def unpacked_sequence_encoder(sequence, sequence_length, params, hidden_state=None, *,
                              t_blk=None, b_blk=None, n_chains=2,
                              input_proj_dtype=jnp.bfloat16,   # default bf16 (f32 accumulation)
                              recurrent_bf16=False,            # opt-in bf16 h @ W_hh
                              out_dtype=None,                  # default: caller's sequence dtype
                              vmem_limit_bytes=None):
    """sequence: [B, S, E], sequence_length: [B] int (>0).
    Returns (output [B, S, H], hidden_state [1, B, H])."""
    B, S, E = sequence.shape
    wih = jnp.asarray(params["w_ih"], jnp.float32)                 # (E, H) pre-transposed
    whh = jnp.asarray(params["w_hh"], jnp.float32)                 # (H, H) pre-transposed
    bias = jnp.asarray(params["b"], jnp.float32).reshape(1, -1)    # b_ih + b_hh
    H = wih.shape[1]
    if out_dtype is None:
        out_dtype = sequence.dtype
    whh_dtype = jnp.bfloat16 if recurrent_bf16 else jnp.float32

    Hp = _round_up(H, 128)                                         # lane-dense hidden dim

    # ---- generation-aware VMEM limit: ~48 MiB on v7x (64 MiB physical), ~96 MiB on v5e/v6e ----
    if vmem_limit_bytes is None:
        try:
            cap = pltpu.get_tpu_info().vmem_capacity_bytes
            vmem_limit_bytes = min(96 * 1024 * 1024, int(0.75 * cap))
        except Exception:                                          # no query available -> safe cap
            vmem_limit_bytes = 48 * 1024 * 1024

    # ---- batch tile: big M for the MXU, but keep >= 2 "parallel" tiles when B allows ----
    n_chains = max(1, int(n_chains))
    align = 8 * n_chains                                           # sub-chains stay sublane-aligned
    if b_blk is None:
        b_blk = min(128, _round_up(B, align))                      # 128 ~ MXU M-dim (v5e); pass
        if B > align and _round_up(B, b_blk) // b_blk < 2:         # 256 explicitly on v6e/v7x
            b_blk = _round_up(-(-B // 2), align)                   # >=2 tiles for v7x's 2 TCs
    b_blk = _round_up(b_blk, align)
    Bp = _round_up(B, b_blk)

    # ---- time chunk: as large as the VMEM budget allows (fewer serial grid steps) ----
    bytes_x = jnp.dtype(input_proj_dtype).itemsize
    bytes_o = jnp.dtype(out_dtype).itemsize
    if t_blk is None:
        t_blk = min(_round_up(S, 8), 32)
        fixed = (2 * (E * Hp * bytes_x + Hp * Hp * jnp.dtype(whh_dtype).itemsize
                      + Hp * 4 + b_blk * Hp * 4 + b_blk * 4)       # dbl-buffered params/h0/lens
                 + 3 * b_blk * Hp * 4)                             # h carry + dbl-buffered hN out
        per_t = b_blk * (2 * E * bytes_x + 2 * Hp * bytes_o + Hp * 4)  # x, out (dbl-buf) + pre scr
        budget = int(0.75 * vmem_limit_bytes)
        while t_blk > 8 and fixed + per_t * t_blk > budget:
            t_blk -= 8
    t_blk = max(8, _round_up(t_blk, 8))
    Sp = _round_up(S, t_blk)

    # ---- operands (zero padding is exact: padded lanes/rows/steps stay identically zero) ----
    x_tm = jnp.transpose(sequence, (1, 0, 2)).astype(input_proj_dtype)   # [S, B, E] time-major
    x_tm = jnp.pad(x_tm, ((0, Sp - S), (0, Bp - B), (0, 0)))
    wih_p = jnp.pad(wih, ((0, 0), (0, Hp - H))).astype(input_proj_dtype)
    whh_p = jnp.pad(whh, ((0, Hp - H), (0, Hp - H))).astype(whh_dtype)
    b_p = jnp.pad(bias, ((0, 0), (0, Hp - H)))                           # f32 bias

    if hidden_state is None:
        h0 = jnp.zeros((Bp, Hp), jnp.float32)                            # rnn.init_state(B)
    else:
        h0 = jnp.pad(hidden_state.reshape(B, H).astype(jnp.float32),
                     ((0, Bp - B), (0, Hp - H)))

    lens_flat = jnp.pad(sequence_length.astype(jnp.int32), (0, Bp - B))  # padded rows: len 0
    lens = lens_flat.reshape(Bp, 1)
    tile_max = lens_flat.reshape(Bp // b_blk, b_blk).max(axis=1)         # per-tile max (SMEM)

    grid = (Bp // b_blk, Sp // t_blk)        # (parallel batch tiles, sequential time chunks)
    kernel = functools.partial(rnn_chunk_kernel, n_chains=n_chains)

    out_tm, h_last = pl.pallas_call(
        kernel,
        out_shape=(jax.ShapeDtypeStruct((Sp, Bp, Hp), out_dtype),
                   jax.ShapeDtypeStruct((Bp, Hp), jnp.float32)),
        grid_spec=pltpu.PrefetchScalarGridSpec(
            num_scalar_prefetch=1,
            grid=grid,
            in_specs=[
                pl.BlockSpec((b_blk, 1),        lambda b, t, ml: (b, 0)),     # lengths
                pl.BlockSpec((t_blk, b_blk, E), lambda b, t, ml: (t, b, 0)),  # x chunk (bf16)
                pl.BlockSpec((b_blk, Hp),       lambda b, t, ml: (b, 0)),     # h0
                pl.BlockSpec((E, Hp),           lambda b, t, ml: (0, 0)),     # W_ih
                pl.BlockSpec((Hp, Hp),          lambda b, t, ml: (0, 0)),     # W_hh
                pl.BlockSpec((1, Hp),           lambda b, t, ml: (0, 0)),     # bias (f32)
            ],
            out_specs=[
                pl.BlockSpec((t_blk, b_blk, Hp), lambda b, t, ml: (t, b, 0)),  # per-chunk output
                pl.BlockSpec((b_blk, Hp),        lambda b, t, ml: (b, 0)),     # final hidden
            ],
            scratch_shapes=[pltpu.VMEM((b_blk, Hp), jnp.float32),              # h carry
                            pltpu.VMEM((t_blk, b_blk, Hp), jnp.float32)],      # hoisted x@W_ih+b
        ),
        compiler_params=pltpu.CompilerParams(
            dimension_semantics=("parallel", "arbitrary"),
            vmem_limit_bytes=vmem_limit_bytes),
    )(tile_max, lens, x_tm, h0, wih_p, whh_p, b_p)

    output = jnp.transpose(out_tm[:S, :B, :H], (1, 0, 2))            # back to [B, S, H]
    return output, h_last[:B, :H][None]                              # hidden: [1, B, H]


def reference_encoder(sequence, sequence_length, params, hidden_state=None):
    """Pure-JAX reference (lax.scan) with identical pack/pad semantics."""
    B, S, E = sequence.shape
    wih, whh, bias = params["w_ih"], params["w_hh"], params["b"]
    H = wih.shape[1]
    h0 = (jnp.zeros((B, H), jnp.float32) if hidden_state is None
          else hidden_state.reshape(B, H).astype(jnp.float32))
    x_tm = jnp.transpose(sequence, (1, 0, 2)).astype(jnp.float32)

    def step(h, inp):
        x_t, t = inp
        h_new = jnp.tanh(x_t @ wih + h @ whh + bias)
        valid = (t < sequence_length)[:, None]
        h_next = jnp.where(valid, h_new, h)
        return h_next, jnp.where(valid, h_new, 0.0)

    h_final, outs = lax.scan(step, h0, (x_tm, jnp.arange(S)))
    return jnp.transpose(outs, (1, 0, 2)), h_final[None]


if __name__ == "__main__":
    B, S, E, H = 24, 40, 16, 32

    key = jax.random.PRNGKey(0)
    k_seq, k_len, k_wih, k_whh, k_b, k_h0 = jax.random.split(key, 6)

    sequence = jax.random.normal(k_seq, (B, S, E), dtype=jnp.float32)
    # lengths in [1, 29] (> 0 and max < S so the per-tile dead-tail skip path is exercised)
    sequence_length = jax.random.randint(k_len, (B,), 1, 30).astype(jnp.int32)

    scale = 1.0 / jnp.sqrt(jnp.float32(H))
    params = {
        # stored pre-transposed: x @ W_ih == x @ W_ih_torch^T ; "b" = b_ih + b_hh
        "w_ih": jax.random.uniform(k_wih, (E, H), jnp.float32, -1.0, 1.0) * scale,
        "w_hh": jax.random.uniform(k_whh, (H, H), jnp.float32, -1.0, 1.0) * scale,
        "b":    jax.random.uniform(k_b,  (1, H), jnp.float32, -1.0, 1.0) * scale,
    }

    ref_out, ref_h = reference_encoder(sequence, sequence_length, params)

    # 1) exact path (f32 everywhere), small explicit tiles: multiple batch tiles, multiple
    #    time chunks, interleaved sub-chains, per-tile dead-tail skip.
    out, h_n = unpacked_sequence_encoder(sequence, sequence_length, params,
                                         t_blk=8, b_blk=16,
                                         input_proj_dtype=jnp.float32)
    jax.block_until_ready((out, h_n))
    assert out.shape == (B, S, H) and h_n.shape == (1, B, H)
    assert jnp.allclose(out, ref_out, atol=1e-4, rtol=1e-4)
    assert jnp.allclose(h_n, ref_h, atol=1e-4, rtol=1e-4)

    # 2) performance defaults (bf16 input projection, auto tiles) — looser tolerance only
    #    because operands are rounded to bf16; accumulation/bias/carry stay f32.
    out2, h_n2 = unpacked_sequence_encoder(sequence, sequence_length, params)
    jax.block_until_ready((out2, h_n2))
    assert jnp.allclose(out2, ref_out, atol=5e-2, rtol=5e-2)
    assert jnp.allclose(h_n2, ref_h, atol=5e-2, rtol=5e-2)

    # 3) explicit (non-zero) initial hidden state, f32 path, default tiling
    h0 = jax.random.normal(k_h0, (1, B, H), dtype=jnp.float32) * 0.1
    out3, h_n3 = unpacked_sequence_encoder(sequence, sequence_length, params,
                                           hidden_state=h0,
                                           input_proj_dtype=jnp.float32)
    jax.block_until_ready((out3, h_n3))
    ref_out3, ref_h3 = reference_encoder(sequence, sequence_length, params, hidden_state=h0)
    assert jnp.allclose(out3, ref_out3, atol=1e-4, rtol=1e-4)
    assert jnp.allclose(h_n3, ref_h3, atol=1e-4, rtol=1e-4)

    print("KERNEL_OK")
</pallas_src>

<mosaic_0001>
module attributes {stable_mosaic.version = 11 : i64} {
  func.func @rnn_chunk_kernel(%arg0: i32, %arg1: i32, %arg2: memref<2xi32, #tpu.memory_space<smem>>, %arg3: memref<16x1xi32, #tpu.memory_space<vmem>>, %arg4: memref<8x16x16xf32, #tpu.memory_space<vmem>>, %arg5: memref<16x128xf32, #tpu.memory_space<vmem>>, %arg6: memref<16x128xf32, #tpu.memory_space<vmem>>, %arg7: memref<128x128xf32, #tpu.memory_space<vmem>>, %arg8: memref<1x128xf32, #tpu.memory_space<vmem>>, %arg9: memref<8x16x128xf32, #tpu.memory_space<vmem>>, %arg10: memref<16x128xf32, #tpu.memory_space<vmem>>, %arg11: memref<16x128xf32, #tpu.memory_space<vmem>>, %arg12: memref<8x16x128xf32, #tpu.memory_space<vmem>>) attributes {dimension_semantics = [#tpu.dimension_semantics<parallel>, #tpu.dimension_semantics<arbitrary>], iteration_bounds = array<i64: 2, 5>, scalar_prefetch = 1 : i64, scratch_operands = 2 : i64, tpu.core_type = #tpu.core_type<tc>, window_params = [{transform_indices = @transform_0, window_bounds = array<i64: 16, 1>}, {transform_indices = @transform_1, window_bounds = array<i64: 8, 16, 16>}, {transform_indices = @transform_2, window_bounds = array<i64: 16, 128>}, {pipeline_mode = #tpu.pipeline_mode<synchronous>, transform_indices = @transform_3, window_bounds = array<i64: 16, 128>}, {pipeline_mode = #tpu.pipeline_mode<synchronous>, transform_indices = @transform_4, window_bounds = array<i64: 128, 128>}, {pipeline_mode = #tpu.pipeline_mode<synchronous>, transform_indices = @transform_5, window_bounds = array<i64: 1, 128>}, {transform_indices = @transform_6, window_bounds = array<i64: 8, 16, 128>}, {transform_indices = @transform_7, window_bounds = array<i64: 16, 128>}]} {
    %c8_i32 = arith.constant 8 : i32
    %0 = arith.muli %arg1, %c8_i32 : i32
    %c0_i32 = arith.constant 0 : i32
    %1 = arith.cmpi eq, %arg1, %c0_i32 : i32
    %2 = arith.extui %1 : i1 to i32
    %c0_i32_0 = arith.constant 0 : i32
    %3 = arith.cmpi ne, %2, %c0_i32_0 : i32
    scf.if %3 {
      %c0 = arith.constant 0 : index
      %c0_4 = arith.constant 0 : index
      %15 = vector.load %arg5[%c0, %c0_4] : memref<16x128xf32, #tpu.memory_space<vmem>>, vector<16x128xf32>
      %c0_5 = arith.constant 0 : index
      %c0_6 = arith.constant 0 : index
      %16 = vector.load %arg11[%c0_5, %c0_6] : memref<16x128xf32, #tpu.memory_space<vmem>>, vector<16x128xf32>
      tpu.vector_store %arg11[%c0_5, %c0_6], %15 {strides = array<i32>} : memref<16x128xf32, #tpu.memory_space<vmem>>, vector<16x128xf32>,
    } else {
    }
    %4 = arith.index_cast %arg0 : i32 to index
    %5 = memref.load %arg2[%4] : memref<2xi32, #tpu.memory_space<smem>>
    %6 = arith.cmpi sge, %0, %5 : i32
    %7 = arith.extui %6 : i1 to i32
    %c0_i32_1 = arith.constant 0 : i32
    %8 = arith.cmpi ne, %7, %c0_i32_1 : i32
    scf.if %8 {
      %cst = arith.constant 0.000000e+00 : f32
      %15 = vector.broadcast %cst : f32 to vector<8x16x128xf32>
      %c0 = arith.constant 0 : index
      %c0_4 = arith.constant 0 : index
      %c0_5 = arith.constant 0 : index
      %16 = vector.load %arg9[%c0, %c0_4, %c0_5] : memref<8x16x128xf32, #tpu.memory_space<vmem>>, vector<8x16x128xf32>
      tpu.vector_store %arg9[%c0, %c0_4, %c0_5], %15 {strides = array<i32>} : memref<8x16x128xf32, #tpu.memory_space<vmem>>, vector<8x16x128xf32>,
    } else {
    }
    %9 = arith.cmpi slt, %0, %5 : i32
    %10 = arith.extui %9 : i1 to i32
    %c0_i32_2 = arith.constant 0 : i32
    %11 = arith.cmpi ne, %10, %c0_i32_2 : i32
    scf.if %11 {
      %c0 = arith.constant 0 : index
      %c0_4 = arith.constant 0 : index
      %c0_5 = arith.constant 0 : index
      %15 = vector.load %arg4[%c0, %c0_4, %c0_5] : memref<8x16x16xf32, #tpu.memory_space<vmem>>, vector<8x16x16xf32>
      %16 = vector.shape_cast %15 : vector<8x16x16xf32> to vector<128x16xf32>
      %c0_6 = arith.constant 0 : index
      %c0_7 = arith.constant 0 : index
      %17 = vector.load %arg6[%c0_6, %c0_7] : memref<16x128xf32, #tpu.memory_space<vmem>>, vector<16x128xf32>
      %cst = arith.constant dense<0.000000e+00> : vector<128x128xf32>
      %18 = tpu.matmul %16, %17, %cst {dimension_numbers = #tpu.dot_dimension_numbers<[1], [0], [0], [1], [0, 0, 1, 1], [], []>} : vector<128x16xf32>, vector<16x128xf32>, vector<128x128xf32> -> vector<128x128xf32>
      %c0_8 = arith.constant 0 : index
      %c0_9 = arith.constant 0 : index
      %19 = vector.load %arg8[%c0_8, %c0_9] : memref<1x128xf32, #tpu.memory_space<vmem>>, vector<1x128xf32>
      %20 = vector.broadcast %19 : vector<1x128xf32> to vector<128x128xf32>
      %21 = arith.addf %18, %20 : vector<128x128xf32>
      %22 = vector.shape_cast %21 : vector<128x128xf32> to vector<8x16x128xf32>
      %c0_10 = arith.constant 0 : index
      %c0_11 = arith.constant 0 : index
      %c0_12 = arith.constant 0 : index
      %23 = vector.load %arg12[%c0_10, %c0_11, %c0_12] : memref<8x16x128xf32, #tpu.memory_space<vmem>>, vector<8x16x128xf32>
      tpu.vector_store %arg12[%c0_10, %c0_11, %c0_12], %22 {strides = array<i32>} : memref<8x16x128xf32, #tpu.memory_space<vmem>>, vector<8x16x128xf32>,
      %c0_13 = arith.constant 0 : index
      %c0_14 = arith.constant 0 : index
      %24 = vector.load %arg7[%c0_13, %c0_14] : memref<128x128xf32, #tpu.memory_space<vmem>>, vector<128x128xf32>
      %c0_15 = arith.constant 0 : index
      %c0_16 = arith.constant 0 : index
      %25 = vector.load %arg11[%c0_15, %c0_16] : memref<16x128xf32, #tpu.memory_space<vmem>>, vector<8x128xf32>
      %c8 = arith.constant 8 : index
      %c0_17 = arith.constant 0 : index
      %26 = vector.load %arg11[%c8, %c0_17] : memref<16x128xf32, #tpu.memory_space<vmem>>, vector<8x128xf32>
      %c0_18 = arith.constant 0 : index
      %c0_19 = arith.constant 0 : index
      %27 = vector.load %arg3[%c0_18, %c0_19] : memref<16x1xi32, #tpu.memory_space<vmem>>, vector<8x1xi32>
      %c8_20 = arith.constant 8 : index
      %c0_21 = arith.constant 0 : index
      %28 = vector.load %arg3[%c8_20, %c0_21] : memref<16x1xi32, #tpu.memory_space<vmem>>, vector<8x1xi32>
      %c0_i32_22 = arith.constant 0 : i32
      %29 = arith.addi %0, %c0_i32_22 : i32
      %c0_23 = arith.constant 0 : index
      %c0_24 = arith.constant 0 : index
      %c0_25 = arith.constant 0 : index
      %30 = vector.load %arg12[%c0_23, %c0_24, %c0_25] : memref<8x16x128xf32, #tpu.memory_space<vmem>>, vector<1x8x128xf32>
      %31 = vector.shape_cast %30 : vector<1x8x128xf32> to vector<8x128xf32>
      %cst_26 = arith.constant dense<0.000000e+00> : vector<8x128xf32>
      %32 = tpu.matmul %25, %24, %cst_26 {dimension_numbers = #tpu.dot_dimension_numbers<[1], [0], [0], [1], [0, 0, 1, 1], [], []>} : vector<8x128xf32>, vector<128x128xf32>, vector<8x128xf32> -> vector<8x128xf32>
      %33 = arith.addf %31, %32 : vector<8x128xf32>
      %34 = math.tanh %33 : vector<8x128xf32>
      %c0_27 = arith.constant 0 : index
      %c8_28 = arith.constant 8 : index
      %c0_29 = arith.constant 0 : index
      %35 = vector.load %arg12[%c0_27, %c8_28, %c0_29] : memref<8x16x128xf32, #tpu.memory_space<vmem>>, vector<1x8x128xf32>
      %36 = vector.shape_cast %35 : vector<1x8x128xf32> to vector<8x128xf32>
      %cst_30 = arith.constant dense<0.000000e+00> : vector<8x128xf32>
      %37 = tpu.matmul %26, %24, %cst_30 {dimension_numbers = #tpu.dot_dimension_numbers<[1], [0], [0], [1], [0, 0, 1, 1], [], []>} : vector<8x128xf32>, vector<128x128xf32>, vector<8x128xf32> -> vector<8x128xf32>
      %38 = arith.addf %36, %37 : vector<8x128xf32>
      %39 = math.tanh %38 : vector<8x128xf32>
      %40 = vector.broadcast %29 : i32 to vector<8x1xi32>
      %41 = arith.cmpi slt, %40, %27 : vector<8x1xi32>
      %42 = vector.shape_cast %41 : vector<8x1xi1> to vector<8x1xi1>
      %43 = vector.broadcast %42 : vector<8x1xi1> to vector<8x128xi1>
      %44 = arith.select %43, %34, %25 : vector<8x128xi1>, vector<8x128xf32>
      %cst_31 = arith.constant 0.000000e+00 : f32
      %45 = vector.shape_cast %41 : vector<8x1xi1> to vector<8x1xi1>
      %46 = vector.broadcast %45 : vector<8x1xi1> to vector<8x128xi1>
      %47 = vector.broadcast %cst_31 : f32 to vector<8x128xf32>
      %48 = arith.select %46, %34, %47 : vector<8x128xi1>, vector<8x128xf32>
      %c0_32 = arith.constant 0 : index
      %c0_33 = arith.constant 0 : index
      %c0_34 = arith.constant 0 : index
      %49 = vector.load %arg9[%c0_32, %c0_33, %c0_34] : memref<8x16x128xf32, #tpu.memory_space<vmem>>, vector<1x8x128xf32>
      %50 = vector.shape_cast %49 : vector<1x8x128xf32> to vector<8x128xf32>
      %51 = vector.shape_cast %48 : vector<8x128xf32> to vector<1x8x128xf32>
      tpu.vector_store %arg9[%c0_32, %c0_33, %c0_34], %51 {strides = array<i32>} : memref<8x16x128xf32, #tpu.memory_space<vmem>>, vector<1x8x128xf32>,
      %52 = vector.broadcast %29 : i32 to vector<8x1xi32>
      %53 = arith.cmpi slt, %52, %28 : vector<8x1xi32>
      %54 = vector.shape_cast %53 : vector<8x1xi1> to vector<8x1xi1>
      %55 = vector.broadcast %54 : vector<8x1xi1> to vector<8x128xi1>
      %56 = arith.select %55, %39, %26 : vector<8x128xi1>, vector<8x128xf32>
      %cst_35 = arith.constant 0.000000e+00 : f32
      %57 = vector.shape_cast %53 : vector<8x1xi1> to vector<8x1xi1>
      %58 = vector.broadcast %57 : vector<8x1xi1> to vector<8x128xi1>
      %59 = vector.broadcast %cst_35 : f32 to vector<8x128xf32>
      %60 = arith.select %58, %39, %59 : vector<8x128xi1>, vector<8x128xf32>
      %c0_36 = arith.constant 0 : index
      %c8_37 = arith.constant 8 : index
      %c0_38 = arith.constant 0 : index
      %61 = vector.load %arg9[%c0_36, %c8_37, %c0_38] : memref<8x16x128xf32, #tpu.memory_space<vmem>>, vector<1x8x128xf32>
      %62 = vector.shape_cast %61 : vector<1x8x128xf32> to vector<8x128xf32>
      %63 = vector.shape_cast %60 : vector<8x128xf32> to vector<1x8x128xf32>
      tpu.vector_store %arg9[%c0_36, %c8_37, %c0_38], %63 {strides = array<i32>} : memref<8x16x128xf32, #tpu.memory_space<vmem>>, vector<1x8x128xf32>,
      %c1_i32 = arith.constant 1 : i32
      %64 = arith.addi %0, %c1_i32 : i32
      %c1 = arith.constant 1 : index
      %c0_39 = arith.constant 0 : index
      %c0_40 = arith.constant 0 : index
      %65 = vector.load %arg12[%c1, %c0_39, %c0_40] : memref<8x16x128xf32, #tpu.memory_space<vmem>>, vector<1x8x128xf32>
      %66 = vector.shape_cast %65 : vector<1x8x128xf32> to vector<8x128xf32>
      %cst_41 = arith.constant dense<0.000000e+00> : vector<8x128xf32>
      %67 = tpu.matmul %44, %24, %cst_41 {dimension_numbers = #tpu.dot_dimension_numbers<[1], [0], [0], [1], [0, 0, 1, 1], [], []>} : vector<8x128xf32>, vector<128x128xf32>, vector<8x128xf32> -> vector<8x128xf32>
      %68 = arith.addf %66, %67 : vector<8x128xf32>
      %69 = math.tanh %68 : vector<8x128xf32>
      %c1_42 = arith.constant 1 : index
      %c8_43 = arith.constant 8 : index
      %c0_44 = arith.constant 0 : index
      %70 = vector.load %arg12[%c1_42, %c8_43, %c0_44] : memref<8x16x128xf32, #tpu.memory_space<vmem>>, vector<1x8x128xf32>
      %71 = vector.shape_cast %70 : vector<1x8x128xf32> to vector<8x128xf32>
      %cst_45 = arith.constant dense<0.000000e+00> : vector<8x128xf32>
      %72 = tpu.matmul %56, %24, %cst_45 {dimension_numbers = #tpu.dot_dimension_numbers<[1], [0], [0], [1], [0, 0, 1, 1], [], []>} : vector<8x128xf32>, vector<128x128xf32>, vector<8x128xf32> -> vector<8x128xf32>
      %73 = arith.addf %71, %72 : vector<8x128xf32>
      %74 = math.tanh %73 : vector<8x128xf32>
      %75 = vector.broadcast %64 : i32 to vector<8x1xi32>
      %76 = arith.cmpi slt, %75, %27 : vector<8x1xi32>
      %77 = vector.shape_cast %76 : vector<8x1xi1> to vector<8x1xi1>
      %78 = vector.broadcast %77 : vector<8x1xi1> to vector<8x128xi1>
      %79 = arith.select %78, %69, %44 : vector<8x128xi1>, vector<8x128xf32>
      %cst_46 = arith.constant 0.000000e+00 : f32
      %80 = vector.shape_cast %76 : vector<8x1xi1> to vector<8x1xi1>
      %81 = vector.broadcast %80 : vector<8x1xi1> to vector<8x128xi1>
      %82 = vector.broadcast %cst_46 : f32 to vector<8x128xf32>
      %83 = arith.select %81, %69, %82 : vector<8x128xi1>, vector<8x128xf32>
      %c1_47 = arith.constant 1 : index
      %c0_48 = arith.constant 0 : index
      %c0_49 = arith.constant 0 : index
      %84 = vector.load %arg9[%c1_47, %c0_48, %c0_49] : memref<8x16x128xf32, #tpu.memory_space<vmem>>, vector<1x8x128xf32>
      %85 = vector.shape_cast %84 : vector<1x8x128xf32> to vector<8x128xf32>
      %86 = vector.shape_cast %83 : vector<8x128xf32> to vector<1x8x128xf32>
      tpu.vector_store %arg9[%c1_47, %c0_48, %c0_49], %86 {strides = array<i32>} : memref<8x16x128xf32, #tpu.memory_space<vmem>>, vector<1x8x128xf32>,
      %87 = vector.broadcast %64 : i32 to vector<8x1xi32>
      %88 = arith.cmpi slt, %87, %28 : vector<8x1xi32>
      %89 = vector.shape_cast %88 : vector<8x1xi1> to vector<8x1xi1>
      %90 = vector.broadcast %89 : vector<8x1xi1> to vector<8x128xi1>
      %91 = arith.select %90, %74, %56 : vector<8x128xi1>, vector<8x128xf32>
      %cst_50 = arith.constant 0.000000e+00 : f32
      %92 = vector.shape_cast %88 : vector<8x1xi1> to vector<8x1xi1>
      %93 = vector.broadcast %92 : vector<8x1xi1> to vector<8x128xi1>
      %94 = vector.broadcast %cst_50 : f32 to vector<8x128xf32>
      %95 = arith.select %93, %74, %94 : vector<8x128xi1>, vector<8x128xf32>
      %c1_51 = arith.constant 1 : index
      %c8_52 = arith.constant 8 : index
      %c0_53 = arith.constant 0 : index
      %96 = vector.load %arg9[%c1_51, %c8_52, %c0_53] : memref<8x16x128xf32, #tpu.memory_space<vmem>>, vector<1x8x128xf32>
      %97 = vector.shape_cast %96 : vector<1x8x128xf32> to vector<8x128xf32>
      %98 = vector.shape_cast %95 : vector<8x128xf32> to vector<1x8x128xf32>
      tpu.vector_store %arg9[%c1_51, %c8_52, %c0_53], %98 {strides = array<i32>} : memref<8x16x128xf32, #tpu.memory_space<vmem>>, vector<1x8x128xf32>,
      %c2_i32 = arith.constant 2 : i32
      %99 = arith.addi %0, %c2_i32 : i32
      %c2 = arith.constant 2 : index
      %c0_54 = arith.constant 0 : index
      %c0_55 = arith.constant 0 : index
      %100 = vector.load %arg12[%c2, %c0_54, %c0_55] : memref<8x16x128xf32, #tpu.memory_space<vmem>>, vector<1x8x128xf32>
      %101 = vector.shape_cast %100 : vector<1x8x128xf32> to vector<8x128xf32>
      %cst_56 = arith.constant dense<0.000000e+00> : vector<8x128xf32>
      %102 = tpu.matmul %79, %24, %cst_56 {dimension_numbers = #tpu.dot_dimension_numbers<[1], [0], [0], [1], [0, 0, 1, 1], [], []>} : vector<8x128xf32>, vector<128x128xf32>, vector<8x128xf32> -> vector<8x128xf32>
      %103 = arith.addf %101, %102 : vector<8x128xf32>
      %104 = math.tanh %103 : vector<8x128xf32>
      %c2_57 = arith.constant 2 : index
      %c8_58 = arith.constant 8 : index
      %c0_59 = arith.constant 0 : index
      %105 = vector.load %arg12[%c2_57, %c8_58, %c0_59] : memref<8x16x128xf32, #tpu.memory_space<vmem>>, vector<1x8x128xf32>
      %106 = vector.shape_cast %105 : vector<1x8x128xf32> to vector<8x128xf32>
      %cst_60 = arith.constant dense<0.000000e+00> : vector<8x128xf32>
      %107 = tpu.matmul %91, %24, %cst_60 {dimension_numbers = #tpu.dot_dimension_numbers<[1], [0], [0], [1], [0, 0, 1, 1], [], []>} : vector<8x128xf32>, vector<128x128xf32>, vector<8x128xf32> -> vector<8x128xf32>
      %108 = arith.addf %106, %107 : vector<8x128xf32>
      %109 = math.tanh %108 : vector<8x128xf32>
      %110 = vector.broadcast %99 : i32 to vector<8x1xi32>
      %111 = arith.cmpi slt, %110, %27 : vector<8x1xi32>
      %112 = vector.shape_cast %111 : vector<8x1xi1> to vector<8x1xi1>
      %113 = vector.broadcast %112 : vector<8x1xi1> to vector<8x128xi1>
      %114 = arith.select %113, %104, %79 : vector<8x128xi1>, vector<8x128xf32>
      %cst_61 = arith.constant 0.000000e+00 : f32
      %115 = vector.shape_cast %111 : vector<8x1xi1> to vector<8x1xi1>
      %116 = vector.broadcast %115 : vector<8x1xi1> to vector<8x128xi1>
      %117 = vector.broadcast %cst_61 : f32 to vector<8x128xf32>
      %118 = arith.select %116, %104, %117 : vector<8x128xi1>, vector<8x128xf32>
      %c2_62 = arith.constant 2 : index
      %c0_63 = arith.constant 0 : index
      %c0_64 = arith.constant 0 : index
      %119 = vector.load %arg9[%c2_62, %c0_63, %c0_64] : memref<8x16x128xf32, #tpu.memory_space<vmem>>, vector<1x8x128xf32>
      %120 = vector.shape_cast %119 : vector<1x8x128xf32> to vector<8x128xf32>
      %121 = vector.shape_cast %118 : vector<8x128xf32> to vector<1x8x128xf32>
      tpu.vector_store %arg9[%c2_62, %c0_63, %c0_64], %121 {strides = array<i32>} : memref<8x16x128xf32, #tpu.memory_space<vmem>>, vector<1x8x128xf32>,
      %122 = vector.broadcast %99 : i32 to vector<8x1xi32>
      %123 = arith.cmpi slt, %122, %28 : vector<8x1xi32>
      %124 = vector.shape_cast %123 : vector<8x1xi1> to vector<8x1xi1>
      %125 = vector.broadcast %124 : vector<8x1xi1> to vector<8x128xi1>
      %126 = arith.select %125, %109, %91 : vector<8x128xi1>, vector<8x128xf32>
      %cst_65 = arith.constant 0.000000e+00 : f32
      %127 = vector.shape_cast %123 : vector<8x1xi1> to vector<8x1xi1>
      %128 = vector.broadcast %127 : vector<8x1xi1> to vector<8x128xi1>
      %129 = vector.broadcast %cst_65 : f32 to vector<8x128xf32>
      %130 = arith.select %128, %109, %129 : vector<8x128xi1>, vector<8x128xf32>
      %c2_66 = arith.constant 2 : index
      %c8_67 = arith.constant 8 : index
      %c0_68 = arith.constant 0 : index
      %131 = vector.load %arg9[%c2_66, %c8_67, %c0_68] : memref<8x16x128xf32, #tpu.memory_space<vmem>>, vector<1x8x128xf32>
      %132 = vector.shape_cast %131 : vector<1x8x128xf32> to vector<8x128xf32>
      %133 = vector.shape_cast %130 : vector<8x128xf32> to vector<1x8x128xf32>
      tpu.vector_store %arg9[%c2_66, %c8_67, %c0_68], %133 {strides = array<i32>} : memref<8x16x128xf32, #tpu.memory_space<vmem>>, vector<1x8x128xf32>,
      %c3_i32 = arith.constant 3 : i32
      %134 = arith.addi %0, %c3_i32 : i32
      %c3 = arith.constant 3 : index
      %c0_69 = arith.constant 0 : index
      %c0_70 = arith.constant 0 : index
      %135 = vector.load %arg12[%c3, %c0_69, %c0_70] : memref<8x16x128xf32, #tpu.memory_space<vmem>>, vector<1x8x128xf32>
      %136 = vector.shape_cast %135 : vector<1x8x128xf32> to vector<8x128xf32>
      %cst_71 = arith.constant dense<0.000000e+00> : vector<8x128xf32>
      %137 = tpu.matmul %114, %24, %cst_71 {dimension_numbers = #tpu.dot_dimension_numbers<[1], [0], [0], [1], [0, 0, 1, 1], [], []>} : vector<8x128xf32>, vector<128x128xf32>, vector<8x128xf32> -> vector<8x128xf32>
      %138 = arith.addf %136, %137 : vector<8x128xf32>
      %139 = math.tanh %138 : vector<8x128xf32>
      %c3_72 = arith.constant 3 : index
      %c8_73 = arith.constant 8 : index
      %c0_74 = arith.constant 0 : index
      %140 = vector.load %arg12[%c3_72, %c8_73, %c0_74] : memref<8x16x128xf32, #tpu.memory_space<vmem>>, vector<1x8x128xf32>
      %141 = vector.shape_cast %140 : vector<1x8x128xf32> to vector<8x128xf32>
      %cst_75 = arith.constant dense<0.000000e+00> : vector<8x128xf32>
      %142 = tpu.matmul %126, %24, %cst_75 {dimension_numbers = #tpu.dot_dimension_numbers<[1], [0], [0], [1], [0, 0, 1, 1], [], []>} : vector<8x128xf32>, vector<128x128xf32>, vector<8x128xf32> -> vector<8x128xf32>
      %143 = arith.addf %141, %142 : vector<8x128xf32>
      %144 = math.tanh %143 : vector<8x128xf32>
      %145 = vector.broadcast %134 : i32 to vector<8x1xi32>
      %146 = arith.cmpi slt, %145, %27 : vector<8x1xi32>
      %147 = vector.shape_cast %146 : vector<8x1xi1> to vector<8x1xi1>
      %148 = vector.broadcast %147 : vector<8x1xi1> to vector<8x128xi1>
      %149 = arith.select %148, %139, %114 : vector<8x128xi1>, vector<8x128xf32>
      %cst_76 = arith.constant 0.000000e+00 : f32
      %150 = vector.shape_cast %146 : vector<8x1xi1> to vector<8x1xi1>
      %151 = vector.broadcast %150 : vector<8x1xi1> to vector<8x128xi1>
      %152 = vector.broadcast %cst_76 : f32 to vector<8x128xf32>
      %153 = arith.select %151, %139, %152 : vector<8x128xi1>, vector<8x128xf32>
      %c3_77 = arith.constant 3 : index
      %c0_78 = arith.constant 0 : index
      %c0_79 = arith.constant 0 : index
      %154 = vector.load %arg9[%c3_77, %c0_78, %c0_79] : memref<8x16x128xf32, #tpu.memory_space<vmem>>, vector<1x8x128xf32>
      %155 = vector.shape_cast %154 : vector<1x8x128xf32> to vector<8x128xf32>
      %156 = vector.shape_cast %153 : vector<8x128xf32> to vector<1x8x128xf32>
      tpu.vector_store %arg9[%c3_77, %c0_78, %c0_79], %156 {strides = array<i32>} : memref<8x16x128xf32, #tpu.memory_space<vmem>>, vector<1x8x128xf32>,
      %157 = vector.broadcast %134 : i32 to vector<8x1xi32>
      %158 = arith.cmpi slt, %157, %28 : vector<8x1xi32>
      %159 = vector.shape_cast %158 : vector<8x1xi1> to vector<8x1xi1>
      %160 = vector.broadcast %159 : vector<8x1xi1> to vector<8x128xi1>
      %161 = arith.select %160, %144, %126 : vector<8x128xi1>, vector<8x128xf32>
      %cst_80 = arith.constant 0.000000e+00 : f32
      %162 = vector.shape_cast %158 : vector<8x1xi1> to vector<8x1xi1>
      %163 = vector.broadcast %162 : vector<8x1xi1> to vector<8x128xi1>
      %164 = vector.broadcast %cst_80 : f32 to vector<8x128xf32>
      %165 = arith.select %163, %144, %164 : vector<8x128xi1>, vector<8x128xf32>
      %c3_81 = arith.constant 3 : index
      %c8_82 = arith.constant 8 : index
      %c0_83 = arith.constant 0 : index
      %166 = vector.load %arg9[%c3_81, %c8_82, %c0_83] : memref<8x16x128xf32, #tpu.memory_space<vmem>>, vector<1x8x128xf32>
      %167 = vector.shape_cast %166 : vector<1x8x128xf32> to vector<8x128xf32>
      %168 = vector.shape_cast %165 : vector<8x128xf32> to vector<1x8x128xf32>
      tpu.vector_store %arg9[%c3_81, %c8_82, %c0_83], %168 {strides = array<i32>} : memref<8x16x128xf32, #tpu.memory_space<vmem>>, vector<1x8x128xf32>,
      %c4_i32_84 = arith.constant 4 : i32
      %169 = arith.addi %0, %c4_i32_84 : i32
      %c4 = arith.constant 4 : index
      %c0_85 = arith.constant 0 : index
      %c0_86 = arith.constant 0 : index
      %170 = vector.load %arg12[%c4, %c0_85, %c0_86] : memref<8x16x128xf32, #tpu.memory_space<vmem>>, vector<1x8x128xf32>
      %171 = vector.shape_cast %170 : vector<1x8x128xf32> to vector<8x128xf32>
      %cst_87 = arith.constant dense<0.000000e+00> : vector<8x128xf32>
      %172 = tpu.matmul %149, %24, %cst_87 {dimension_numbers = #tpu.dot_dimension_numbers<[1], [0], [0], [1], [0, 0, 1, 1], [], []>} : vector<8x128xf32>, vector<128x128xf32>, vector<8x128xf32> -> vector<8x128xf32>
      %173 = arith.addf %171, %172 : vector<8x128xf32>
      %174 = math.tanh %173 : vector<8x128xf32>
      %c4_88 = arith.constant 4 : index
      %c8_89 = arith.constant 8 : index
      %c0_90 = arith.constant 0 : index
      %175 = vector.load %arg12[%c4_88, %c8_89, %c0_90] : memref<8x16x128xf32, #tpu.memory_space<vmem>>, vector<1x8x128xf32>
      %176 = vector.shape_cast %175 : vector<1x8x128xf32> to vector<8x128xf32>
      %cst_91 = arith.constant dense<0.000000e+00> : vector<8x128xf32>
      %177 = tpu.matmul %161, %24, %cst_91 {dimension_numbers = #tpu.dot_dimension_numbers<[1], [0], [0], [1], [0, 0, 1, 1], [], []>} : vector<8x128xf32>, vector<128x128xf32>, vector<8x128xf32> -> vector<8x128xf32>
      %178 = arith.addf %176, %177 : vector<8x128xf32>
      %179 = math.tanh %178 : vector<8x128xf32>
      %180 = vector.broadcast %169 : i32 to vector<8x1xi32>
      %181 = arith.cmpi slt, %180, %27 : vector<8x1xi32>
      %182 = vector.shape_cast %181 : vector<8x1xi1> to vector<8x1xi1>
      %183 = vector.broadcast %182 : vector<8x1xi1> to vector<8x128xi1>
      %184 = arith.select %183, %174, %149 : vector<8x128xi1>, vector<8x128xf32>
      %cst_92 = arith.constant 0.000000e+00 : f32
      %185 = vector.shape_cast %181 : vector<8x1xi1> to vector<8x1xi1>
      %186 = vector.broadcast %185 : vector<8x1xi1> to vector<8x128xi1>
      %187 = vector.broadcast %cst_92 : f32 to vector<8x128xf32>
      %188 = arith.select %186, %174, %187 : vector<8x128xi1>, vector<8x128xf32>
      %c4_93 = arith.constant 4 : index
      %c0_94 = arith.constant 0 : index
      %c0_95 = arith.constant 0 : index
      %189 = vector.load %arg9[%c4_93, %c0_94, %c0_95] : memref<8x16x128xf32, #tpu.memory_space<vmem>>, vector<1x8x128xf32>
      %190 = vector.shape_cast %189 : vector<1x8x128xf32> to vector<8x128xf32>
      %191 = vector.shape_cast %188 : vector<8x128xf32> to vector<1x8x128xf32>
      tpu.vector_store %arg9[%c4_93, %c0_94, %c0_95], %191 {strides = array<i32>} : memref<8x16x128xf32, #tpu.memory_space<vmem>>, vector<1x8x128xf32>,
      %192 = vector.broadcast %169 : i32 to vector<8x1xi32>
      %193 = arith.cmpi slt, %192, %28 : vector<8x1xi32>
      %194 = vector.shape_cast %193 : vector<8x1xi1> to vector<8x1xi1>
      %195 = vector.broadcast %194 : vector<8x1xi1> to vector<8x128xi1>
      %196 = arith.select %195, %179, %161 : vector<8x128xi1>, vector<8x128xf32>
      %cst_96 = arith.constant 0.000000e+00 : f32
      %197 = vector.shape_cast %193 : vector<8x1xi1> to vector<8x1xi1>
      %198 = vector.broadcast %197 : vector<8x1xi1> to vector<8x128xi1>
      %199 = vector.broadcast %cst_96 : f32 to vector<8x128xf32>
      %200 = arith.select %198, %179, %199 : vector<8x128xi1>, vector<8x128xf32>
      %c4_97 = arith.constant 4 : index
      %c8_98 = arith.constant 8 : index
      %c0_99 = arith.constant 0 : index
      %201 = vector.load %arg9[%c4_97, %c8_98, %c0_99] : memref<8x16x128xf32, #tpu.memory_space<vmem>>, vector<1x8x128xf32>
      %202 = vector.shape_cast %201 : vector<1x8x128xf32> to vector<8x128xf32>
      %203 = vector.shape_cast %200 : vector<8x128xf32> to vector<1x8x128xf32>
      tpu.vector_store %arg9[%c4_97, %c8_98, %c0_99], %203 {strides = array<i32>} : memref<8x16x128xf32, #tpu.memory_space<vmem>>, vector<1x8x128xf32>,
      %c5_i32 = arith.constant 5 : i32
      %204 = arith.addi %0, %c5_i32 : i32
      %c5 = arith.constant 5 : index
      %c0_100 = arith.constant 0 : index
      %c0_101 = arith.constant 0 : index
      %205 = vector.load %arg12[%c5, %c0_100, %c0_101] : memref<8x16x128xf32, #tpu.memory_space<vmem>>, vector<1x8x128xf32>
      %206 = vector.shape_cast %205 : vector<1x8x128xf32> to vector<8x128xf32>
      %cst_102 = arith.constant dense<0.000000e+00> : vector<8x128xf32>
      %207 = tpu.matmul %184, %24, %cst_102 {dimension_numbers = #tpu.dot_dimension_numbers<[1], [0], [0], [1], [0, 0, 1, 1], [], []>} : vector<8x128xf32>, vector<128x128xf32>, vector<8x128xf32> -> vector<8x128xf32>
      %208 = arith.addf %206, %207 : vector<8x128xf32>
      %209 = math.tanh %208 : vector<8x128xf32>
      %c5_103 = arith.constant 5 : index
      %c8_104 = arith.constant 8 : index
      %c0_105 = arith.constant 0 : index
      %210 = vector.load %arg12[%c5_103, %c8_104, %c0_105] : memref<8x16x128xf32, #tpu.memory_space<vmem>>, vector<1x8x128xf32>
      %211 = vector.shape_cast %210 : vector<1x8x128xf32> to vector<8x128xf32>
      %cst_106 = arith.constant dense<0.000000e+00> : vector<8x128xf32>
      %212 = tpu.matmul %196, %24, %cst_106 {dimension_numbers = #tpu.dot_dimension_numbers<[1], [0], [0], [1], [0, 0, 1, 1], [], []>} : vector<8x128xf32>, vector<128x128xf32>, vector<8x128xf32> -> vector<8x128xf32>
      %213 = arith.addf %211, %212 : vector<8x128xf32>
      %214 = math.tanh %213 : vector<8x128xf32>
      %215 = vector.broadcast %204 : i32 to vector<8x1xi32>
      %216 = arith.cmpi slt, %215, %27 : vector<8x1xi32>
      %217 = vector.shape_cast %216 : vector<8x1xi1> to vector<8x1xi1>
      %218 = vector.broadcast %217 : vector<8x1xi1> to vector<8x128xi1>
      %219 = arith.select %218, %209, %184 : vector<8x128xi1>, vector<8x128xf32>
      %cst_107 = arith.constant 0.000000e+00 : f32
      %220 = vector.shape_cast %216 : vector<8x1xi1> to vector<8x1xi1>
      %221 = vector.broadcast %220 : vector<8x1xi1> to vector<8x128xi1>
      %222 = vector.broadcast %cst_107 : f32 to vector<8x128xf32>
      %223 = arith.select %221, %209, %222 : vector<8x128xi1>, vector<8x128xf32>
      %c5_108 = arith.constant 5 : index
      %c0_109 = arith.constant 0 : index
      %c0_110 = arith.constant 0 : index
      %224 = vector.load %arg9[%c5_108, %c0_109, %c0_110] : memref<8x16x128xf32, #tpu.memory_space<vmem>>, vector<1x8x128xf32>
      %225 = vector.shape_cast %224 : vector<1x8x128xf32> to vector<8x128xf32>
      %226 = vector.shape_cast %223 : vector<8x128xf32> to vector<1x8x128xf32>
      tpu.vector_store %arg9[%c5_108, %c0_109, %c0_110], %226 {strides = array<i32>} : memref<8x16x128xf32, #tpu.memory_space<vmem>>, vector<1x8x128xf32>,
      %227 = vector.broadcast %204 : i32 to vector<8x1xi32>
      %228 = arith.cmpi slt, %227, %28 : vector<8x1xi32>
      %229 = vector.shape_cast %228 : vector<8x1xi1> to vector<8x1xi1>
      %230 = vector.broadcast %229 : vector<8x1xi1> to vector<8x128xi1>
      %231 = arith.select %230, %214, %196 : vector<8x128xi1>, vector<8x128xf32>
      %cst_111 = arith.constant 0.000000e+00 : f32
      %232 = vector.shape_cast %228 : vector<8x1xi1> to vector<8x1xi1>
      %233 = vector.broadcast %232 : vector<8x1xi1> to vector<8x128xi1>
      %234 = vector.broadcast %cst_111 : f32 to vector<8x128xf32>
      %235 = arith.select %233, %214, %234 : vector<8x128xi1>, vector<8x128xf32>
      %c5_112 = arith.constant 5 : index
      %c8_113 = arith.constant 8 : index
      %c0_114 = arith.constant 0 : index
      %236 = vector.load %arg9[%c5_112, %c8_113, %c0_114] : memref<8x16x128xf32, #tpu.memory_space<vmem>>, vector<1x8x128xf32>
      %237 = vector.shape_cast %236 : vector<1x8x128xf32> to vector<8x128xf32>
      %238 = vector.shape_cast %235 : vector<8x128xf32> to vector<1x8x128xf32>
      tpu.vector_store %arg9[%c5_112, %c8_113, %c0_114], %238 {strides = array<i32>} : memref<8x16x128xf32, #tpu.memory_space<vmem>>, vector<1x8x128xf32>,
      %c6_i32 = arith.constant 6 : i32
      %239 = arith.addi %0, %c6_i32 : i32
      %c6 = arith.constant 6 : index
      %c0_115 = arith.constant 0 : index
      %c0_116 = arith.constant 0 : index
      %240 = vector.load %arg12[%c6, %c0_115, %c0_116] : memref<8x16x128xf32, #tpu.memory_space<vmem>>, vector<1x8x128xf32>
      %241 = vector.shape_cast %240 : vector<1x8x128xf32> to vector<8x128xf32>
      %cst_117 = arith.constant dense<0.000000e+00> : vector<8x128xf32>
      %242 = tpu.matmul %219, %24, %cst_117 {dimension_numbers = #tpu.dot_dimension_numbers<[1], [0], [0], [1], [0, 0, 1, 1], [], []>} : vector<8x128xf32>, vector<128x128xf32>, vector<8x128xf32> -> vector<8x128xf32>
      %243 = arith.addf %241, %242 : vector<8x128xf32>
      %244 = math.tanh %243 : vector<8x128xf32>
      %c6_118 = arith.constant 6 : index
      %c8_119 = arith.constant 8 : index
      %c0_120 = arith.constant 0 : index
      %245 = vector.load %arg12[%c6_118, %c8_119, %c0_120] : memref<8x16x128xf32, #tpu.memory_space<vmem>>, vector<1x8x128xf32>
      %246 = vector.shape_cast %245 : vector<1x8x128xf32> to vector<8x128xf32>
      %cst_121 = arith.constant dense<0.000000e+00> : vector<8x128xf32>
      %247 = tpu.matmul %231, %24, %cst_121 {dimension_numbers = #tpu.dot_dimension_numbers<[1], [0], [0], [1], [0, 0, 1, 1], [], []>} : vector<8x128xf32>, vector<128x128xf32>, vector<8x128xf32> -> vector<8x128xf32>
      %248 = arith.addf %246, %247 : vector<8x128xf32>
      %249 = math.tanh %248 : vector<8x128xf32>
      %250 = vector.broadcast %239 : i32 to vector<8x1xi32>
      %251 = arith.cmpi slt, %250, %27 : vector<8x1xi32>
      %252 = vector.shape_cast %251 : vector<8x1xi1> to vector<8x1xi1>
      %253 = vector.broadcast %252 : vector<8x1xi1> to vector<8x128xi1>
      %254 = arith.select %253, %244, %219 : vector<8x128xi1>, vector<8x128xf32>
      %cst_122 = arith.constant 0.000000e+00 : f32
      %255 = vector.shape_cast %251 : vector<8x1xi1> to vector<8x1xi1>
      %256 = vector.broadcast %255 : vector<8x1xi1> to vector<8x128xi1>
      %257 = vector.broadcast %cst_122 : f32 to vector<8x128xf32>
      %258 = arith.select %256, %244, %257 : vector<8x128xi1>, vector<8x128xf32>
      %c6_123 = arith.constant 6 : index
      %c0_124 = arith.constant 0 : index
      %c0_125 = arith.constant 0 : index
      %259 = vector.load %arg9[%c6_123, %c0_124, %c0_125] : memref<8x16x128xf32, #tpu.memory_space<vmem>>, vector<1x8x128xf32>
      %260 = vector.shape_cast %259 : vector<1x8x128xf32> to vector<8x128xf32>
      %261 = vector.shape_cast %258 : vector<8x128xf32> to vector<1x8x128xf32>
      tpu.vector_store %arg9[%c6_123, %c0_124, %c0_125], %261 {strides = array<i32>} : memref<8x16x128xf32, #tpu.memory_space<vmem>>, vector<1x8x128xf32>,
      %262 = vector.broadcast %239 : i32 to vector<8x1xi32>
      %263 = arith.cmpi slt, %262, %28 : vector<8x1xi32>
      %264 = vector.shape_cast %263 : vector<8x1xi1> to vector<8x1xi1>
      %265 = vector.broadcast %264 : vector<8x1xi1> to vector<8x128xi1>
      %266 = arith.select %265, %249, %231 : vector<8x128xi1>, vector<8x128xf32>
      %cst_126 = arith.constant 0.000000e+00 : f32
      %267 = vector.shape_cast %263 : vector<8x1xi1> to vector<8x1xi1>
      %268 = vector.broadcast %267 : vector<8x1xi1> to vector<8x128xi1>
      %269 = vector.broadcast %cst_126 : f32 to vector<8x128xf32>
      %270 = arith.select %268, %249, %269 : vector<8x128xi1>, vector<8x128xf32>
      %c6_127 = arith.constant 6 : index
      %c8_128 = arith.constant 8 : index
      %c0_129 = arith.constant 0 : index
      %271 = vector.load %arg9[%c6_127, %c8_128, %c0_129] : memref<8x16x128xf32, #tpu.memory_space<vmem>>, vector<1x8x128xf32>
      %272 = vector.shape_cast %271 : vector<1x8x128xf32> to vector<8x128xf32>
      %273 = vector.shape_cast %270 : vector<8x128xf32> to vector<1x8x128xf32>
      tpu.vector_store %arg9[%c6_127, %c8_128, %c0_129], %273 {strides = array<i32>} : memref<8x16x128xf32, #tpu.memory_space<vmem>>, vector<1x8x128xf32>,
      %c7_i32 = arith.constant 7 : i32
      %274 = arith.addi %0, %c7_i32 : i32
      %c7 = arith.constant 7 : index
      %c0_130 = arith.constant 0 : index
      %c0_131 = arith.constant 0 : index
      %275 = vector.load %arg12[%c7, %c0_130, %c0_131] : memref<8x16x128xf32, #tpu.memory_space<vmem>>, vector<1x8x128xf32>
      %276 = vector.shape_cast %275 : vector<1x8x128xf32> to vector<8x128xf32>
      %cst_132 = arith.constant dense<0.000000e+00> : vector<8x128xf32>
      %277 = tpu.matmul %254, %24, %cst_132 {dimension_numbers = #tpu.dot_dimension_numbers<[1], [0], [0], [1], [0, 0, 1, 1], [], []>} : vector<8x128xf32>, vector<128x128xf32>, vector<8x128xf32> -> vector<8x128xf32>
      %278 = arith.addf %276, %277 : vector<8x128xf32>
      %279 = math.tanh %278 : vector<8x128xf32>
      %c7_133 = arith.constant 7 : index
      %c8_134 = arith.constant 8 : index
      %c0_135 = arith.constant 0 : index
      %280 = vector.load %arg12[%c7_133, %c8_134, %c0_135] : memref<8x16x128xf32, #tpu.memory_space<vmem>>, vector<1x8x128xf32>
      %281 = vector.shape_cast %280 : vector<1x8x128xf32> to vector<8x128xf32>
      %cst_136 = arith.constant dense<0.000000e+00> : vector<8x128xf32>
      %282 = tpu.matmul %266, %24, %cst_136 {dimension_numbers = #tpu.dot_dimension_numbers<[1], [0], [0], [1], [0, 0, 1, 1], [], []>} : vector<8x128xf32>, vector<128x128xf32>, vector<8x128xf32> -> vector<8x128xf32>
      %283 = arith.addf %281, %282 : vector<8x128xf32>
      %284 = math.tanh %283 : vector<8x128xf32>
      %285 = vector.broadcast %274 : i32 to vector<8x1xi32>
      %286 = arith.cmpi slt, %285, %27 : vector<8x1xi32>
      %287 = vector.shape_cast %286 : vector<8x1xi1> to vector<8x1xi1>
      %288 = vector.broadcast %287 : vector<8x1xi1> to vector<8x128xi1>
      %289 = arith.select %288, %279, %254 : vector<8x128xi1>, vector<8x128xf32>
      %cst_137 = arith.constant 0.000000e+00 : f32
      %290 = vector.shape_cast %286 : vector<8x1xi1> to vector<8x1xi1>
      %291 = vector.broadcast %290 : vector<8x1xi1> to vector<8x128xi1>
      %292 = vector.broadcast %cst_137 : f32 to vector<8x128xf32>
      %293 = arith.select %291, %279, %292 : vector<8x128xi1>, vector<8x128xf32>
      %c7_138 = arith.constant 7 : index
      %c0_139 = arith.constant 0 : index
      %c0_140 = arith.constant 0 : index
      %294 = vector.load %arg9[%c7_138, %c0_139, %c0_140] : memref<8x16x128xf32, #tpu.memory_space<vmem>>, vector<1x8x128xf32>
      %295 = vector.shape_cast %294 : vector<1x8x128xf32> to vector<8x128xf32>
      %296 = vector.shape_cast %293 : vector<8x128xf32> to vector<1x8x128xf32>
      tpu.vector_store %arg9[%c7_138, %c0_139, %c0_140], %296 {strides = array<i32>} : memref<8x16x128xf32, #tpu.memory_space<vmem>>, vector<1x8x128xf32>,
      %297 = vector.broadcast %274 : i32 to vector<8x1xi32>
      %298 = arith.cmpi slt, %297, %28 : vector<8x1xi32>
      %299 = vector.shape_cast %298 : vector<8x1xi1> to vector<8x1xi1>
      %300 = vector.broadcast %299 : vector<8x1xi1> to vector<8x128xi1>
      %301 = arith.select %300, %284, %266 : vector<8x128xi1>, vector<8x128xf32>
      %cst_141 = arith.constant 0.000000e+00 : f32
      %302 = vector.shape_cast %298 : vector<8x1xi1> to vector<8x1xi1>
      %303 = vector.broadcast %302 : vector<8x1xi1> to vector<8x128xi1>
      %304 = vector.broadcast %cst_141 : f32 to vector<8x128xf32>
      %305 = arith.select %303, %284, %304 : vector<8x128xi1>, vector<8x128xf32>
      %c7_142 = arith.constant 7 : index
      %c8_143 = arith.constant 8 : index
      %c0_144 = arith.constant 0 : index
      %306 = vector.load %arg9[%c7_142, %c8_143, %c0_144] : memref<8x16x128xf32, #tpu.memory_space<vmem>>, vector<1x8x128xf32>
      %307 = vector.shape_cast %306 : vector<1x8x128xf32> to vector<8x128xf32>
      %308 = vector.shape_cast %305 : vector<8x128xf32> to vector<1x8x128xf32>
      tpu.vector_store %arg9[%c7_142, %c8_143, %c0_144], %308 {strides = array<i32>} : memref<8x16x128xf32, #tpu.memory_space<vmem>>, vector<1x8x128xf32>,
      %c0_145 = arith.constant 0 : index
      %c0_146 = arith.constant 0 : index
      %309 = vector.load %arg11[%c0_145, %c0_146] : memref<16x128xf32, #tpu.memory_space<vmem>>, vector<8x128xf32>
      tpu.vector_store %arg11[%c0_145, %c0_146], %289 {strides = array<i32>} : memref<16x128xf32, #tpu.memory_space<vmem>>, vector<8x128xf32>,
      %c8_147 = arith.constant 8 : index
      %c0_148 = arith.constant 0 : index
      %310 = vector.load %arg11[%c8_147, %c0_148] : memref<16x128xf32, #tpu.memory_space<vmem>>, vector<8x128xf32>
      tpu.vector_store %arg11[%c8_147, %c0_148], %301 {strides = array<i32>} : memref<16x128xf32, #tpu.memory_space<vmem>>, vector<8x128xf32>,
    } else {
    }
    %c4_i32 = arith.constant 4 : i32
    %12 = arith.cmpi eq, %arg1, %c4_i32 : i32
    %13 = arith.extui %12 : i1 to i32
    %c0_i32_3 = arith.constant 0 : i32
    %14 = arith.cmpi ne, %13, %c0_i32_3 : i32
    scf.if %14 {
      %c0 = arith.constant 0 : index
      %c0_4 = arith.constant 0 : index
      %15 = vector.load %arg11[%c0, %c0_4] : memref<16x128xf32, #tpu.memory_space<vmem>>, vector<16x128xf32>
      %c0_5 = arith.constant 0 : index
      %c0_6 = arith.constant 0 : index
      %16 = vector.load %arg10[%c0_5, %c0_6] : memref<16x128xf32, #tpu.memory_space<vmem>>, vector<16x128xf32>
      tpu.vector_store %arg10[%c0_5, %c0_6], %15 {strides = array<i32>} : memref<16x128xf32, #tpu.memory_space<vmem>>, vector<16x128xf32>,
    } else {
    }
    return
  }
  func.func @transform_0(%arg0: i32, %arg1: i32, %arg2: memref<2xi32, #tpu.memory_space<smem>>) -> (i32, i32) {
    %c0_i32 = arith.constant 0 : i32
    %c0_i32_0 = arith.constant 0 : i32
    return %arg0, %c0_i32 : i32, i32
  }
  func.func @transform_1(%arg0: i32, %arg1: i32, %arg2: memref<2xi32, #tpu.memory_space<smem>>) -> (i32, i32, i32) {
    %c0_i32 = arith.constant 0 : i32
    %c0_i32_0 = arith.constant 0 : i32
    return %arg1, %arg0, %c0_i32 : i32, i32, i32
  }
  func.func @transform_2(%arg0: i32, %arg1: i32, %arg2: memref<2xi32, #tpu.memory_space<smem>>) -> (i32, i32) {
    %c0_i32 = arith.constant 0 : i32
    %c0_i32_0 = arith.constant 0 : i32
    return %arg0, %c0_i32 : i32, i32
  }
  func.func @transform_3(%arg0: i32, %arg1: i32, %arg2: memref<2xi32, #tpu.memory_space<smem>>) -> (i32, i32) {
    %c0_i32 = arith.constant 0 : i32
    %c0_i32_0 = arith.constant 0 : i32
    %c0_i32_1 = arith.constant 0 : i32
    return %c0_i32, %c0_i32_0 : i32, i32
  }
  func.func @transform_4(%arg0: i32, %arg1: i32, %arg2: memref<2xi32, #tpu.memory_space<smem>>) -> (i32, i32) {
    %c0_i32 = arith.constant 0 : i32
    %c0_i32_0 = arith.constant 0 : i32
    %c0_i32_1 = arith.constant 0 : i32
    return %c0_i32, %c0_i32_0 : i32, i32
  }
  func.func @transform_5(%arg0: i32, %arg1: i32, %arg2: memref<2xi32, #tpu.memory_space<smem>>) -> (i32, i32) {
    %c0_i32 = arith.constant 0 : i32
    %c0_i32_0 = arith.constant 0 : i32
    %c0_i32_1 = arith.constant 0 : i32
    return %c0_i32, %c0_i32_0 : i32, i32
  }
  func.func @transform_6(%arg0: i32, %arg1: i32, %arg2: memref<2xi32, #tpu.memory_space<smem>>) -> (i32, i32, i32) {
    %c0_i32 = arith.constant 0 : i32
    %c0_i32_0 = arith.constant 0 : i32
    return %arg1, %arg0, %c0_i32 : i32, i32, i32
  }
  func.func @transform_7(%arg0: i32, %arg1: i32, %arg2: memref<2xi32, #tpu.memory_space<smem>>) -> (i32, i32) {
    %c0_i32 = arith.constant 0 : i32
    %c0_i32_0 = arith.constant 0 : i32
    return %arg0, %c0_i32 : i32, i32
  }
}

</mosaic_0001>

<llo_original>
// kernel: tpu_custom_call.1
$region0: #{tpu_custom_call.1}
  #allocation0 [shape = 'u32[]', space=smem, size = 0x4, offset = 0x4, fixed_abs, tag = 'smem constant byte address 0x4 - core index']
  #allocation1 [shape = 'u32[144,128]{1,0:T(1,128)}', space=vmem, size = 0x12000, scoped, tag = 'internal scratch']
  #allocation2 [shape = 'f32[16,128]{1,0:T(8,128)}', space=vmem, size = 0x2000, scoped, tag = 'scratch operand']
  #allocation3 [shape = 'f32[8,16,128]{2,1,0:T(8,128)}', space=vmem, size = 0x10000, scoped, tag = 'scratch operand']
  #allocation4 [shape = 's32[1]{0}', space=sflag, size = 0x4, scoped, tag = 'scoped memory for tpu_custom_call.1']
  #allocation5 [shape = 'u8[512]{0}', space=smem, size = 0x200, scoped, tag = 'prefetched SMEM operand 0']
  #allocation11 [shape = 's32[]', space=sflag, size = 0x4, offset = 0, fixed_abs, tag = 'sflag constant byte address 0x0 - dummy sync flag']
  %s0 = inlined_call_operand.vmem [shape: s32[2], index: 0, kind: input, shape index: {}]
  %s1 = inlined_call_operand.vmem [shape: s32[32,1], index: 1, kind: input, shape index: {}]
  %s2 = inlined_call_operand.vmem [shape: f32[40,32,16], index: 2, kind: input, shape index: {}]
  %s3 = inlined_call_operand.vmem [shape: f32[32,128], index: 3, kind: input, shape index: {}]
  %s4 = inlined_call_operand.vmem [shape: f32[16,128], index: 4, kind: input, shape index: {}]
  %s5 = inlined_call_operand.vmem [shape: f32[128,128], index: 5, kind: input, shape index: {}]
  %s6 = inlined_call_operand.vmem [shape: f32[1,128], index: 6, kind: input, shape index: {}]
  %s7 = inlined_call_operand.hbm [shape: f32[40,32,128], index: 7, kind: output, shape index: {0}]
  %s8 = inlined_call_operand.hbm [shape: f32[32,128], index: 8, kind: output, shape index: {1}]
  %9 = xla_tuple %s7, %s8
  %s10 = sld [smem:[#allocation0]]
  $region119: #{tpu_custom_call.1} parent=0
    _
  %s12 = ssub.s32 1, %s10
  %s13 = scalar_select 0, %s12, %s10
  %s14 = sshll.u32 %s0, 4
  %s15 = int_to_ptr.vmem [resolvable:$true] %s14
  %17 = dma.vmem_to_smem %s15, 16, [#allocation5], [#allocation4]
  %18 = dma.done [#allocation4], 16
  %19 = sfence
  $region1: #{tpu_custom_call.1} parent=0
    #allocation6 [shape = 'u8[131072]{0}', space=vmem, size = 0x20000, scoped, tag = 'input window, operand 2']
    #allocation7 [shape = 'u8[131072]{0}', space=vmem, size = 0x20000, scoped, tag = 'output window, operand 0']
    #allocation8 [shape = 's32[2]{0}', space=sflag, size = 0x8, scoped, tag = 'scoped memory for tpu_custom_call.1']
    #allocation9 [shape = 'u8[16384]{0}', space=vmem, size = 0x4000, scoped, tag = 'output window, operand 1']
    #allocation10 [shape = 's32[2]{0}', space=sflag, size = 0x8, scoped, tag = 'scoped memory for tpu_custom_call.1']
    %20 = vsyncpa [#allocation8], 0
    %s21 = scalar_lea.sflag [#allocation8], 1
    %22 = vsyncpa %s21, 0
    %23 = vsyncpa [#allocation10], 0
    %s24 = scalar_lea.sflag [#allocation10], 1
    %25 = vsyncpa %s24, 0
    loop: start=0, step=1, limit=12
    $region2: #{tpu_custom_call.1} parent=1 // loop_pre_header
      _
    $region3: #{tpu_custom_call.1} parent=1 // loop_header
      %s27 = sphi 0, %s31
      %p28 = scmp.ge.s32.totalorder %s27, 12
      %s34 = sphi 0, %s46
      %s35 = sphi 0, %s42
      %s36 = sphi 0, %s34
      %s37 = sphi 0, %s35
      %s38 = sphi 0, %s36
      %s39 = sphi 0, %s37
      %s49 = sphi 0, %s51
      %s52 = sphi 0, %s49
      %s53 = sphi 0, %s52
      %s69 = sphi 0, %s53
      %s77 = sphi 0, %s79
      %s80 = sphi 0, %s77
      %s81 = sphi 0, %s80
      %s97 = sphi 0, %s81
      %s103 = sphi 0, %s105
      %s106 = sphi 0, %s103
      %s107 = sphi 0, %s106
      %s123 = sphi 0, %s107
      %s127 = sphi 0, %s127
      %s129 = sphi 0, %s127
      %s130 = sphi 0, %s129
      %s144 = sphi 0, %s130
      %s148 = sphi 0, %s148
      %s150 = sphi 0, %s148
      %s151 = sphi 0, %s150
      %s165 = sphi 0, %s151
      %s169 = sphi 0, %s169
      %s171 = sphi 0, %s169
      %s172 = sphi 0, %s171
      %s186 = sphi 0, %s172
      %s194 = sphi 0, %s196
      %s197 = sphi 0, %s194
      %s198 = sphi 0, %s197
      %s214 = sphi 0, %s198
      %s220 = sphi 0, %s222
      %s223 = sphi 0, %s220
      %s224 = sphi 0, %s223
      %s240 = sphi 0, %s224
    $region4: #{tpu_custom_call.1} parent=1 // loop_header_branch
      %30 = sbr.rel (%p28) target = $region8
    $region5: #{tpu_custom_call.1} parent=1 // loop_body
      %s32 = ssub.s32 %s27, 1
      %s33 = ssub.s32 %s27, 2
      %s40 = sadd.s32 1, %s35
      %p41 = scmp.ge.s32.totalorder %s40, 5
      %s42 = scalar_select %p41, 0, %s40
      %s43 = sadd.s32 1, %s34
      %s44 = scalar_select %p41, %s43, %s34
      %p45 = scmp.ge.s32.totalorder %s44, 2
      %s46 = scalar_select %p45, 0, %s44
      %s47 = ssub.s32 %s34, %s46
      %p48 = scmp.eq.s32.totalorder %s47, 0
      %s50 = sadd.s32 %s49, 1
      %s51 = scalar_select %p48, %s49, %s50
      %p54 = pneg %p48
      %p55 = scmp.eq.s32.totalorder %s27, 9
      %p56 = por %p54, %p55
      %p57 = scmp.ne.s32.totalorder %s49, %s52
      %p58 = scmp.eq.s32.totalorder %s27, 0
      %p59 = por %p57, %p58
      %p60 = scmp.ne.s32.totalorder %s49, %s52
      %p61 = scmp.eq.s32.totalorder %s32, 9
      %p62 = por %p60, %p61
      %p63 = scmp.ne.s32.totalorder %s52, %s53
      %p64 = scmp.eq.s32.totalorder %s32, 0
      %p65 = por %p63, %p64
      %p66 = scmp.ne.s32.totalorder %s52, %s53
      %p67 = scmp.eq.s32.totalorder %s33, 9
      %p68 = por %p66, %p67
      %p70 = scmp.ne.s32.totalorder %s53, %s69
      %p71 = scmp.eq.s32.totalorder %s33, 0
      %p72 = por %p70, %p71
      %s73 = ssub.s32 %s35, %s42
      %s74 = ssub.s32 %s34, %s46
      %s75 = sor.u32 %s73, %s74
      %p76 = scmp.eq.s32.totalorder %s75, 0
      %s78 = sadd.s32 %s77, 1
      %s79 = scalar_select %p76, %s77, %s78
      %p82 = pneg %p76
      %p83 = scmp.eq.s32.totalorder %s27, 9
      %p84 = por %p82, %p83
      %p85 = scmp.ne.s32.totalorder %s77, %s80
      %p86 = scmp.eq.s32.totalorder %s27, 0
      %p87 = por %p85, %p86
      %p88 = scmp.ne.s32.totalorder %s77, %s80
      %p89 = scmp.eq.s32.totalorder %s32, 9
      %p90 = por %p88, %p89
      %p91 = scmp.ne.s32.totalorder %s80, %s81
      %p92 = scmp.eq.s32.totalorder %s32, 0
      %p93 = por %p91, %p92
      %p94 = scmp.ne.s32.totalorder %s80, %s81
      %p95 = scmp.eq.s32.totalorder %s33, 9
      %p96 = por %p94, %p95
      %p98 = scmp.ne.s32.totalorder %s81, %s97
      %p99 = scmp.eq.s32.totalorder %s33, 0
      %p100 = por %p98, %p99
      %s101 = ssub.s32 %s34, %s46
      %p102 = scmp.eq.s32.totalorder %s101, 0
      %s104 = sadd.s32 %s103, 1
      %s105 = scalar_select %p102, %s103, %s104
      %p108 = pneg %p102
      %p109 = scmp.eq.s32.totalorder %s27, 9
      %p110 = por %p108, %p109
      %p111 = scmp.ne.s32.totalorder %s103, %s106
      %p112 = scmp.eq.s32.totalorder %s27, 0
      %p113 = por %p111, %p112
      %p114 = scmp.ne.s32.totalorder %s103, %s106
      %p115 = scmp.eq.s32.totalorder %s32, 9
      %p116 = por %p114, %p115
      %p117 = scmp.ne.s32.totalorder %s106, %s107
      %p118 = scmp.eq.s32.totalorder %s32, 0
      %p119 = por %p117, %p118
      %p120 = scmp.ne.s32.totalorder %s106, %s107
      %p121 = scmp.eq.s32.totalorder %s33, 9
      %p122 = por %p120, %p121
      %p124 = scmp.ne.s32.totalorder %s107, %s123
      %p125 = scmp.eq.s32.totalorder %s33, 0
      %p126 = por %p124, %p125
      %s128 = sadd.s32 %s127, 1
      %p131 = scmp.eq.s32.totalorder %s27, 9
      %p132 = scmp.ne.s32.totalorder %s127, %s129
      %p133 = scmp.eq.s32.totalorder %s27, 0
      %p134 = por %p132, %p133
      %p135 = scmp.ne.s32.totalorder %s127, %s129
      %p136 = scmp.eq.s32.totalorder %s32, 9
      %p137 = por %p135, %p136
      %p138 = scmp.ne.s32.totalorder %s129, %s130
      %p139 = scmp.eq.s32.totalorder %s32, 0
      %p140 = por %p138, %p139
      %p141 = scmp.ne.s32.totalorder %s129, %s130
      %p142 = scmp.eq.s32.totalorder %s33, 9
      %p143 = por %p141, %p142
      %p145 = scmp.ne.s32.totalorder %s130, %s144
      %p146 = scmp.eq.s32.totalorder %s33, 0
      %p147 = por %p145, %p146
      %s149 = sadd.s32 %s148, 1
      %p152 = scmp.eq.s32.totalorder %s27, 9
      %p153 = scmp.ne.s32.totalorder %s148, %s150
      %p154 = scmp.eq.s32.totalorder %s27, 0
      %p155 = por %p153, %p154
      %p156 = scmp.ne.s32.totalorder %s148, %s150
      %p157 = scmp.eq.s32.totalorder %s32, 9
      %p158 = por %p156, %p157
      %p159 = scmp.ne.s32.totalorder %s150, %s151
      %p160 = scmp.eq.s32.totalorder %s32, 0
      %p161 = por %p159, %p160
      %p162 = scmp.ne.s32.totalorder %s150, %s151
      %p163 = scmp.eq.s32.totalorder %s33, 9
      %p164 = por %p162, %p163
      %p166 = scmp.ne.s32.totalorder %s151, %s165
      %p167 = scmp.eq.s32.totalorder %s33, 0
      %p168 = por %p166, %p167
      %s170 = sadd.s32 %s169, 1
      %p173 = scmp.eq.s32.totalorder %s27, 9
      %p174 = scmp.ne.s32.totalorder %s169, %s171
      %p175 = scmp.eq.s32.totalorder %s27, 0
      %p176 = por %p174, %p175
      %p177 = scmp.ne.s32.totalorder %s169, %s171
      %p178 = scmp.eq.s32.totalorder %s32, 9
      %p179 = por %p177, %p178
      %p180 = scmp.ne.s32.totalorder %s171, %s172
      %p181 = scmp.eq.s32.totalorder %s32, 0
      %p182 = por %p180, %p181
      %p183 = scmp.ne.s32.totalorder %s171, %s172
      %p184 = scmp.eq.s32.totalorder %s33, 9
      %p185 = por %p183, %p184
      %p187 = scmp.ne.s32.totalorder %s172, %s186
      %p188 = scmp.eq.s32.totalorder %s33, 0
      %p189 = por %p187, %p188
      %s190 = ssub.s32 %s35, %s42
      %s191 = ssub.s32 %s34, %s46
      %s192 = sor.u32 %s190, %s191
      %p193 = scmp.eq.s32.totalorder %s192, 0
      %s195 = sadd.s32 %s194, 1
      %s196 = scalar_select %p193, %s194, %s195
      %p199 = pneg %p193
      %p200 = scmp.eq.s32.totalorder %s27, 9
      %p201 = por %p199, %p200
      %p202 = scmp.ne.s32.totalorder %s194, %s197
      %p203 = scmp.eq.s32.totalorder %s27, 0
      %p204 = por %p202, %p203
      %p205 = scmp.ne.s32.totalorder %s194, %s197
      %p206 = scmp.eq.s32.totalorder %s32, 9
      %p207 = por %p205, %p206
      %p208 = scmp.ne.s32.totalorder %s197, %s198
      %p209 = scmp.eq.s32.totalorder %s32, 0
      %p210 = por %p208, %p209
      %p211 = scmp.ne.s32.totalorder %s197, %s198
      %p212 = scmp.eq.s32.totalorder %s33, 9
      %p213 = por %p211, %p212
      %p215 = scmp.ne.s32.totalorder %s198, %s214
      %p216 = scmp.eq.s32.totalorder %s33, 0
      %p217 = por %p215, %p216
      %s218 = ssub.s32 %s34, %s46
      %p219 = scmp.eq.s32.totalorder %s218, 0
      %s221 = sadd.s32 %s220, 1
      %s222 = scalar_select %p219, %s220, %s221
      %p225 = pneg %p219
      %p226 = scmp.eq.s32.totalorder %s27, 9
      %p227 = por %p225, %p226
      %p228 = scmp.ne.s32.totalorder %s220, %s223
      %p229 = scmp.eq.s32.totalorder %s27, 0
      %p230 = por %p228, %p229
      %p231 = scmp.ne.s32.totalorder %s220, %s223
      %p232 = scmp.eq.s32.totalorder %s32, 9
      %p233 = por %p231, %p232
      %p234 = scmp.ne.s32.totalorder %s223, %s224
      %p235 = scmp.eq.s32.totalorder %s32, 0
      %p236 = por %p234, %p235
      %p237 = scmp.ne.s32.totalorder %s223, %s224
      %p238 = scmp.eq.s32.totalorder %s33, 9
      %p239 = por %p237, %p238
      %p241 = scmp.ne.s32.totalorder %s224, %s240
      %p242 = scmp.eq.s32.totalorder %s33, 0
      %p243 = por %p241, %p242
      %p244 = scmp.le.s32.totalorder 1, %s27
      %p245 = scmp.lt.s32.totalorder %s27, 11
      %p246 = pnand %p244, %p245
      %p247 = pneg %p246
      // Predicated region
      $region9: #{tpu_custom_call.1} parent=5 // pred_check
        _
      $region10: #{tpu_custom_call.1} parent=5 // pred_check_branch
        %249 = sbr.rel (%p246) target = $region12
      $region11: #{tpu_custom_call.1} parent=5 // pred_region
        %s250 = ssub.s32 %s27, 1
        // Predicated region
        $region13: #{tpu_custom_call.1} parent=11 // pred_check
          %p251 = pneg %p140
        $region14: #{tpu_custom_call.1} parent=11 // pred_check_branch
          %253 = sbr.rel (%p251) target = $region16
        $region15: #{tpu_custom_call.1} parent=11 // pred_region
          _
        $region16: #{tpu_custom_call.1} parent=11 // pred_fallthru
          _
        // Predicated region
        $region17: #{tpu_custom_call.1} parent=11 // pred_check
          %p254 = pneg %p161
        $region18: #{tpu_custom_call.1} parent=11 // pred_check_branch
          %256 = sbr.rel (%p254) target = $region20
        $region19: #{tpu_custom_call.1} parent=11 // pred_region
          _
        $region20: #{tpu_custom_call.1} parent=11 // pred_fallthru
          _
        // Predicated region
        $region21: #{tpu_custom_call.1} parent=11 // pred_check
          %p257 = pneg %p182
        $region22: #{tpu_custom_call.1} parent=11 // pred_check_branch
          %259 = sbr.rel (%p257) target = $region24
        $region23: #{tpu_custom_call.1} parent=11 // pred_region
          _
        $region24: #{tpu_custom_call.1} parent=11 // pred_fallthru
          _
      $region12: #{tpu_custom_call.1} parent=5 // pred_fallthru
        _
      %p260 = scmp.lt.s32.totalorder %s27, 10
      // Predicated region
      $region25: #{tpu_custom_call.1} parent=5 // pred_check
        %p261 = pneg %p260
      $region26: #{tpu_custom_call.1} parent=5 // pred_check_branch
        %263 = sbr.rel (%p261) target = $region28
      $region27: #{tpu_custom_call.1} parent=5 // pred_region
        // Predicated region
        $region29: #{tpu_custom_call.1} parent=27 // pred_check
          %p264 = pneg %p59
        $region30: #{tpu_custom_call.1} parent=27 // pred_check_branch
          %266 = sbr.rel (%p264) target = $region32
        $region31: #{tpu_custom_call.1} parent=27 // pred_region
          %s267 = smul.u32 2, %s34
          %p268 = scmp.lt.s32.totalorder %s267, 3
          %s269 = scalar_select %p268, %s267, 3
          %s270 = smul.addr %s269, 8
          %s271 = scalar_lea.vmem %s1, %s270
          %s272 = smul.u32 2, %s34
        $region32: #{tpu_custom_call.1} parent=27 // pred_fallthru
          _
        // Predicated region
        $region33: #{tpu_custom_call.1} parent=27 // pred_check
          %p273 = pneg %p87
        $region34: #{tpu_custom_call.1} parent=27 // pred_check_branch
          %275 = sbr.rel (%p273) target = $region36
        $region35: #{tpu_custom_call.1} parent=27 // pred_region
          %s276 = sand.u32 %s77, 1
          %s277 = sand.u32 %s77, 1
          %s278 = smul.addr %s277, 128
          %s279 = scalar_lea.vmem [#allocation6], %s278
          %s280 = smul.u32 8, %s35
          %s281 = smul.u32 2, %s34
          %s282 = smul.addr %s280, 4
          %s283 = sadd.s32 %s281, %s282
          %s284 = smul.addr %s283, 8
          %s285 = scalar_lea.vmem %s2, %s284
          // Predicated region
          $region37: #{tpu_custom_call.1} parent=35 // pred_check
            _
          $region38: #{tpu_custom_call.1} parent=35 // pred_check_branch
            %287 = sbr.rel (0) target = $region40
          $region39: #{tpu_custom_call.1} parent=35 // pred_region
            // Predicated region
            $region41: #{tpu_custom_call.1} parent=39 // pred_check
              _
            $region42: #{tpu_custom_call.1} parent=39 // pred_check_branch
              %289 = sbr.rel (0) target = $region44
            $region43: #{tpu_custom_call.1} parent=39 // pred_region
              // Predicated region
              $region56: #{tpu_custom_call.1} parent=43 // pred_check
                _
              $region57: #{tpu_custom_call.1} parent=43 // pred_check_branch
                %334 = sbr.rel (0) target = $region59
              $region58: #{tpu_custom_call.1} parent=43 // pred_region
                loop: start=0, step=1, limit=1
                $region60: #{tpu_custom_call.1} parent=58 // loop_pre_header
                  _
                $region61: #{tpu_custom_call.1} parent=58 // loop_header
                  %s336 = sphi 0, %s340
                  %p337 = scmp.ge.s32.totalorder %s336, 1
                  %s341 = sphi %s285, %s285
                  %s342 = sphi %s279, %s279
                $region62: #{tpu_custom_call.1} parent=58 // loop_header_branch
                  %339 = sbr.rel (%p337) target = $region66
                $region63: #{tpu_custom_call.1} parent=58 // loop_body
                  %v343 = vld [vmem:[%s341] sm:$0xff]
                  %344 = vst [vmem:[%s342] sm:$0xff] %v343
                  %v345 = vld [vmem:[%s341 + $0x8] sm:$0xff]
                  %346 = vst [vmem:[%s342 + $0x8] sm:$0xff] %v345
                  %v347 = vld [vmem:[%s341 + $0x20] sm:$0xff]
                  %348 = vst [vmem:[%s342 + $0x10] sm:$0xff] %v347
                  %v349 = vld [vmem:[%s341 + $0x28] sm:$0xff]
                  %350 = vst [vmem:[%s342 + $0x18] sm:$0xff] %v349
                  %v351 = vld [vmem:[%s341 + $0x40] sm:$0xff]
                  %352 = vst [vmem:[%s342 + $0x20] sm:$0xff] %v351
                  %v353 = vld [vmem:[%s341 + $0x48] sm:$0xff]
                  %354 = vst [vmem:[%s342 + $0x28] sm:$0xff] %v353
                  %v355 = vld [vmem:[%s341 + $0x60] sm:$0xff]
                  %356 = vst [vmem:[%s342 + $0x30] sm:$0xff] %v355
                  %v357 = vld [vmem:[%s341 + $0x68] sm:$0xff]
                  %358 = vst [vmem:[%s342 + $0x38] sm:$0xff] %v357
                  %v359 = vld [vmem:[%s341 + $0x80] sm:$0xff]
                  %360 = vst [vmem:[%s342 + $0x40] sm:$0xff] %v359
                  %v361 = vld [vmem:[%s341 + $0x88] sm:$0xff]
                  %362 = vst [vmem:[%s342 + $0x48] sm:$0xff] %v361
                  %v363 = vld [vmem:[%s341 + $0xa0] sm:$0xff]
                  %364 = vst [vmem:[%s342 + $0x50] sm:$0xff] %v363
                  %v365 = vld [vmem:[%s341 + $0xa8] sm:$0xff]
                  %366 = vst [vmem:[%s342 + $0x58] sm:$0xff] %v365
                  %v367 = vld [vmem:[%s341 + $0xc0] sm:$0xff]
                  %368 = vst [vmem:[%s342 + $0x60] sm:$0xff] %v367
                  %v369 = vld [vmem:[%s341 + $0xc8] sm:$0xff]
                  %370 = vst [vmem:[%s342 + $0x68] sm:$0xff] %v369
                  %v371 = vld [vmem:[%s341 + $0xe0] sm:$0xff]
                  %372 = vst [vmem:[%s342 + $0x70] sm:$0xff] %v371
                  %v373 = vld [vmem:[%s341 + $0xe8] sm:$0xff]
                  %374 = vst [vmem:[%s342 + $0x78] sm:$0xff] %v373
                $region64: #{tpu_custom_call.1} parent=58 // loop_footer
                  %s340 = sadd.s32 1, %s336
                $region65: #{tpu_custom_call.1} parent=58 // loop_footer_branch
                  %335 = sbr.rel target = $region61
                $region66: #{tpu_custom_call.1} parent=58 // loop_exit
                  _
              $region59: #{tpu_custom_call.1} parent=43 // pred_fallthru
                _
              // Predicated region
              $region67: #{tpu_custom_call.1} parent=43 // pred_check
                _
              $region68: #{tpu_custom_call.1} parent=43 // pred_check_branch
                %376 = sbr.rel target = $region70
              $region69: #{tpu_custom_call.1} parent=43 // pred_region
                _
              $region70: #{tpu_custom_call.1} parent=43 // pred_fallthru
                _
            $region44: #{tpu_custom_call.1} parent=39 // pred_fallthru
              _
            // Predicated region
            $region45: #{tpu_custom_call.1} parent=39 // pred_check
              _
            $region46: #{tpu_custom_call.1} parent=39 // pred_check_branch
              %291 = sbr.rel target = $region48
            $region47: #{tpu_custom_call.1} parent=39 // pred_region
              loop: start=0, step=1, limit=1
              $region49: #{tpu_custom_call.1} parent=47 // loop_pre_header
                _
              $region50: #{tpu_custom_call.1} parent=47 // loop_header
                %s294 = sphi 0, %s298
                %p295 = scmp.ge.s32.totalorder %s294, 1
                %s299 = sphi %s285, %s285
                %s300 = sphi %s279, %s279
              $region51: #{tpu_custom_call.1} parent=47 // loop_header_branch
                %297 = sbr.rel (%p295) target = $region55
              $region52: #{tpu_custom_call.1} parent=47 // loop_body
                %v301 = vld [vmem:[%s299] sm:$0xff]
                %302 = vst [vmem:[%s300] sm:$0xff] %v301
                %v303 = vld [vmem:[%s299 + $0x8] sm:$0xff]
                %304 = vst [vmem:[%s300 + $0x8] sm:$0xff] %v303
                %v305 = vld [vmem:[%s299 + $0x20] sm:$0xff]
                %306 = vst [vmem:[%s300 + $0x10] sm:$0xff] %v305
                %v307 = vld [vmem:[%s299 + $0x28] sm:$0xff]
                %308 = vst [vmem:[%s300 + $0x18] sm:$0xff] %v307
                %v309 = vld [vmem:[%s299 + $0x40] sm:$0xff]
                %310 = vst [vmem:[%s300 + $0x20] sm:$0xff] %v309
                %v311 = vld [vmem:[%s299 + $0x48] sm:$0xff]
                %312 = vst [vmem:[%s300 + $0x28] sm:$0xff] %v311
                %v313 = vld [vmem:[%s299 + $0x60] sm:$0xff]
                %314 = vst [vmem:[%s300 + $0x30] sm:$0xff] %v313
                %v315 = vld [vmem:[%s299 + $0x68] sm:$0xff]
                %316 = vst [vmem:[%s300 + $0x38] sm:$0xff] %v315
                %v317 = vld [vmem:[%s299 + $0x80] sm:$0xff]
                %318 = vst [vmem:[%s300 + $0x40] sm:$0xff] %v317
                %v319 = vld [vmem:[%s299 + $0x88] sm:$0xff]
                %320 = vst [vmem:[%s300 + $0x48] sm:$0xff] %v319
                %v321 = vld [vmem:[%s299 + $0xa0] sm:$0xff]
                %322 = vst [vmem:[%s300 + $0x50] sm:$0xff] %v321
                %v323 = vld [vmem:[%s299 + $0xa8] sm:$0xff]
                %324 = vst [vmem:[%s300 + $0x58] sm:$0xff] %v323
                %v325 = vld [vmem:[%s299 + $0xc0] sm:$0xff]
                %326 = vst [vmem:[%s300 + $0x60] sm:$0xff] %v325
                %v327 = vld [vmem:[%s299 + $0xc8] sm:$0xff]
                %328 = vst [vmem:[%s300 + $0x68] sm:$0xff] %v327
                %v329 = vld [vmem:[%s299 + $0xe0] sm:$0xff]
                %330 = vst [vmem:[%s300 + $0x70] sm:$0xff] %v329
                %v331 = vld [vmem:[%s299 + $0xe8] sm:$0xff]
                %332 = vst [vmem:[%s300 + $0x78] sm:$0xff] %v331
              $region53: #{tpu_custom_call.1} parent=47 // loop_footer
                %s298 = sadd.s32 1, %s294
              $region54: #{tpu_custom_call.1} parent=47 // loop_footer_branch
                %293 = sbr.rel target = $region50
              $region55: #{tpu_custom_call.1} parent=47 // loop_exit
                _
            $region48: #{tpu_custom_call.1} parent=39 // pred_fallthru
              _
          $region40: #{tpu_custom_call.1} parent=35 // pred_fallthru
            _
          %377 = vnop
        $region36: #{tpu_custom_call.1} parent=27 // pred_fallthru
          _
        // Predicated region
        $region71: #{tpu_custom_call.1} parent=27 // pred_check
          %p378 = pneg %p113
        $region72: #{tpu_custom_call.1} parent=27 // pred_check_branch
          %380 = sbr.rel (%p378) target = $region74
        $region73: #{tpu_custom_call.1} parent=27 // pred_region
          %s381 = smul.u32 2, %s34
          %p382 = scmp.lt.s32.totalorder %s381, 3
          %s383 = scalar_select %p382, %s381, 3
          %s384 = smul.addr %s383, 8
          %s385 = scalar_lea.vmem %s3, %s384
          %s386 = smul.u32 2, %s34
        $region74: #{tpu_custom_call.1} parent=27 // pred_fallthru
          _
      $region28: #{tpu_custom_call.1} parent=5 // pred_fallthru
        _
      %p387 = scmp.le.s32.totalorder 1, %s27
      %p388 = scmp.lt.s32.totalorder %s27, 11
      %p389 = pnand %p387, %p388
      %p390 = pneg %p389
      // Predicated region
      $region75: #{tpu_custom_call.1} parent=5 // pred_check
        _
      $region76: #{tpu_custom_call.1} parent=5 // pred_check_branch
        %392 = sbr.rel (%p389) target = $region78
      $region77: #{tpu_custom_call.1} parent=5 // pred_region
        %s393 = ssub.s32 %s27, 1
        %s394 = sand.u32 %s80, 1
        %s395 = sand.u32 %s80, 1
        %s396 = smul.addr %s395, 128
        %s397 = scalar_lea.vmem [#allocation6], %s396
        // Predicated region
        $region79: #{tpu_custom_call.1} parent=77 // pred_check
          %p398 = pneg %p93
        $region80: #{tpu_custom_call.1} parent=77 // pred_check_branch
          %400 = sbr.rel (%p398) target = $region82
        $region81: #{tpu_custom_call.1} parent=77 // pred_region
          _
        $region82: #{tpu_custom_call.1} parent=77 // pred_fallthru
          _
        %s401 = smul.u32 2, %s36
        %p402 = scmp.lt.s32.totalorder %s401, 3
        %s403 = scalar_select %p402, %s401, 3
        %s404 = smul.addr %s403, 8
        %s405 = scalar_lea.vmem %s1, %s404
        %p406 = pneg %p65
        %p407 = pneg %p62
        %s408 = sand.u32 %s80, 1
        %s409 = sand.u32 %s80, 1
        %s410 = smul.addr %s409, 128
        %s411 = scalar_lea.vmem [#allocation6], %s410
        %p412 = pneg %p93
        %p413 = pneg %p90
        %s414 = smul.u32 2, %s36
        %p415 = scmp.lt.s32.totalorder %s414, 3
        %s416 = scalar_select %p415, %s414, 3
        %s417 = smul.addr %s416, 8
        %s418 = scalar_lea.vmem %s3, %s417
        %p419 = pneg %p119
        %p420 = pneg %p116
        %p421 = pneg %p140
        %p422 = pneg %p137
        %p423 = pneg %p161
        %p424 = pneg %p158
        %p425 = pneg %p182
        %p426 = pneg %p179
        %p427 = pneg %p210
        %p428 = pneg %p207
        %s429 = sand.u32 %s197, 1
        %s430 = scalar_lea.sflag [#allocation8], %s429
        %s431 = sand.u32 %s197, 1
        %s432 = smul.addr %s431, 128
        %s433 = scalar_lea.vmem [#allocation7], %s432
        %p434 = pneg %p236
        %p435 = pneg %p233
        %s436 = sand.u32 %s223, 1
        %s437 = scalar_lea.sflag [#allocation10], %s436
        %s438 = sand.u32 %s223, 1
        %s439 = smul.addr %s438, 16
        %s440 = scalar_lea.vmem [#allocation9], %s439
        %s441 = smul.u32 2, %s36
        %p442 = scmp.lt.s32.totalorder %s441, 3
        %s443 = scalar_select %p442, %s441, 3
        %s444 = smul.addr %s443, 8
        %s445 = scalar_lea.vmem %s1, %s444
        %s446 = smul.u32 2, %s36
        %s447 = smul.u32 8, %s37
        %s448 = smul.u32 2, %s36
        %s449 = smul.u32 2, %s36
        %p450 = scmp.lt.s32.totalorder %s449, 3
        %s451 = scalar_select %p450, %s449, 3
        %s452 = smul.addr %s451, 8
        %s453 = scalar_lea.vmem %s3, %s452
        %s454 = smul.u32 2, %s36
        %s455 = smul.u32 8, %s37
        %s456 = smul.u32 2, %s36
        %s457 = smul.u32 2, %s36
        %s458 = smul.u32 %s37, 8
        %p459 = scmp.eq.s32.totalorder %s37, 0
        // Predicated region
        $region83: #{tpu_custom_call.1} parent=77 // pred_check
          %p460 = pneg %p459
        $region84: #{tpu_custom_call.1} parent=77 // pred_check_branch
          %462 = sbr.rel (%p460) target = $region86
        $region85: #{tpu_custom_call.1} parent=77 // pred_region
          %v463 = vld [vmem:[%s453] sm:$0xff]
          %v464 = vld [vmem:[%s453 + $0x8] sm:$0xff]
          %465 = vst [vmem:[#allocation2] sm:$0xff] %v463
          %466 = vst [vmem:[#allocation2 + $0x8] sm:$0xff] %v464
        $region86: #{tpu_custom_call.1} parent=77 // pred_fallthru
          _
        %s467 = sld [smem:[#allocation5 + %s36]]
        %p468 = scmp.ge.s32.totalorder %s458, %s467
        // Predicated region
        $region87: #{tpu_custom_call.1} parent=77 // pred_check
          %p469 = pneg %p468
        $region88: #{tpu_custom_call.1} parent=77 // pred_check_branch
          %471 = sbr.rel (%p469) target = $region90
        $region89: #{tpu_custom_call.1} parent=77 // pred_region
          %472 = vst [vmem:[%s433] sm:$0xff] 0.0
          %473 = vst [vmem:[%s433 + $0x8] sm:$0xff] 0.0
          %474 = vst [vmem:[%s433 + $0x10] sm:$0xff] 0.0
          %475 = vst [vmem:[%s433 + $0x18] sm:$0xff] 0.0
          %476 = vst [vmem:[%s433 + $0x20] sm:$0xff] 0.0
          %477 = vst [vmem:[%s433 + $0x28] sm:$0xff] 0.0
          %478 = vst [vmem:[%s433 + $0x30] sm:$0xff] 0.0
          %479 = vst [vmem:[%s433 + $0x38] sm:$0xff] 0.0
          %480 = vst [vmem:[%s433 + $0x40] sm:$0xff] 0.0
          %481 = vst [vmem:[%s433 + $0x48] sm:$0xff] 0.0
          %482 = vst [vmem:[%s433 + $0x50] sm:$0xff] 0.0
          %483 = vst [vmem:[%s433 + $0x58] sm:$0xff] 0.0
          %484 = vst [vmem:[%s433 + $0x60] sm:$0xff] 0.0
          %485 = vst [vmem:[%s433 + $0x68] sm:$0xff] 0.0
          %486 = vst [vmem:[%s433 + $0x70] sm:$0xff] 0.0
          %487 = vst [vmem:[%s433 + $0x78] sm:$0xff] 0.0
        $region90: #{tpu_custom_call.1} parent=77 // pred_fallthru
          _
        %p488 = scmp.lt.s32.totalorder %s458, %s467
        // Predicated region
        $region91: #{tpu_custom_call.1} parent=77 // pred_check
          %p489 = pneg %p488
        $region92: #{tpu_custom_call.1} parent=77 // pred_check_branch
          %491 = sbr.rel (%p489) target = $region94
        $region93: #{tpu_custom_call.1} parent=77 // pred_region
          %v492 = vld [vmem:[%s397] sm:$0xff]
          %v493 = vld [vmem:[%s397 + $0x8] sm:$0xff]
          %v494 = vld [vmem:[%s397 + $0x10] sm:$0xff]
          %v495 = vld [vmem:[%s397 + $0x18] sm:$0xff]
          %v496 = vld [vmem:[%s397 + $0x20] sm:$0xff]
          %v497 = vld [vmem:[%s397 + $0x28] sm:$0xff]
          %v498 = vld [vmem:[%s397 + $0x30] sm:$0xff]
          %v499 = vld [vmem:[%s397 + $0x38] sm:$0xff]
          %v500 = vld [vmem:[%s397 + $0x40] sm:$0xff]
          %v501 = vld [vmem:[%s397 + $0x48] sm:$0xff]
          %v502 = vld [vmem:[%s397 + $0x50] sm:$0xff]
          %v503 = vld [vmem:[%s397 + $0x58] sm:$0xff]
          %v504 = vld [vmem:[%s397 + $0x60] sm:$0xff]
          %v505 = vld [vmem:[%s397 + $0x68] sm:$0xff]
          %v506 = vld [vmem:[%s397 + $0x70] sm:$0xff]
          %v507 = vld [vmem:[%s397 + $0x78] sm:$0xff]
          %v508 = vld [vmem:[%s4] sm:$0xff]
          %v509 = vld [vmem:[%s4 + $0x8] sm:$0xff]
          %v510 = vld [vmem:[%s6] sm:$0x1]
          %v512 = vlaneseq
          %v513 = vshrl.u32 %v512, 7
          %v514 = vsub.s32 0, %v513
          %v515 = vrot.slane %v510, %v514
          %vm517 = vcmask 130048
          %v519 = vsel %vm517, %v492, 0
          %v522 = vsel %vm517, %v493, 0
          %v525 = vsel %vm517, %v494, 0
          %v528 = vsel %vm517, %v495, 0
          %v531 = vsel %vm517, %v496, 0
          %v534 = vsel %vm517, %v497, 0
          %v537 = vsel %vm517, %v498, 0
          %v540 = vsel %vm517, %v499, 0
          %v543 = vsel %vm517, %v500, 0
          %v546 = vsel %vm517, %v501, 0
          %v549 = vsel %vm517, %v502, 0
          %v552 = vsel %vm517, %v503, 0
          %v555 = vsel %vm517, %v504, 0
          %v558 = vsel %vm517, %v505, 0
          %v561 = vsel %vm517, %v506, 0
          %v564 = vsel %vm517, %v507, 0
          %566 = vmatprep.subr.mxu0 0.0
          %567 = vmatpush1.msra.mxu0 %v508
          %568 = vmatprep.subr.mxu0 0.0
          %569 = vmatpush1.msra.mxu0 %v509
          %570 = vmatprep.subr.mxu0 0.0
          %571 = vmatpush1.msra.mxu0 0.0
          %572 = vmatprep.subr.mxu0 0.0
          %573 = vmatpush1.msra.mxu0 0.0
          %574 = vmatprep.subr.mxu0 0.0
          %575 = vmatpush1.msra.mxu0 0.0
          %576 = vmatprep.subr.mxu0 0.0
          %577 = vmatpush1.msra.mxu0 0.0
          %578 = vmatprep.subr.mxu0 0.0
          %579 = vmatpush1.msra.mxu0 0.0
          %580 = vmatprep.subr.mxu0 0.0
          %581 = vmatpush1.msra.mxu0 0.0
          %582 = vmatprep.subr.mxu0 0.0
          %583 = vmatpush1.msra.mxu0 0.0
          %584 = vmatprep.subr.mxu0 0.0
          %585 = vmatpush1.msra.mxu0 0.0
          %586 = vmatprep.subr.mxu0 0.0
          %587 = vmatpush1.msra.mxu0 0.0
          %588 = vmatprep.subr.mxu0 0.0
          %589 = vmatpush1.msra.mxu0 0.0
          %590 = vmatprep.subr.mxu0 0.0
          %591 = vmatpush1.msra.mxu0 0.0
          %592 = vmatprep.subr.mxu0 0.0
          %593 = vmatpush1.msra.mxu0 0.0
          %594 = vmatprep.subr.mxu0 0.0
          %595 = vmatpush1.msra.mxu0 0.0
          %596 = vmatprep.subr.mxu0 0.0
          %597 = vmatpush1.msra.mxu0 0.0
          %598 = vmatprep.subr.mxu0 0.0
          %599 = vmatpush1.msra.mxu0 0.0
          %600 = vmatprep.subr.mxu0 0.0
          %601 = vmatpush1.msra.mxu0 0.0
          %602 = vmatprep.subr.mxu0 0.0
          %603 = vmatpush1.msra.mxu0 0.0
          %604 = vmatprep.subr.mxu0 0.0
          %605 = vmatpush1.msra.mxu0 0.0
          %606 = vmatprep.subr.mxu0 0.0
          %607 = vmatpush1.msra.mxu0 0.0
          %608 = vmatprep.subr.mxu0 0.0
          %609 = vmatpush1.msra.mxu0 0.0
          %610 = vmatprep.subr.mxu0 0.0
          %611 = vmatpush1.msra.mxu0 0.0
          %612 = vmatprep.subr.mxu0 0.0
          %613 = vmatpush1.msra.mxu0 0.0
          %614 = vmatprep.subr.mxu0 0.0
          %615 = vmatpush1.msra.mxu0 0.0
          %616 = vmatprep.subr.mxu0 0.0
          %617 = vmatpush1.msra.mxu0 0.0
          %618 = vmatprep.subr.mxu0 0.0
          %619 = vmatpush1.msra.mxu0 0.0
          %620 = vmatprep.subr.mxu0 0.0
          %621 = vmatpush1.msra.mxu0 0.0
          %622 = vmatprep.subr.mxu0 0.0
          %623 = vmatpush1.msra.mxu0 0.0
          %624 = vmatprep.subr.mxu0 0.0
          %625 = vmatpush1.msra.mxu0 0.0
          %626 = vmatprep.subr.mxu0 0.0
          %627 = vmatpush1.msra.mxu0 0.0
          %628 = vmatprep.subr.mxu0 0.0
          %629 = vmatpush1.msra.mxu0 0.0
          %630 = vmatprep.mubr.f32.mxu0 0.0
          %631 = vmatmul.mubr.f32.gmra.mrb[0].mxu0 %v519
          %v632 = vpop.f32.mrb[0].mxu0
          %v633 = vadd.f32 %v515, %v632
          %v634 = vpop.f32.mrb[0].mxu0
          %635 = vmatprep.mubr.f32.mxu0 0.0
          %636 = vmatmul.mubr.f32.gmra.mrb[0].mxu0 %v522
          %v637 = vpop.f32.mrb[0].mxu0
          %v638 = vadd.f32 %v515, %v637
          %v639 = vpop.f32.mrb[0].mxu0
          %640 = vmatprep.mubr.f32.mxu0 0.0
          %641 = vmatmul.mubr.f32.gmra.mrb[0].mxu0 %v525
          %v642 = vpop.f32.mrb[0].mxu0
          %v643 = vadd.f32 %v515, %v642
          %v644 = vpop.f32.mrb[0].mxu0
          %645 = vmatprep.mubr.f32.mxu0 0.0
          %646 = vmatmul.mubr.f32.gmra.mrb[0].mxu0 %v528
          %v647 = vpop.f32.mrb[0].mxu0
          %v648 = vadd.f32 %v515, %v647
          %v649 = vpop.f32.mrb[0].mxu0
          %650 = vmatprep.mubr.f32.mxu0 0.0
          %651 = vmatmul.mubr.f32.gmra.mrb[0].mxu0 %v531
          %v652 = vpop.f32.mrb[0].mxu0
          %v653 = vadd.f32 %v515, %v652
          %v654 = vpop.f32.mrb[0].mxu0
          %655 = vmatprep.mubr.f32.mxu0 0.0
          %656 = vmatmul.mubr.f32.gmra.mrb[0].mxu0 %v534
          %v657 = vpop.f32.mrb[0].mxu0
          %v658 = vadd.f32 %v515, %v657
          %v659 = vpop.f32.mrb[0].mxu0
          %660 = vmatprep.mubr.f32.mxu0 0.0
          %661 = vmatmul.mubr.f32.gmra.mrb[0].mxu0 %v537
          %v662 = vpop.f32.mrb[0].mxu0
          %v663 = vadd.f32 %v515, %v662
          %v664 = vpop.f32.mrb[0].mxu0
          %665 = vmatprep.mubr.f32.mxu0 0.0
          %666 = vmatmul.mubr.f32.gmra.mrb[0].mxu0 %v540
          %v667 = vpop.f32.mrb[0].mxu0
          %v668 = vadd.f32 %v515, %v667
          %v669 = vpop.f32.mrb[0].mxu0
          %670 = vmatprep.mubr.f32.mxu0 0.0
          %671 = vmatmul.mubr.f32.gmra.mrb[0].mxu0 %v543
          %v672 = vpop.f32.mrb[0].mxu0
          %v673 = vadd.f32 %v515, %v672
          %v674 = vpop.f32.mrb[0].mxu0
          %675 = vmatprep.mubr.f32.mxu0 0.0
          %676 = vmatmul.mubr.f32.gmra.mrb[0].mxu0 %v546
          %v677 = vpop.f32.mrb[0].mxu0
          %v678 = vadd.f32 %v515, %v677
          %v679 = vpop.f32.mrb[0].mxu0
          %680 = vmatprep.mubr.f32.mxu0 0.0
          %681 = vmatmul.mubr.f32.gmra.mrb[0].mxu0 %v549
          %v682 = vpop.f32.mrb[0].mxu0
          %v683 = vadd.f32 %v515, %v682
          %v684 = vpop.f32.mrb[0].mxu0
          %685 = vmatprep.mubr.f32.mxu0 0.0
          %686 = vmatmul.mubr.f32.gmra.mrb[0].mxu0 %v552
          %v687 = vpop.f32.mrb[0].mxu0
          %v688 = vadd.f32 %v515, %v687
          %v689 = vpop.f32.mrb[0].mxu0
          %690 = vmatprep.mubr.f32.mxu0 0.0
          %691 = vmatmul.mubr.f32.gmra.mrb[0].mxu0 %v555
          %v692 = vpop.f32.mrb[0].mxu0
          %v693 = vadd.f32 %v515, %v692
          %v694 = vpop.f32.mrb[0].mxu0
          %695 = vmatprep.mubr.f32.mxu0 0.0
          %696 = vmatmul.mubr.f32.gmra.mrb[0].mxu0 %v558
          %v697 = vpop.f32.mrb[0].mxu0
          %v698 = vadd.f32 %v515, %v697
          %v699 = vpop.f32.mrb[0].mxu0
          %700 = vmatprep.mubr.f32.mxu0 0.0
          %701 = vmatmul.mubr.f32.gmra.mrb[0].mxu0 %v561
          %v702 = vpop.f32.mrb[0].mxu0
          %v703 = vadd.f32 %v515, %v702
          %v704 = vpop.f32.mrb[0].mxu0
          %705 = vmatprep.mubr.f32.mxu0 0.0
          %706 = vmatmul.mubr.f32.gmra.mrb[0].mxu0 %v564
          %v707 = vpop.f32.mrb[0].mxu0
          %v708 = vadd.f32 %v515, %v707
          %v709 = vpop.f32.mrb[0].mxu0
          %710 = vdwg.mxu0
          %711 = vst [vmem:[#allocation3] sm:$0xff] %v633
          %712 = vst [vmem:[#allocation3 + $0x8] sm:$0xff] %v638
          %713 = vst [vmem:[#allocation3 + $0x10] sm:$0xff] %v643
          %714 = vst [vmem:[#allocation3 + $0x18] sm:$0xff] %v648
          %715 = vst [vmem:[#allocation3 + $0x20] sm:$0xff] %v653
          %716 = vst [vmem:[#allocation3 + $0x28] sm:$0xff] %v658
          %717 = vst [vmem:[#allocation3 + $0x30] sm:$0xff] %v663
          %718 = vst [vmem:[#allocation3 + $0x38] sm:$0xff] %v668
          %719 = vst [vmem:[#allocation3 + $0x40] sm:$0xff] %v673
          %720 = vst [vmem:[#allocation3 + $0x48] sm:$0xff] %v678
          %721 = vst [vmem:[#allocation3 + $0x50] sm:$0xff] %v683
          %722 = vst [vmem:[#allocation3 + $0x58] sm:$0xff] %v688
          %723 = vst [vmem:[#allocation3 + $0x60] sm:$0xff] %v693
          %724 = vst [vmem:[#allocation3 + $0x68] sm:$0xff] %v698
          %725 = vst [vmem:[#allocation3 + $0x70] sm:$0xff] %v703
          %726 = vst [vmem:[#allocation3 + $0x78] sm:$0xff] %v708
          %v727 = vld [vmem:[%s5] sm:$0xff]
          %v728 = vld [vmem:[%s5 + $0x8] sm:$0xff]
          %v729 = vld [vmem:[%s5 + $0x10] sm:$0xff]
          %v730 = vld [vmem:[%s5 + $0x18] sm:$0xff]
          %v731 = vld [vmem:[%s5 + $0x20] sm:$0xff]
          %v732 = vld [vmem:[%s5 + $0x28] sm:$0xff]
          %v733 = vld [vmem:[%s5 + $0x30] sm:$0xff]
          %v734 = vld [vmem:[%s5 + $0x38] sm:$0xff]
          %v735 = vld [vmem:[%s5 + $0x40] sm:$0xff]
          %v736 = vld [vmem:[%s5 + $0x48] sm:$0xff]
          %v737 = vld [vmem:[%s5 + $0x50] sm:$0xff]
          %v738 = vld [vmem:[%s5 + $0x58] sm:$0xff]
          %v739 = vld [vmem:[%s5 + $0x60] sm:$0xff]
          %v740 = vld [vmem:[%s5 + $0x68] sm:$0xff]
          %v741 = vld [vmem:[%s5 + $0x70] sm:$0xff]
          %v742 = vld [vmem:[%s5 + $0x78] sm:$0xff]
          %v743 = vld [vmem:[#allocation2] sm:$0xff]
          %v744 = vld [vmem:[#allocation2 + $0x8] sm:$0xff]
          %v745 = vld [vmem:[%s445] sm:$0xff]
          %v746 = vld [vmem:[%s445 + $0x8] sm:$0xff]
          %v747 = vld [vmem:[#allocation3] sm:$0xff]
          %748 = vmatprep.subr.mxu0 0.0
          %749 = vmatpush1.msra.mxu0 %v727
          %750 = vmatprep.subr.mxu0 0.0
          %751 = vmatpush1.msra.mxu0 %v728
          %752 = vmatprep.subr.mxu0 0.0
          %753 = vmatpush1.msra.mxu0 %v729
          %754 = vmatprep.subr.mxu0 0.0
          %755 = vmatpush1.msra.mxu0 %v730
          %756 = vmatprep.subr.mxu0 0.0
          %757 = vmatpush1.msra.mxu0 %v731
          %758 = vmatprep.subr.mxu0 0.0
          %759 = vmatpush1.msra.mxu0 %v732
          %760 = vmatprep.subr.mxu0 0.0
          %761 = vmatpush1.msra.mxu0 %v733
          %762 = vmatprep.subr.mxu0 0.0
          %763 = vmatpush1.msra.mxu0 %v734
          %764 = vmatprep.subr.mxu0 0.0
          %765 = vmatpush1.msra.mxu0 %v735
          %766 = vmatprep.subr.mxu0 0.0
          %767 = vmatpush1.msra.mxu0 %v736
          %768 = vmatprep.subr.mxu0 0.0
          %769 = vmatpush1.msra.mxu0 %v737
          %770 = vmatprep.subr.mxu0 0.0
          %771 = vmatpush1.msra.mxu0 %v738
          %772 = vmatprep.subr.mxu0 0.0
          %773 = vmatpush1.msra.mxu0 %v739
          %774 = vmatprep.subr.mxu0 0.0
          %775 = vmatpush1.msra.mxu0 %v740
          %776 = vmatprep.subr.mxu0 0.0
          %777 = vmatpush1.msra.mxu0 %v741
          %778 = vmatprep.subr.mxu0 0.0
          %779 = vmatpush1.msra.mxu0 %v742
          %780 = vmatprep.subr.mxu0 0.0
          %781 = vmatpush1.msra.mxu0 0.0
          %782 = vmatprep.subr.mxu0 0.0
          %783 = vmatpush1.msra.mxu0 0.0
          %784 = vmatprep.subr.mxu0 0.0
          %785 = vmatpush1.msra.mxu0 0.0
          %786 = vmatprep.subr.mxu0 0.0
          %787 = vmatpush1.msra.mxu0 0.0
          %788 = vmatprep.subr.mxu0 0.0
          %789 = vmatpush1.msra.mxu0 0.0
          %790 = vmatprep.subr.mxu0 0.0
          %791 = vmatpush1.msra.mxu0 0.0
          %792 = vmatprep.subr.mxu0 0.0
          %793 = vmatpush1.msra.mxu0 0.0
          %794 = vmatprep.subr.mxu0 0.0
          %795 = vmatpush1.msra.mxu0 0.0
          %796 = vmatprep.subr.mxu0 0.0
          %797 = vmatpush1.msra.mxu0 0.0
          %798 = vmatprep.subr.mxu0 0.0
          %799 = vmatpush1.msra.mxu0 0.0
          %800 = vmatprep.subr.mxu0 0.0
          %801 = vmatpush1.msra.mxu0 0.0
          %802 = vmatprep.subr.mxu0 0.0
          %803 = vmatpush1.msra.mxu0 0.0
          %804 = vmatprep.subr.mxu0 0.0
          %805 = vmatpush1.msra.mxu0 0.0
          %806 = vmatprep.subr.mxu0 0.0
          %807 = vmatpush1.msra.mxu0 0.0
          %808 = vmatprep.subr.mxu0 0.0
          %809 = vmatpush1.msra.mxu0 0.0
          %810 = vmatprep.subr.mxu0 0.0
          %811 = vmatpush1.msra.mxu0 0.0
          %812 = vmatprep.mubr.f32.mxu0 0.0
          %813 = vmatmul.mubr.f32.gmra.mrb[0].mxu0 %v743
          %v814 = vpop.f32.mrb[0].mxu0
          %v815 = vadd.f32 0.0, %v814
          %v816 = vpop.f32.mrb[0].mxu0
          %817 = vdwg.mxu0
          %v818 = vadd.f32 %v747, %v815
          %v819 = vtanh.pop %v818
          %v820 = vld [vmem:[#allocation3 + $0x8] sm:$0xff]
          %821 = vmatprep.subr.mxu0 0.0
          %822 = vmatpush1.msra.mxu0 %v727
          %823 = vmatprep.subr.mxu0 0.0
          %824 = vmatpush1.msra.mxu0 %v728
          %825 = vmatprep.subr.mxu0 0.0
          %826 = vmatpush1.msra.mxu0 %v729
          %827 = vmatprep.subr.mxu0 0.0
          %828 = vmatpush1.msra.mxu0 %v730
          %829 = vmatprep.subr.mxu0 0.0
          %830 = vmatpush1.msra.mxu0 %v731
          %831 = vmatprep.subr.mxu0 0.0
          %832 = vmatpush1.msra.mxu0 %v732
          %833 = vmatprep.subr.mxu0 0.0
          %834 = vmatpush1.msra.mxu0 %v733
          %835 = vmatprep.subr.mxu0 0.0
          %836 = vmatpush1.msra.mxu0 %v734
          %837 = vmatprep.subr.mxu0 0.0
          %838 = vmatpush1.msra.mxu0 %v735
          %839 = vmatprep.subr.mxu0 0.0
          %840 = vmatpush1.msra.mxu0 %v736
          %841 = vmatprep.subr.mxu0 0.0
          %842 = vmatpush1.msra.mxu0 %v737
          %843 = vmatprep.subr.mxu0 0.0
          %844 = vmatpush1.msra.mxu0 %v738
          %845 = vmatprep.subr.mxu0 0.0
          %846 = vmatpush1.msra.mxu0 %v739
          %847 = vmatprep.subr.mxu0 0.0
          %848 = vmatpush1.msra.mxu0 %v740
          %849 = vmatprep.subr.mxu0 0.0
          %850 = vmatpush1.msra.mxu0 %v741
          %851 = vmatprep.subr.mxu0 0.0
          %852 = vmatpush1.msra.mxu0 %v742
          %853 = vmatprep.subr.mxu0 0.0
          %854 = vmatpush1.msra.mxu0 0.0
          %855 = vmatprep.subr.mxu0 0.0
          %856 = vmatpush1.msra.mxu0 0.0
          %857 = vmatprep.subr.mxu0 0.0
          %858 = vmatpush1.msra.mxu0 0.0
          %859 = vmatprep.subr.mxu0 0.0
          %860 = vmatpush1.msra.mxu0 0.0
          %861 = vmatprep.subr.mxu0 0.0
          %862 = vmatpush1.msra.mxu0 0.0
          %863 = vmatprep.subr.mxu0 0.0
          %864 = vmatpush1.msra.mxu0 0.0
          %865 = vmatprep.subr.mxu0 0.0
          %866 = vmatpush1.msra.mxu0 0.0
          %867 = vmatprep.subr.mxu0 0.0
          %868 = vmatpush1.msra.mxu0 0.0
          %869 = vmatprep.subr.mxu0 0.0
          %870 = vmatpush1.msra.mxu0 0.0
          %871 = vmatprep.subr.mxu0 0.0
          %872 = vmatpush1.msra.mxu0 0.0
          %873 = vmatprep.subr.mxu0 0.0
          %874 = vmatpush1.msra.mxu0 0.0
          %875 = vmatprep.subr.mxu0 0.0
          %876 = vmatpush1.msra.mxu0 0.0
          %877 = vmatprep.subr.mxu0 0.0
          %878 = vmatpush1.msra.mxu0 0.0
          %879 = vmatprep.subr.mxu0 0.0
          %880 = vmatpush1.msra.mxu0 0.0
          %881 = vmatprep.subr.mxu0 0.0
          %882 = vmatpush1.msra.mxu0 0.0
          %883 = vmatprep.subr.mxu0 0.0
          %884 = vmatpush1.msra.mxu0 0.0
          %885 = vmatprep.mubr.f32.mxu0 0.0
          %886 = vmatmul.mubr.f32.gmra.mrb[0].mxu0 %v744
          %v887 = vpop.f32.mrb[0].mxu0
          %v888 = vadd.f32 0.0, %v887
          %v889 = vpop.f32.mrb[0].mxu0
          %890 = vdwg.mxu0
          %v891 = vadd.f32 %v820, %v888
          %v892 = vtanh.pop %v891
          %v893 = vstv %s458
          %vm894 = vcmp.lt.s32.totalorder %v893, %v745
          %v895 = vsel %vm894, 1, 0
          %896 = vset.pattern.permute.xlu0 0
          %897 = vperm.xlu0 %896, %v895
          %v898 = vpop.permute.xlu0 %897
          %vm899 = vcmp.eq.s32.totalorder %v898, 1
          %v900 = vsel %vm899, %v819, %v743
          %v901 = vsel %vm899, %v819, 0.0
          %902 = vst [vmem:[%s433] sm:$0xff] %v901
          %vm903 = vcmp.lt.s32.totalorder %v893, %v746
          %v904 = vsel %vm903, 1, 0
          %905 = vset.pattern.permute.xlu0 0
          %906 = vperm.xlu0 %905, %v904
          %v907 = vpop.permute.xlu0 %906
          %vm908 = vcmp.eq.s32.totalorder %v907, 1
          %v909 = vsel %vm908, %v892, %v744
          %v910 = vsel %vm908, %v892, 0.0
          %911 = vst [vmem:[%s433 + $0x8] sm:$0xff] %v910
          %s912 = sadd.s32 %s458, 1
          %s913 = scalar_lea.vmem [#allocation3], 16
          %v914 = vld [vmem:[%s913] sm:$0xff]
          %915 = vmatprep.subr.mxu0 0.0
          %916 = vmatpush1.msra.mxu0 %v727
          %917 = vmatprep.subr.mxu0 0.0
          %918 = vmatpush1.msra.mxu0 %v728
          %919 = vmatprep.subr.mxu0 0.0
          %920 = vmatpush1.msra.mxu0 %v729
          %921 = vmatprep.subr.mxu0 0.0
          %922 = vmatpush1.msra.mxu0 %v730
          %923 = vmatprep.subr.mxu0 0.0
          %924 = vmatpush1.msra.mxu0 %v731
          %925 = vmatprep.subr.mxu0 0.0
          %926 = vmatpush1.msra.mxu0 %v732
          %927 = vmatprep.subr.mxu0 0.0
          %928 = vmatpush1.msra.mxu0 %v733
          %929 = vmatprep.subr.mxu0 0.0
          %930 = vmatpush1.msra.mxu0 %v734
          %931 = vmatprep.subr.mxu0 0.0
          %932 = vmatpush1.msra.mxu0 %v735
          %933 = vmatprep.subr.mxu0 0.0
          %934 = vmatpush1.msra.mxu0 %v736
          %935 = vmatprep.subr.mxu0 0.0
          %936 = vmatpush1.msra.mxu0 %v737
          %937 = vmatprep.subr.mxu0 0.0
          %938 = vmatpush1.msra.mxu0 %v738
          %939 = vmatprep.subr.mxu0 0.0
          %940 = vmatpush1.msra.mxu0 %v739
          %941 = vmatprep.subr.mxu0 0.0
          %942 = vmatpush1.msra.mxu0 %v740
          %943 = vmatprep.subr.mxu0 0.0
          %944 = vmatpush1.msra.mxu0 %v741
          %945 = vmatprep.subr.mxu0 0.0
          %946 = vmatpush1.msra.mxu0 %v742
          %947 = vmatprep.subr.mxu0 0.0
          %948 = vmatpush1.msra.mxu0 0.0
          %949 = vmatprep.subr.mxu0 0.0
          %950 = vmatpush1.msra.mxu0 0.0
          %951 = vmatprep.subr.mxu0 0.0
          %952 = vmatpush1.msra.mxu0 0.0
          %953 = vmatprep.subr.mxu0 0.0
          %954 = vmatpush1.msra.mxu0 0.0
          %955 = vmatprep.subr.mxu0 0.0
          %956 = vmatpush1.msra.mxu0 0.0
          %957 = vmatprep.subr.mxu0 0.0
          %958 = vmatpush1.msra.mxu0 0.0
          %959 = vmatprep.subr.mxu0 0.0
          %960 = vmatpush1.msra.mxu0 0.0
          %961 = vmatprep.subr.mxu0 0.0
          %962 = vmatpush1.msra.mxu0 0.0
          %963 = vmatprep.subr.mxu0 0.0
          %964 = vmatpush1.msra.mxu0 0.0
          %965 = vmatprep.subr.mxu0 0.0
          %966 = vmatpush1.msra.mxu0 0.0
          %967 = vmatprep.subr.mxu0 0.0
          %968 = vmatpush1.msra.mxu0 0.0
          %969 = vmatprep.subr.mxu0 0.0
          %970 = vmatpush1.msra.mxu0 0.0
          %971 = vmatprep.subr.mxu0 0.0
          %972 = vmatpush1.msra.mxu0 0.0
          %973 = vmatprep.subr.mxu0 0.0
          %974 = vmatpush1.msra.mxu0 0.0
          %975 = vmatprep.subr.mxu0 0.0
          %976 = vmatpush1.msra.mxu0 0.0
          %977 = vmatprep.subr.mxu0 0.0
          %978 = vmatpush1.msra.mxu0 0.0
          %979 = vmatprep.mubr.f32.mxu0 0.0
          %980 = vmatmul.mubr.f32.gmra.mrb[0].mxu0 %v900
          %v981 = vpop.f32.mrb[0].mxu0
          %v982 = vadd.f32 0.0, %v981
          %v983 = vpop.f32.mrb[0].mxu0
          %984 = vdwg.mxu0
          %v985 = vadd.f32 %v914, %v982
          %v986 = vtanh.pop %v985
          %v987 = vld [vmem:[%s913 + $0x8] sm:$0xff]
          %988 = vmatprep.subr.mxu0 0.0
          %989 = vmatpush1.msra.mxu0 %v727
          %990 = vmatprep.subr.mxu0 0.0
          %991 = vmatpush1.msra.mxu0 %v728
          %992 = vmatprep.subr.mxu0 0.0
          %993 = vmatpush1.msra.mxu0 %v729
          %994 = vmatprep.subr.mxu0 0.0
          %995 = vmatpush1.msra.mxu0 %v730
          %996 = vmatprep.subr.mxu0 0.0
          %997 = vmatpush1.msra.mxu0 %v731
          %998 = vmatprep.subr.mxu0 0.0
          %999 = vmatpush1.msra.mxu0 %v732
          %1000 = vmatprep.subr.mxu0 0.0
          %1001 = vmatpush1.msra.mxu0 %v733
          %1002 = vmatprep.subr.mxu0 0.0
          %1003 = vmatpush1.msra.mxu0 %v734
          %1004 = vmatprep.subr.mxu0 0.0
          %1005 = vmatpush1.msra.mxu0 %v735
          %1006 = vmatprep.subr.mxu0 0.0
          %1007 = vmatpush1.msra.mxu0 %v736
          %1008 = vmatprep.subr.mxu0 0.0
          %1009 = vmatpush1.msra.mxu0 %v737
          %1010 = vmatprep.subr.mxu0 0.0
          %1011 = vmatpush1.msra.mxu0 %v738
          %1012 = vmatprep.subr.mxu0 0.0
          %1013 = vmatpush1.msra.mxu0 %v739
          %1014 = vmatprep.subr.mxu0 0.0
          %1015 = vmatpush1.msra.mxu0 %v740
          %1016 = vmatprep.subr.mxu0 0.0
          %1017 = vmatpush1.msra.mxu0 %v741
          %1018 = vmatprep.subr.mxu0 0.0
          %1019 = vmatpush1.msra.mxu0 %v742
          %1020 = vmatprep.subr.mxu0 0.0
          %1021 = vmatpush1.msra.mxu0 0.0
          %1022 = vmatprep.subr.mxu0 0.0
          %1023 = vmatpush1.msra.mxu0 0.0
          %1024 = vmatprep.subr.mxu0 0.0
          %1025 = vmatpush1.msra.mxu0 0.0
          %1026 = vmatprep.subr.mxu0 0.0
          %1027 = vmatpush1.msra.mxu0 0.0
          %1028 = vmatprep.subr.mxu0 0.0
          %1029 = vmatpush1.msra.mxu0 0.0
          %1030 = vmatprep.subr.mxu0 0.0
          %1031 = vmatpush1.msra.mxu0 0.0
          %1032 = vmatprep.subr.mxu0 0.0
          %1033 = vmatpush1.msra.mxu0 0.0
          %1034 = vmatprep.subr.mxu0 0.0
          %1035 = vmatpush1.msra.mxu0 0.0
          %1036 = vmatprep.subr.mxu0 0.0
          %1037 = vmatpush1.msra.mxu0 0.0
          %1038 = vmatprep.subr.mxu0 0.0
          %1039 = vmatpush1.msra.mxu0 0.0
          %1040 = vmatprep.subr.mxu0 0.0
          %1041 = vmatpush1.msra.mxu0 0.0
          %1042 = vmatprep.subr.mxu0 0.0
          %1043 = vmatpush1.msra.mxu0 0.0
          %1044 = vmatprep.subr.mxu0 0.0
          %1045 = vmatpush1.msra.mxu0 0.0
          %1046 = vmatprep.subr.mxu0 0.0
          %1047 = vmatpush1.msra.mxu0 0.0
          %1048 = vmatprep.subr.mxu0 0.0
          %1049 = vmatpush1.msra.mxu0 0.0
          %1050 = vmatprep.subr.mxu0 0.0
          %1051 = vmatpush1.msra.mxu0 0.0
          %1052 = vmatprep.mubr.f32.mxu0 0.0
          %1053 = vmatmul.mubr.f32.gmra.mrb[0].mxu0 %v909
          %v1054 = vpop.f32.mrb[0].mxu0
          %v1055 = vadd.f32 0.0, %v1054
          %v1056 = vpop.f32.mrb[0].mxu0
          %1057 = vdwg.mxu0
          %v1058 = vadd.f32 %v987, %v1055
          %v1059 = vtanh.pop %v1058
          %v1060 = vstv %s912
          %vm1061 = vcmp.lt.s32.totalorder %v1060, %v745
          %v1062 = vsel %vm1061, 1, 0
          %1063 = vset.pattern.permute.xlu0 0
          %1064 = vperm.xlu0 %1063, %v1062
          %v1065 = vpop.permute.xlu0 %1064
          %vm1066 = vcmp.eq.s32.totalorder %v1065, 1
          %v1067 = vsel %vm1066, %v986, %v900
          %v1068 = vsel %vm1066, %v986, 0.0
          %s1069 = scalar_lea.vmem %s433, 16 [#allocation7]
          %1070 = vst [vmem:[%s1069] sm:$0xff] %v1068
          %vm1071 = vcmp.lt.s32.totalorder %v1060, %v746
          %v1072 = vsel %vm1071, 1, 0
          %1073 = vset.pattern.permute.xlu0 0
          %1074 = vperm.xlu0 %1073, %v1072
          %v1075 = vpop.permute.xlu0 %1074
          %vm1076 = vcmp.eq.s32.totalorder %v1075, 1
          %v1077 = vsel %vm1076, %v1059, %v909
          %v1078 = vsel %vm1076, %v1059, 0.0
          %1079 = vst [vmem:[%s1069 + $0x8] sm:$0xff] %v1078
          %s1080 = sadd.s32 %s458, 2
          %s1081 = scalar_lea.vmem [#allocation3], 32
          %v1082 = vld [vmem:[%s1081] sm:$0xff]
          %1083 = vmatprep.subr.mxu0 0.0
          %1084 = vmatpush1.msra.mxu0 %v727
          %1085 = vmatprep.subr.mxu0 0.0
          %1086 = vmatpush1.msra.mxu0 %v728
          %1087 = vmatprep.subr.mxu0 0.0
          %1088 = vmatpush1.msra.mxu0 %v729
          %1089 = vmatprep.subr.mxu0 0.0
          %1090 = vmatpush1.msra.mxu0 %v730
          %1091 = vmatprep.subr.mxu0 0.0
          %1092 = vmatpush1.msra.mxu0 %v731
          %1093 = vmatprep.subr.mxu0 0.0
          %1094 = vmatpush1.msra.mxu0 %v732
          %1095 = vmatprep.subr.mxu0 0.0
          %1096 = vmatpush1.msra.mxu0 %v733
          %1097 = vmatprep.subr.mxu0 0.0
          %1098 = vmatpush1.msra.mxu0 %v734
          %1099 = vmatprep.subr.mxu0 0.0
          %1100 = vmatpush1.msra.mxu0 %v735
          %1101 = vmatprep.subr.mxu0 0.0
          %1102 = vmatpush1.msra.mxu0 %v736
          %1103 = vmatprep.subr.mxu0 0.0
          %1104 = vmatpush1.msra.mxu0 %v737
          %1105 = vmatprep.subr.mxu0 0.0
          %1106 = vmatpush1.msra.mxu0 %v738
          %1107 = vmatprep.subr.mxu0 0.0
          %1108 = vmatpush1.msra.mxu0 %v739
          %1109 = vmatprep.subr.mxu0 0.0
          %1110 = vmatpush1.msra.mxu0 %v740
          %1111 = vmatprep.subr.mxu0 0.0
          %1112 = vmatpush1.msra.mxu0 %v741
          %1113 = vmatprep.subr.mxu0 0.0
          %1114 = vmatpush1.msra.mxu0 %v742
          %1115 = vmatprep.subr.mxu0 0.0
          %1116 = vmatpush1.msra.mxu0 0.0
          %1117 = vmatprep.subr.mxu0 0.0
          %1118 = vmatpush1.msra.mxu0 0.0
          %1119 = vmatprep.subr.mxu0 0.0
          %1120 = vmatpush1.msra.mxu0 0.0
          %1121 = vmatprep.subr.mxu0 0.0
          %1122 = vmatpush1.msra.mxu0 0.0
          %1123 = vmatprep.subr.mxu0 0.0
          %1124 = vmatpush1.msra.mxu0 0.0
          %1125 = vmatprep.subr.mxu0 0.0
          %1126 = vmatpush1.msra.mxu0 0.0
          %1127 = vmatprep.subr.mxu0 0.0
          %1128 = vmatpush1.msra.mxu0 0.0
          %1129 = vmatprep.subr.mxu0 0.0
          %1130 = vmatpush1.msra.mxu0 0.0
          %1131 = vmatprep.subr.mxu0 0.0
          %1132 = vmatpush1.msra.mxu0 0.0
          %1133 = vmatprep.subr.mxu0 0.0
          %1134 = vmatpush1.msra.mxu0 0.0
          %1135 = vmatprep.subr.mxu0 0.0
          %1136 = vmatpush1.msra.mxu0 0.0
          %1137 = vmatprep.subr.mxu0 0.0
          %1138 = vmatpush1.msra.mxu0 0.0
          %1139 = vmatprep.subr.mxu0 0.0
          %1140 = vmatpush1.msra.mxu0 0.0
          %1141 = vmatprep.subr.mxu0 0.0
          %1142 = vmatpush1.msra.mxu0 0.0
          %1143 = vmatprep.subr.mxu0 0.0
          %1144 = vmatpush1.msra.mxu0 0.0
          %1145 = vmatprep.subr.mxu0 0.0
          %1146 = vmatpush1.msra.mxu0 0.0
          %1147 = vmatprep.mubr.f32.mxu0 0.0
          %1148 = vmatmul.mubr.f32.gmra.mrb[0].mxu0 %v1067
          %v1149 = vpop.f32.mrb[0].mxu0
          %v1150 = vadd.f32 0.0, %v1149
          %v1151 = vpop.f32.mrb[0].mxu0
          %1152 = vdwg.mxu0
          %v1153 = vadd.f32 %v1082, %v1150
          %v1154 = vtanh.pop %v1153
          %v1155 = vld [vmem:[%s1081 + $0x8] sm:$0xff]
          %1156 = vmatprep.subr.mxu0 0.0
          %1157 = vmatpush1.msra.mxu0 %v727
          %1158 = vmatprep.subr.mxu0 0.0
          %1159 = vmatpush1.msra.mxu0 %v728
          %1160 = vmatprep.subr.mxu0 0.0
          %1161 = vmatpush1.msra.mxu0 %v729
          %1162 = vmatprep.subr.mxu0 0.0
          %1163 = vmatpush1.msra.mxu0 %v730
          %1164 = vmatprep.subr.mxu0 0.0
          %1165 = vmatpush1.msra.mxu0 %v731
          %1166 = vmatprep.subr.mxu0 0.0
          %1167 = vmatpush1.msra.mxu0 %v732
          %1168 = vmatprep.subr.mxu0 0.0
          %1169 = vmatpush1.msra.mxu0 %v733
          %1170 = vmatprep.subr.mxu0 0.0
          %1171 = vmatpush1.msra.mxu0 %v734
          %1172 = vmatprep.subr.mxu0 0.0
          %1173 = vmatpush1.msra.mxu0 %v735
          %1174 = vmatprep.subr.mxu0 0.0
          %1175 = vmatpush1.msra.mxu0 %v736
          %1176 = vmatprep.subr.mxu0 0.0
          %1177 = vmatpush1.msra.mxu0 %v737
          %1178 = vmatprep.subr.mxu0 0.0
          %1179 = vmatpush1.msra.mxu0 %v738
          %1180 = vmatprep.subr.mxu0 0.0
          %1181 = vmatpush1.msra.mxu0 %v739
          %1182 = vmatprep.subr.mxu0 0.0
          %1183 = vmatpush1.msra.mxu0 %v740
          %1184 = vmatprep.subr.mxu0 0.0
          %1185 = vmatpush1.msra.mxu0 %v741
          %1186 = vmatprep.subr.mxu0 0.0
          %1187 = vmatpush1.msra.mxu0 %v742
          %1188 = vmatprep.subr.mxu0 0.0
          %1189 = vmatpush1.msra.mxu0 0.0
          %1190 = vmatprep.subr.mxu0 0.0
          %1191 = vmatpush1.msra.mxu0 0.0
          %1192 = vmatprep.subr.mxu0 0.0
          %1193 = vmatpush1.msra.mxu0 0.0
          %1194 = vmatprep.subr.mxu0 0.0
          %1195 = vmatpush1.msra.mxu0 0.0
          %1196 = vmatprep.subr.mxu0 0.0
          %1197 = vmatpush1.msra.mxu0 0.0
          %1198 = vmatprep.subr.mxu0 0.0
          %1199 = vmatpush1.msra.mxu0 0.0
          %1200 = vmatprep.subr.mxu0 0.0
          %1201 = vmatpush1.msra.mxu0 0.0
          %1202 = vmatprep.subr.mxu0 0.0
          %1203 = vmatpush1.msra.mxu0 0.0
          %1204 = vmatprep.subr.mxu0 0.0
          %1205 = vmatpush1.msra.mxu0 0.0
          %1206 = vmatprep.subr.mxu0 0.0
          %1207 = vmatpush1.msra.mxu0 0.0
          %1208 = vmatprep.subr.mxu0 0.0
          %1209 = vmatpush1.msra.mxu0 0.0
          %1210 = vmatprep.subr.mxu0 0.0
          %1211 = vmatpush1.msra.mxu0 0.0
          %1212 = vmatprep.subr.mxu0 0.0
          %1213 = vmatpush1.msra.mxu0 0.0
          %1214 = vmatprep.subr.mxu0 0.0
          %1215 = vmatpush1.msra.mxu0 0.0
          %1216 = vmatprep.subr.mxu0 0.0
          %1217 = vmatpush1.msra.mxu0 0.0
          %1218 = vmatprep.subr.mxu0 0.0
          %1219 = vmatpush1.msra.mxu0 0.0
          %1220 = vmatprep.mubr.f32.mxu0 0.0
          %1221 = vmatmul.mubr.f32.gmra.mrb[0].mxu0 %v1077
          %v1222 = vpop.f32.mrb[0].mxu0
          %v1223 = vadd.f32 0.0, %v1222
          %v1224 = vpop.f32.mrb[0].mxu0
          %1225 = vdwg.mxu0
          %v1226 = vadd.f32 %v1155, %v1223
          %v1227 = vtanh.pop %v1226
          %v1228 = vstv %s1080
          %vm1229 = vcmp.lt.s32.totalorder %v1228, %v745
          %v1230 = vsel %vm1229, 1, 0
          %1231 = vset.pattern.permute.xlu0 0
          %1232 = vperm.xlu0 %1231, %v1230
          %v1233 = vpop.permute.xlu0 %1232
          %vm1234 = vcmp.eq.s32.totalorder %v1233, 1
          %v1235 = vsel %vm1234, %v1154, %v1067
          %v1236 = vsel %vm1234, %v1154, 0.0
          %s1237 = scalar_lea.vmem %s433, 32 [#allocation7]
          %1238 = vst [vmem:[%s1237] sm:$0xff] %v1236
          %vm1239 = vcmp.lt.s32.totalorder %v1228, %v746
          %v1240 = vsel %vm1239, 1, 0
          %1241 = vset.pattern.permute.xlu0 0
          %1242 = vperm.xlu0 %1241, %v1240
          %v1243 = vpop.permute.xlu0 %1242
          %vm1244 = vcmp.eq.s32.totalorder %v1243, 1
          %v1245 = vsel %vm1244, %v1227, %v1077
          %v1246 = vsel %vm1244, %v1227, 0.0
          %1247 = vst [vmem:[%s1237 + $0x8] sm:$0xff] %v1246
          %s1248 = sadd.s32 %s458, 3
          %s1249 = scalar_lea.vmem [#allocation3], 48
          %v1250 = vld [vmem:[%s1249] sm:$0xff]
          %1251 = vmatprep.subr.mxu0 0.0
          %1252 = vmatpush1.msra.mxu0 %v727
          %1253 = vmatprep.subr.mxu0 0.0
          %1254 = vmatpush1.msra.mxu0 %v728
          %1255 = vmatprep.subr.mxu0 0.0
          %1256 = vmatpush1.msra.mxu0 %v729
          %1257 = vmatprep.subr.mxu0 0.0
          %1258 = vmatpush1.msra.mxu0 %v730
          %1259 = vmatprep.subr.mxu0 0.0
          %1260 = vmatpush1.msra.mxu0 %v731
          %1261 = vmatprep.subr.mxu0 0.0
          %1262 = vmatpush1.msra.mxu0 %v732
          %1263 = vmatprep.subr.mxu0 0.0
          %1264 = vmatpush1.msra.mxu0 %v733
          %1265 = vmatprep.subr.mxu0 0.0
          %1266 = vmatpush1.msra.mxu0 %v734
          %1267 = vmatprep.subr.mxu0 0.0
          %1268 = vmatpush1.msra.mxu0 %v735
          %1269 = vmatprep.subr.mxu0 0.0
          %1270 = vmatpush1.msra.mxu0 %v736
          %1271 = vmatprep.subr.mxu0 0.0
          %1272 = vmatpush1.msra.mxu0 %v737
          %1273 = vmatprep.subr.mxu0 0.0
          %1274 = vmatpush1.msra.mxu0 %v738
          %1275 = vmatprep.subr.mxu0 0.0
          %1276 = vmatpush1.msra.mxu0 %v739
          %1277 = vmatprep.subr.mxu0 0.0
          %1278 = vmatpush1.msra.mxu0 %v740
          %1279 = vmatprep.subr.mxu0 0.0
          %1280 = vmatpush1.msra.mxu0 %v741
          %1281 = vmatprep.subr.mxu0 0.0
          %1282 = vmatpush1.msra.mxu0 %v742
          %1283 = vmatprep.subr.mxu0 0.0
          %1284 = vmatpush1.msra.mxu0 0.0
          %1285 = vmatprep.subr.mxu0 0.0
          %1286 = vmatpush1.msra.mxu0 0.0
          %1287 = vmatprep.subr.mxu0 0.0
          %1288 = vmatpush1.msra.mxu0 0.0
          %1289 = vmatprep.subr.mxu0 0.0
          %1290 = vmatpush1.msra.mxu0 0.0
          %1291 = vmatprep.subr.mxu0 0.0
          %1292 = vmatpush1.msra.mxu0 0.0
          %1293 = vmatprep.subr.mxu0 0.0
          %1294 = vmatpush1.msra.mxu0 0.0
          %1295 = vmatprep.subr.mxu0 0.0
          %1296 = vmatpush1.msra.mxu0 0.0
          %1297 = vmatprep.subr.mxu0 0.0
          %1298 = vmatpush1.msra.mxu0 0.0
          %1299 = vmatprep.subr.mxu0 0.0
          %1300 = vmatpush1.msra.mxu0 0.0
          %1301 = vmatprep.subr.mxu0 0.0
          %1302 = vmatpush1.msra.mxu0 0.0
          %1303 = vmatprep.subr.mxu0 0.0
          %1304 = vmatpush1.msra.mxu0 0.0
          %1305 = vmatprep.subr.mxu0 0.0
          %1306 = vmatpush1.msra.mxu0 0.0
          %1307 = vmatprep.subr.mxu0 0.0
          %1308 = vmatpush1.msra.mxu0 0.0
          %1309 = vmatprep.subr.mxu0 0.0
          %1310 = vmatpush1.msra.mxu0 0.0
          %1311 = vmatprep.subr.mxu0 0.0
          %1312 = vmatpush1.msra.mxu0 0.0
          %1313 = vmatprep.subr.mxu0 0.0
          %1314 = vmatpush1.msra.mxu0 0.0
          %1315 = vmatprep.mubr.f32.mxu0 0.0
          %1316 = vmatmul.mubr.f32.gmra.mrb[0].mxu0 %v1235
          %v1317 = vpop.f32.mrb[0].mxu0
          %v1318 = vadd.f32 0.0, %v1317
          %v1319 = vpop.f32.mrb[0].mxu0
          %1320 = vdwg.mxu0
          %v1321 = vadd.f32 %v1250, %v1318
          %v1322 = vtanh.pop %v1321
          %v1323 = vld [vmem:[%s1249 + $0x8] sm:$0xff]
          %1324 = vmatprep.subr.mxu0 0.0
          %1325 = vmatpush1.msra.mxu0 %v727
          %1326 = vmatprep.subr.mxu0 0.0
          %1327 = vmatpush1.msra.mxu0 %v728
          %1328 = vmatprep.subr.mxu0 0.0
          %1329 = vmatpush1.msra.mxu0 %v729
          %1330 = vmatprep.subr.mxu0 0.0
          %1331 = vmatpush1.msra.mxu0 %v730
          %1332 = vmatprep.subr.mxu0 0.0
          %1333 = vmatpush1.msra.mxu0 %v731
          %1334 = vmatprep.subr.mxu0 0.0
          %1335 = vmatpush1.msra.mxu0 %v732
          %1336 = vmatprep.subr.mxu0 0.0
          %1337 = vmatpush1.msra.mxu0 %v733
          %1338 = vmatprep.subr.mxu0 0.0
          %1339 = vmatpush1.msra.mxu0 %v734
          %1340 = vmatprep.subr.mxu0 0.0
          %1341 = vmatpush1.msra.mxu0 %v735
          %1342 = vmatprep.subr.mxu0 0.0
          %1343 = vmatpush1.msra.mxu0 %v736
          %1344 = vmatprep.subr.mxu0 0.0
          %1345 = vmatpush1.msra.mxu0 %v737
          %1346 = vmatprep.subr.mxu0 0.0
          %1347 = vmatpush1.msra.mxu0 %v738
          %1348 = vmatprep.subr.mxu0 0.0
          %1349 = vmatpush1.msra.mxu0 %v739
          %1350 = vmatprep.subr.mxu0 0.0
          %1351 = vmatpush1.msra.mxu0 %v740
          %1352 = vmatprep.subr.mxu0 0.0
          %1353 = vmatpush1.msra.mxu0 %v741
          %1354 = vmatprep.subr.mxu0 0.0
          %1355 = vmatpush1.msra.mxu0 %v742
          %1356 = vmatprep.subr.mxu0 0.0
          %1357 = vmatpush1.msra.mxu0 0.0
          %1358 = vmatprep.subr.mxu0 0.0
          %1359 = vmatpush1.msra.mxu0 0.0
          %1360 = vmatprep.subr.mxu0 0.0
          %1361 = vmatpush1.msra.mxu0 0.0
          %1362 = vmatprep.subr.mxu0 0.0
          %1363 = vmatpush1.msra.mxu0 0.0
          %1364 = vmatprep.subr.mxu0 0.0
          %1365 = vmatpush1.msra.mxu0 0.0
          %1366 = vmatprep.subr.mxu0 0.0
          %1367 = vmatpush1.msra.mxu0 0.0
          %1368 = vmatprep.subr.mxu0 0.0
          %1369 = vmatpush1.msra.mxu0 0.0
          %1370 = vmatprep.subr.mxu0 0.0
          %1371 = vmatpush1.msra.mxu0 0.0
          %1372 = vmatprep.subr.mxu0 0.0
          %1373 = vmatpush1.msra.mxu0 0.0
          %1374 = vmatprep.subr.mxu0 0.0
          %1375 = vmatpush1.msra.mxu0 0.0
          %1376 = vmatprep.subr.mxu0 0.0
          %1377 = vmatpush1.msra.mxu0 0.0
          %1378 = vmatprep.subr.mxu0 0.0
          %1379 = vmatpush1.msra.mxu0 0.0
          %1380 = vmatprep.subr.mxu0 0.0
          %1381 = vmatpush1.msra.mxu0 0.0
          %1382 = vmatprep.subr.mxu0 0.0
          %1383 = vmatpush1.msra.mxu0 0.0
          %1384 = vmatprep.subr.mxu0 0.0
          %1385 = vmatpush1.msra.mxu0 0.0
          %1386 = vmatprep.subr.mxu0 0.0
          %1387 = vmatpush1.msra.mxu0 0.0
          %1388 = vmatprep.mubr.f32.mxu0 0.0
          %1389 = vmatmul.mubr.f32.gmra.mrb[0].mxu0 %v1245
          %v1390 = vpop.f32.mrb[0].mxu0
          %v1391 = vadd.f32 0.0, %v1390
          %v1392 = vpop.f32.mrb[0].mxu0
          %1393 = vdwg.mxu0
          %v1394 = vadd.f32 %v1323, %v1391
          %v1395 = vtanh.pop %v1394
          %v1396 = vstv %s1248
          %vm1397 = vcmp.lt.s32.totalorder %v1396, %v745
          %v1398 = vsel %vm1397, 1, 0
          %1399 = vset.pattern.permute.xlu0 0
          %1400 = vperm.xlu0 %1399, %v1398
          %v1401 = vpop.permute.xlu0 %1400
          %vm1402 = vcmp.eq.s32.totalorder %v1401, 1
          %v1403 = vsel %vm1402, %v1322, %v1235
          %v1404 = vsel %vm1402, %v1322, 0.0
          %s1405 = scalar_lea.vmem %s433, 48 [#allocation7]
          %1406 = vst [vmem:[%s1405] sm:$0xff] %v1404
          %vm1407 = vcmp.lt.s32.totalorder %v1396, %v746
          %v1408 = vsel %vm1407, 1, 0
          %1409 = vset.pattern.permute.xlu0 0
          %1410 = vperm.xlu0 %1409, %v1408
          %v1411 = vpop.permute.xlu0 %1410
          %vm1412 = vcmp.eq.s32.totalorder %v1411, 1
          %v1413 = vsel %vm1412, %v1395, %v1245
          %v1414 = vsel %vm1412, %v1395, 0.0
          %1415 = vst [vmem:[%s1405 + $0x8] sm:$0xff] %v1414
          %s1416 = sadd.s32 %s458, 4
          %s1417 = scalar_lea.vmem [#allocation3], 64
          %v1418 = vld [vmem:[%s1417] sm:$0xff]
          %1419 = vmatprep.subr.mxu0 0.0
          %1420 = vmatpush1.msra.mxu0 %v727
          %1421 = vmatprep.subr.mxu0 0.0
          %1422 = vmatpush1.msra.mxu0 %v728
          %1423 = vmatprep.subr.mxu0 0.0
          %1424 = vmatpush1.msra.mxu0 %v729
          %1425 = vmatprep.subr.mxu0 0.0
          %1426 = vmatpush1.msra.mxu0 %v730
          %1427 = vmatprep.subr.mxu0 0.0
          %1428 = vmatpush1.msra.mxu0 %v731
          %1429 = vmatprep.subr.mxu0 0.0
          %1430 = vmatpush1.msra.mxu0 %v732
          %1431 = vmatprep.subr.mxu0 0.0
          %1432 = vmatpush1.msra.mxu0 %v733
          %1433 = vmatprep.subr.mxu0 0.0
          %1434 = vmatpush1.msra.mxu0 %v734
          %1435 = vmatprep.subr.mxu0 0.0
          %1436 = vmatpush1.msra.mxu0 %v735
          %1437 = vmatprep.subr.mxu0 0.0
          %1438 = vmatpush1.msra.mxu0 %v736
          %1439 = vmatprep.subr.mxu0 0.0
          %1440 = vmatpush1.msra.mxu0 %v737
          %1441 = vmatprep.subr.mxu0 0.0
          %1442 = vmatpush1.msra.mxu0 %v738
          %1443 = vmatprep.subr.mxu0 0.0
          %1444 = vmatpush1.msra.mxu0 %v739
          %1445 = vmatprep.subr.mxu0 0.0
          %1446 = vmatpush1.msra.mxu0 %v740
          %1447 = vmatprep.subr.mxu0 0.0
          %1448 = vmatpush1.msra.mxu0 %v741
          %1449 = vmatprep.subr.mxu0 0.0
          %1450 = vmatpush1.msra.mxu0 %v742
          %1451 = vmatprep.subr.mxu0 0.0
          %1452 = vmatpush1.msra.mxu0 0.0
          %1453 = vmatprep.subr.mxu0 0.0
          %1454 = vmatpush1.msra.mxu0 0.0
          %1455 = vmatprep.subr.mxu0 0.0
          %1456 = vmatpush1.msra.mxu0 0.0
          %1457 = vmatprep.subr.mxu0 0.0
          %1458 = vmatpush1.msra.mxu0 0.0
          %1459 = vmatprep.subr.mxu0 0.0
          %1460 = vmatpush1.msra.mxu0 0.0
          %1461 = vmatprep.subr.mxu0 0.0
          %1462 = vmatpush1.msra.mxu0 0.0
          %1463 = vmatprep.subr.mxu0 0.0
          %1464 = vmatpush1.msra.mxu0 0.0
          %1465 = vmatprep.subr.mxu0 0.0
          %1466 = vmatpush1.msra.mxu0 0.0
          %1467 = vmatprep.subr.mxu0 0.0
          %1468 = vmatpush1.msra.mxu0 0.0
          %1469 = vmatprep.subr.mxu0 0.0
          %1470 = vmatpush1.msra.mxu0 0.0
          %1471 = vmatprep.subr.mxu0 0.0
          %1472 = vmatpush1.msra.mxu0 0.0
          %1473 = vmatprep.subr.mxu0 0.0
          %1474 = vmatpush1.msra.mxu0 0.0
          %1475 = vmatprep.subr.mxu0 0.0
          %1476 = vmatpush1.msra.mxu0 0.0
          %1477 = vmatprep.subr.mxu0 0.0
          %1478 = vmatpush1.msra.mxu0 0.0
          %1479 = vmatprep.subr.mxu0 0.0
          %1480 = vmatpush1.msra.mxu0 0.0
          %1481 = vmatprep.subr.mxu0 0.0
          %1482 = vmatpush1.msra.mxu0 0.0
          %1483 = vmatprep.mubr.f32.mxu0 0.0
          %1484 = vmatmul.mubr.f32.gmra.mrb[0].mxu0 %v1403
          %v1485 = vpop.f32.mrb[0].mxu0
          %v1486 = vadd.f32 0.0, %v1485
          %v1487 = vpop.f32.mrb[0].mxu0
          %1488 = vdwg.mxu0
          %v1489 = vadd.f32 %v1418, %v1486
          %v1490 = vtanh.pop %v1489
          %v1491 = vld [vmem:[%s1417 + $0x8] sm:$0xff]
          %1492 = vmatprep.subr.mxu0 0.0
          %1493 = vmatpush1.msra.mxu0 %v727
          %1494 = vmatprep.subr.mxu0 0.0
          %1495 = vmatpush1.msra.mxu0 %v728
          %1496 = vmatprep.subr.mxu0 0.0
          %1497 = vmatpush1.msra.mxu0 %v729
          %1498 = vmatprep.subr.mxu0 0.0
          %1499 = vmatpush1.msra.mxu0 %v730
          %1500 = vmatprep.subr.mxu0 0.0
          %1501 = vmatpush1.msra.mxu0 %v731
          %1502 = vmatprep.subr.mxu0 0.0
          %1503 = vmatpush1.msra.mxu0 %v732
          %1504 = vmatprep.subr.mxu0 0.0
          %1505 = vmatpush1.msra.mxu0 %v733
          %1506 = vmatprep.subr.mxu0 0.0
          %1507 = vmatpush1.msra.mxu0 %v734
          %1508 = vmatprep.subr.mxu0 0.0
          %1509 = vmatpush1.msra.mxu0 %v735
          %1510 = vmatprep.subr.mxu0 0.0
          %1511 = vmatpush1.msra.mxu0 %v736
          %1512 = vmatprep.subr.mxu0 0.0
          %1513 = vmatpush1.msra.mxu0 %v737
          %1514 = vmatprep.subr.mxu0 0.0
          %1515 = vmatpush1.msra.mxu0 %v738
          %1516 = vmatprep.subr.mxu0 0.0
          %1517 = vmatpush1.msra.mxu0 %v739
          %1518 = vmatprep.subr.mxu0 0.0
          %1519 = vmatpush1.msra.mxu0 %v740
          %1520 = vmatprep.subr.mxu0 0.0
          %1521 = vmatpush1.msra.mxu0 %v741
          %1522 = vmatprep.subr.mxu0 0.0
          %1523 = vmatpush1.msra.mxu0 %v742
          %1524 = vmatprep.subr.mxu0 0.0
          %1525 = vmatpush1.msra.mxu0 0.0
          %1526 = vmatprep.subr.mxu0 0.0
          %1527 = vmatpush1.msra.mxu0 0.0
          %1528 = vmatprep.subr.mxu0 0.0
          %1529 = vmatpush1.msra.mxu0 0.0
          %1530 = vmatprep.subr.mxu0 0.0
          %1531 = vmatpush1.msra.mxu0 0.0
          %1532 = vmatprep.subr.mxu0 0.0
          %1533 = vmatpush1.msra.mxu0 0.0
          %1534 = vmatprep.subr.mxu0 0.0
          %1535 = vmatpush1.msra.mxu0 0.0
          %1536 = vmatprep.subr.mxu0 0.0
          %1537 = vmatpush1.msra.mxu0 0.0
          %1538 = vmatprep.subr.mxu0 0.0
          %1539 = vmatpush1.msra.mxu0 0.0
          %1540 = vmatprep.subr.mxu0 0.0
          %1541 = vmatpush1.msra.mxu0 0.0
          %1542 = vmatprep.subr.mxu0 0.0
          %1543 = vmatpush1.msra.mxu0 0.0
          %1544 = vmatprep.subr.mxu0 0.0
          %1545 = vmatpush1.msra.mxu0 0.0
          %1546 = vmatprep.subr.mxu0 0.0
          %1547 = vmatpush1.msra.mxu0 0.0
          %1548 = vmatprep.subr.mxu0 0.0
          %1549 = vmatpush1.msra.mxu0 0.0
          %1550 = vmatprep.subr.mxu0 0.0
          %1551 = vmatpush1.msra.mxu0 0.0
          %1552 = vmatprep.subr.mxu0 0.0
          %1553 = vmatpush1.msra.mxu0 0.0
          %1554 = vmatprep.subr.mxu0 0.0
          %1555 = vmatpush1.msra.mxu0 0.0
          %1556 = vmatprep.mubr.f32.mxu0 0.0
          %1557 = vmatmul.mubr.f32.gmra.mrb[0].mxu0 %v1413
          %v1558 = vpop.f32.mrb[0].mxu0
          %v1559 = vadd.f32 0.0, %v1558
          %v1560 = vpop.f32.mrb[0].mxu0
          %1561 = vdwg.mxu0
          %v1562 = vadd.f32 %v1491, %v1559
          %v1563 = vtanh.pop %v1562
          %v1564 = vstv %s1416
          %vm1565 = vcmp.lt.s32.totalorder %v1564, %v745
          %v1566 = vsel %vm1565, 1, 0
          %1567 = vset.pattern.permute.xlu0 0
          %1568 = vperm.xlu0 %1567, %v1566
          %v1569 = vpop.permute.xlu0 %1568
          %vm1570 = vcmp.eq.s32.totalorder %v1569, 1
          %v1571 = vsel %vm1570, %v1490, %v1403
          %v1572 = vsel %vm1570, %v1490, 0.0
          %s1573 = scalar_lea.vmem %s433, 64 [#allocation7]
          %1574 = vst [vmem:[%s1573] sm:$0xff] %v1572
          %vm1575 = vcmp.lt.s32.totalorder %v1564, %v746
          %v1576 = vsel %vm1575, 1, 0
          %1577 = vset.pattern.permute.xlu0 0
          %1578 = vperm.xlu0 %1577, %v1576
          %v1579 = vpop.permute.xlu0 %1578
          %vm1580 = vcmp.eq.s32.totalorder %v1579, 1
          %v1581 = vsel %vm1580, %v1563, %v1413
          %v1582 = vsel %vm1580, %v1563, 0.0
          %1583 = vst [vmem:[%s1573 + $0x8] sm:$0xff] %v1582
          %s1584 = sadd.s32 %s458, 5
          %s1585 = scalar_lea.vmem [#allocation3], 80
          %v1586 = vld [vmem:[%s1585] sm:$0xff]
          %1587 = vmatprep.subr.mxu0 0.0
          %1588 = vmatpush1.msra.mxu0 %v727
          %1589 = vmatprep.subr.mxu0 0.0
          %1590 = vmatpush1.msra.mxu0 %v728
          %1591 = vmatprep.subr.mxu0 0.0
          %1592 = vmatpush1.msra.mxu0 %v729
          %1593 = vmatprep.subr.mxu0 0.0
          %1594 = vmatpush1.msra.mxu0 %v730
          %1595 = vmatprep.subr.mxu0 0.0
          %1596 = vmatpush1.msra.mxu0 %v731
          %1597 = vmatprep.subr.mxu0 0.0
          %1598 = vmatpush1.msra.mxu0 %v732
          %1599 = vmatprep.subr.mxu0 0.0
          %1600 = vmatpush1.msra.mxu0 %v733
          %1601 = vmatprep.subr.mxu0 0.0
          %1602 = vmatpush1.msra.mxu0 %v734
          %1603 = vmatprep.subr.mxu0 0.0
          %1604 = vmatpush1.msra.mxu0 %v735
          %1605 = vmatprep.subr.mxu0 0.0
          %1606 = vmatpush1.msra.mxu0 %v736
          %1607 = vmatprep.subr.mxu0 0.0
          %1608 = vmatpush1.msra.mxu0 %v737
          %1609 = vmatprep.subr.mxu0 0.0
          %1610 = vmatpush1.msra.mxu0 %v738
          %1611 = vmatprep.subr.mxu0 0.0
          %1612 = vmatpush1.msra.mxu0 %v739
          %1613 = vmatprep.subr.mxu0 0.0
          %1614 = vmatpush1.msra.mxu0 %v740
          %1615 = vmatprep.subr.mxu0 0.0
          %1616 = vmatpush1.msra.mxu0 %v741
          %1617 = vmatprep.subr.mxu0 0.0
          %1618 = vmatpush1.msra.mxu0 %v742
          %1619 = vmatprep.subr.mxu0 0.0
          %1620 = vmatpush1.msra.mxu0 0.0
          %1621 = vmatprep.subr.mxu0 0.0
          %1622 = vmatpush1.msra.mxu0 0.0
          %1623 = vmatprep.subr.mxu0 0.0
          %1624 = vmatpush1.msra.mxu0 0.0
          %1625 = vmatprep.subr.mxu0 0.0
          %1626 = vmatpush1.msra.mxu0 0.0
          %1627 = vmatprep.subr.mxu0 0.0
          %1628 = vmatpush1.msra.mxu0 0.0
          %1629 = vmatprep.subr.mxu0 0.0
          %1630 = vmatpush1.msra.mxu0 0.0
          %1631 = vmatprep.subr.mxu0 0.0
          %1632 = vmatpush1.msra.mxu0 0.0
          %1633 = vmatprep.subr.mxu0 0.0
          %1634 = vmatpush1.msra.mxu0 0.0
          %1635 = vmatprep.subr.mxu0 0.0
          %1636 = vmatpush1.msra.mxu0 0.0
          %1637 = vmatprep.subr.mxu0 0.0
          %1638 = vmatpush1.msra.mxu0 0.0
          %1639 = vmatprep.subr.mxu0 0.0
          %1640 = vmatpush1.msra.mxu0 0.0
          %1641 = vmatprep.subr.mxu0 0.0
          %1642 = vmatpush1.msra.mxu0 0.0
          %1643 = vmatprep.subr.mxu0 0.0
          %1644 = vmatpush1.msra.mxu0 0.0
          %1645 = vmatprep.subr.mxu0 0.0
          %1646 = vmatpush1.msra.mxu0 0.0
          %1647 = vmatprep.subr.mxu0 0.0
          %1648 = vmatpush1.msra.mxu0 0.0
          %1649 = vmatprep.subr.mxu0 0.0
          %1650 = vmatpush1.msra.mxu0 0.0
          %1651 = vmatprep.mubr.f32.mxu0 0.0
          %1652 = vmatmul.mubr.f32.gmra.mrb[0].mxu0 %v1571
          %v1653 = vpop.f32.mrb[0].mxu0
          %v1654 = vadd.f32 0.0, %v1653
          %v1655 = vpop.f32.mrb[0].mxu0
          %1656 = vdwg.mxu0
          %v1657 = vadd.f32 %v1586, %v1654
          %v1658 = vtanh.pop %v1657
          %v1659 = vld [vmem:[%s1585 + $0x8] sm:$0xff]
          %1660 = vmatprep.subr.mxu0 0.0
          %1661 = vmatpush1.msra.mxu0 %v727
          %1662 = vmatprep.subr.mxu0 0.0
          %1663 = vmatpush1.msra.mxu0 %v728
          %1664 = vmatprep.subr.mxu0 0.0
          %1665 = vmatpush1.msra.mxu0 %v729
          %1666 = vmatprep.subr.mxu0 0.0
          %1667 = vmatpush1.msra.mxu0 %v730
          %1668 = vmatprep.subr.mxu0 0.0
          %1669 = vmatpush1.msra.mxu0 %v731
          %1670 = vmatprep.subr.mxu0 0.0
          %1671 = vmatpush1.msra.mxu0 %v732
          %1672 = vmatprep.subr.mxu0 0.0
          %1673 = vmatpush1.msra.mxu0 %v733
          %1674 = vmatprep.subr.mxu0 0.0
          %1675 = vmatpush1.msra.mxu0 %v734
          %1676 = vmatprep.subr.mxu0 0.0
          %1677 = vmatpush1.msra.mxu0 %v735
          %1678 = vmatprep.subr.mxu0 0.0
          %1679 = vmatpush1.msra.mxu0 %v736
          %1680 = vmatprep.subr.mxu0 0.0
          %1681 = vmatpush1.msra.mxu0 %v737
          %1682 = vmatprep.subr.mxu0 0.0
          %1683 = vmatpush1.msra.mxu0 %v738
          %1684 = vmatprep.subr.mxu0 0.0
          %1685 = vmatpush1.msra.mxu0 %v739
          %1686 = vmatprep.subr.mxu0 0.0
          %1687 = vmatpush1.msra.mxu0 %v740
          %1688 = vmatprep.subr.mxu0 0.0
          %1689 = vmatpush1.msra.mxu0 %v741
          %1690 = vmatprep.subr.mxu0 0.0
          %1691 = vmatpush1.msra.mxu0 %v742
          %1692 = vmatprep.subr.mxu0 0.0
          %1693 = vmatpush1.msra.mxu0 0.0
          %1694 = vmatprep.subr.mxu0 0.0
          %1695 = vmatpush1.msra.mxu0 0.0
          %1696 = vmatprep.subr.mxu0 0.0
          %1697 = vmatpush1.msra.mxu0 0.0
          %1698 = vmatprep.subr.mxu0 0.0
          %1699 = vmatpush1.msra.mxu0 0.0
          %1700 = vmatprep.subr.mxu0 0.0
          %1701 = vmatpush1.msra.mxu0 0.0
          %1702 = vmatprep.subr.mxu0 0.0
          %1703 = vmatpush1.msra.mxu0 0.0
          %1704 = vmatprep.subr.mxu0 0.0
          %1705 = vmatpush1.msra.mxu0 0.0
          %1706 = vmatprep.subr.mxu0 0.0
          %1707 = vmatpush1.msra.mxu0 0.0
          %1708 = vmatprep.subr.mxu0 0.0
          %1709 = vmatpush1.msra.mxu0 0.0
          %1710 = vmatprep.subr.mxu0 0.0
          %1711 = vmatpush1.msra.mxu0 0.0
          %1712 = vmatprep.subr.mxu0 0.0
          %1713 = vmatpush1.msra.mxu0 0.0
          %1714 = vmatprep.subr.mxu0 0.0
          %1715 = vmatpush1.msra.mxu0 0.0
          %1716 = vmatprep.subr.mxu0 0.0
          %1717 = vmatpush1.msra.mxu0 0.0
          %1718 = vmatprep.subr.mxu0 0.0
          %1719 = vmatpush1.msra.mxu0 0.0
          %1720 = vmatprep.subr.mxu0 0.0
          %1721 = vmatpush1.msra.mxu0 0.0
          %1722 = vmatprep.subr.mxu0 0.0
          %1723 = vmatpush1.msra.mxu0 0.0
          %1724 = vmatprep.mubr.f32.mxu0 0.0
          %1725 = vmatmul.mubr.f32.gmra.mrb[0].mxu0 %v1581
          %v1726 = vpop.f32.mrb[0].mxu0
          %v1727 = vadd.f32 0.0, %v1726
          %v1728 = vpop.f32.mrb[0].mxu0
          %1729 = vdwg.mxu0
          %v1730 = vadd.f32 %v1659, %v1727
          %v1731 = vtanh.pop %v1730
          %v1732 = vstv %s1584
          %vm1733 = vcmp.lt.s32.totalorder %v1732, %v745
          %v1734 = vsel %vm1733, 1, 0
          %1735 = vset.pattern.permute.xlu0 0
          %1736 = vperm.xlu0 %1735, %v1734
          %v1737 = vpop.permute.xlu0 %1736
          %vm1738 = vcmp.eq.s32.totalorder %v1737, 1
          %v1739 = vsel %vm1738, %v1658, %v1571
          %v1740 = vsel %vm1738, %v1658, 0.0
          %s1741 = scalar_lea.vmem %s433, 80 [#allocation7]
          %1742 = vst [vmem:[%s1741] sm:$0xff] %v1740
          %vm1743 = vcmp.lt.s32.totalorder %v1732, %v746
          %v1744 = vsel %vm1743, 1, 0
          %1745 = vset.pattern.permute.xlu0 0
          %1746 = vperm.xlu0 %1745, %v1744
          %v1747 = vpop.permute.xlu0 %1746
          %vm1748 = vcmp.eq.s32.totalorder %v1747, 1
          %v1749 = vsel %vm1748, %v1731, %v1581
          %v1750 = vsel %vm1748, %v1731, 0.0
          %1751 = vst [vmem:[%s1741 + $0x8] sm:$0xff] %v1750
          %s1752 = sadd.s32 %s458, 6
          %s1753 = scalar_lea.vmem [#allocation3], 96
          %v1754 = vld [vmem:[%s1753] sm:$0xff]
          %1755 = vmatprep.subr.mxu0 0.0
          %1756 = vmatpush1.msra.mxu0 %v727
          %1757 = vmatprep.subr.mxu0 0.0
          %1758 = vmatpush1.msra.mxu0 %v728
          %1759 = vmatprep.subr.mxu0 0.0
          %1760 = vmatpush1.msra.mxu0 %v729
          %1761 = vmatprep.subr.mxu0 0.0
          %1762 = vmatpush1.msra.mxu0 %v730
          %1763 = vmatprep.subr.mxu0 0.0
          %1764 = vmatpush1.msra.mxu0 %v731
          %1765 = vmatprep.subr.mxu0 0.0
          %1766 = vmatpush1.msra.mxu0 %v732
          %1767 = vmatprep.subr.mxu0 0.0
          %1768 = vmatpush1.msra.mxu0 %v733
          %1769 = vmatprep.subr.mxu0 0.0
          %1770 = vmatpush1.msra.mxu0 %v734
          %1771 = vmatprep.subr.mxu0 0.0
          %1772 = vmatpush1.msra.mxu0 %v735
          %1773 = vmatprep.subr.mxu0 0.0
          %1774 = vmatpush1.msra.mxu0 %v736
          %1775 = vmatprep.subr.mxu0 0.0
          %1776 = vmatpush1.msra.mxu0 %v737
          %1777 = vmatprep.subr.mxu0 0.0
          %1778 = vmatpush1.msra.mxu0 %v738
          %1779 = vmatprep.subr.mxu0 0.0
          %1780 = vmatpush1.msra.mxu0 %v739
          %1781 = vmatprep.subr.mxu0 0.0
          %1782 = vmatpush1.msra.mxu0 %v740
          %1783 = vmatprep.subr.mxu0 0.0
          %1784 = vmatpush1.msra.mxu0 %v741
          %1785 = vmatprep.subr.mxu0 0.0
          %1786 = vmatpush1.msra.mxu0 %v742
          %1787 = vmatprep.subr.mxu0 0.0
          %1788 = vmatpush1.msra.mxu0 0.0
          %1789 = vmatprep.subr.mxu0 0.0
          %1790 = vmatpush1.msra.mxu0 0.0
          %1791 = vmatprep.subr.mxu0 0.0
          %1792 = vmatpush1.msra.mxu0 0.0
          %1793 = vmatprep.subr.mxu0 0.0
          %1794 = vmatpush1.msra.mxu0 0.0
          %1795 = vmatprep.subr.mxu0 0.0
          %1796 = vmatpush1.msra.mxu0 0.0
          %1797 = vmatprep.subr.mxu0 0.0
          %1798 = vmatpush1.msra.mxu0 0.0
          %1799 = vmatprep.subr.mxu0 0.0
          %1800 = vmatpush1.msra.mxu0 0.0
          %1801 = vmatprep.subr.mxu0 0.0
          %1802 = vmatpush1.msra.mxu0 0.0
          %1803 = vmatprep.subr.mxu0 0.0
          %1804 = vmatpush1.msra.mxu0 0.0
          %1805 = vmatprep.subr.mxu0 0.0
          %1806 = vmatpush1.msra.mxu0 0.0
          %1807 = vmatprep.subr.mxu0 0.0
          %1808 = vmatpush1.msra.mxu0 0.0
          %1809 = vmatprep.subr.mxu0 0.0
          %1810 = vmatpush1.msra.mxu0 0.0
          %1811 = vmatprep.subr.mxu0 0.0
          %1812 = vmatpush1.msra.mxu0 0.0
          %1813 = vmatprep.subr.mxu0 0.0
          %1814 = vmatpush1.msra.mxu0 0.0
          %1815 = vmatprep.subr.mxu0 0.0
          %1816 = vmatpush1.msra.mxu0 0.0
          %1817 = vmatprep.subr.mxu0 0.0
          %1818 = vmatpush1.msra.mxu0 0.0
          %1819 = vmatprep.mubr.f32.mxu0 0.0
          %1820 = vmatmul.mubr.f32.gmra.mrb[0].mxu0 %v1739
          %v1821 = vpop.f32.mrb[0].mxu0
          %v1822 = vadd.f32 0.0, %v1821
          %v1823 = vpop.f32.mrb[0].mxu0
          %1824 = vdwg.mxu0
          %v1825 = vadd.f32 %v1754, %v1822
          %v1826 = vtanh.pop %v1825
          %v1827 = vld [vmem:[%s1753 + $0x8] sm:$0xff]
          %1828 = vmatprep.subr.mxu0 0.0
          %1829 = vmatpush1.msra.mxu0 %v727
          %1830 = vmatprep.subr.mxu0 0.0
          %1831 = vmatpush1.msra.mxu0 %v728
          %1832 = vmatprep.subr.mxu0 0.0
          %1833 = vmatpush1.msra.mxu0 %v729
          %1834 = vmatprep.subr.mxu0 0.0
          %1835 = vmatpush1.msra.mxu0 %v730
          %1836 = vmatprep.subr.mxu0 0.0
          %1837 = vmatpush1.msra.mxu0 %v731
          %1838 = vmatprep.subr.mxu0 0.0
          %1839 = vmatpush1.msra.mxu0 %v732
          %1840 = vmatprep.subr.mxu0 0.0
          %1841 = vmatpush1.msra.mxu0 %v733
          %1842 = vmatprep.subr.mxu0 0.0
          %1843 = vmatpush1.msra.mxu0 %v734
          %1844 = vmatprep.subr.mxu0 0.0
          %1845 = vmatpush1.msra.mxu0 %v735
          %1846 = vmatprep.subr.mxu0 0.0
          %1847 = vmatpush1.msra.mxu0 %v736
          %1848 = vmatprep.subr.mxu0 0.0
          %1849 = vmatpush1.msra.mxu0 %v737
          %1850 = vmatprep.subr.mxu0 0.0
          %1851 = vmatpush1.msra.mxu0 %v738
          %1852 = vmatprep.subr.mxu0 0.0
          %1853 = vmatpush1.msra.mxu0 %v739
          %1854 = vmatprep.subr.mxu0 0.0
          %1855 = vmatpush1.msra.mxu0 %v740
          %1856 = vmatprep.subr.mxu0 0.0
          %1857 = vmatpush1.msra.mxu0 %v741
          %1858 = vmatprep.subr.mxu0 0.0
          %1859 = vmatpush1.msra.mxu0 %v742
          %1860 = vmatprep.subr.mxu0 0.0
          %1861 = vmatpush1.msra.mxu0 0.0
          %1862 = vmatprep.subr.mxu0 0.0
          %1863 = vmatpush1.msra.mxu0 0.0
          %1864 = vmatprep.subr.mxu0 0.0
          %1865 = vmatpush1.msra.mxu0 0.0
          %1866 = vmatprep.subr.mxu0 0.0
          %1867 = vmatpush1.msra.mxu0 0.0
          %1868 = vmatprep.subr.mxu0 0.0
          %1869 = vmatpush1.msra.mxu0 0.0
          %1870 = vmatprep.subr.mxu0 0.0
          %1871 = vmatpush1.msra.mxu0 0.0
          %1872 = vmatprep.subr.mxu0 0.0
          %1873 = vmatpush1.msra.mxu0 0.0
          %1874 = vmatprep.subr.mxu0 0.0
          %1875 = vmatpush1.msra.mxu0 0.0
          %1876 = vmatprep.subr.mxu0 0.0
          %1877 = vmatpush1.msra.mxu0 0.0
          %1878 = vmatprep.subr.mxu0 0.0
          %1879 = vmatpush1.msra.mxu0 0.0
          %1880 = vmatprep.subr.mxu0 0.0
          %1881 = vmatpush1.msra.mxu0 0.0
          %1882 = vmatprep.subr.mxu0 0.0
          %1883 = vmatpush1.msra.mxu0 0.0
          %1884 = vmatprep.subr.mxu0 0.0
          %1885 = vmatpush1.msra.mxu0 0.0
          %1886 = vmatprep.subr.mxu0 0.0
          %1887 = vmatpush1.msra.mxu0 0.0
          %1888 = vmatprep.subr.mxu0 0.0
          %1889 = vmatpush1.msra.mxu0 0.0
          %1890 = vmatprep.subr.mxu0 0.0
          %1891 = vmatpush1.msra.mxu0 0.0
          %1892 = vmatprep.mubr.f32.mxu0 0.0
          %1893 = vmatmul.mubr.f32.gmra.mrb[0].mxu0 %v1749
          %v1894 = vpop.f32.mrb[0].mxu0
          %v1895 = vadd.f32 0.0, %v1894
          %v1896 = vpop.f32.mrb[0].mxu0
          %1897 = vdwg.mxu0
          %v1898 = vadd.f32 %v1827, %v1895
          %v1899 = vtanh.pop %v1898
          %v1900 = vstv %s1752
          %vm1901 = vcmp.lt.s32.totalorder %v1900, %v745
          %v1902 = vsel %vm1901, 1, 0
          %1903 = vset.pattern.permute.xlu0 0
          %1904 = vperm.xlu0 %1903, %v1902
          %v1905 = vpop.permute.xlu0 %1904
          %vm1906 = vcmp.eq.s32.totalorder %v1905, 1
          %v1907 = vsel %vm1906, %v1826, %v1739
          %v1908 = vsel %vm1906, %v1826, 0.0
          %s1909 = scalar_lea.vmem %s433, 96 [#allocation7]
          %1910 = vst [vmem:[%s1909] sm:$0xff] %v1908
          %vm1911 = vcmp.lt.s32.totalorder %v1900, %v746
          %v1912 = vsel %vm1911, 1, 0
          %1913 = vset.pattern.permute.xlu0 0
          %1914 = vperm.xlu0 %1913, %v1912
          %v1915 = vpop.permute.xlu0 %1914
          %vm1916 = vcmp.eq.s32.totalorder %v1915, 1
          %v1917 = vsel %vm1916, %v1899, %v1749
          %v1918 = vsel %vm1916, %v1899, 0.0
          %1919 = vst [vmem:[%s1909 + $0x8] sm:$0xff] %v1918
          %s1920 = sadd.s32 %s458, 7
          %s1921 = scalar_lea.vmem [#allocation3], 112
          %v1922 = vld [vmem:[%s1921] sm:$0xff]
          %1923 = vmatprep.subr.mxu0 0.0
          %1924 = vmatpush1.msra.mxu0 %v727
          %1925 = vmatprep.subr.mxu0 0.0
          %1926 = vmatpush1.msra.mxu0 %v728
          %1927 = vmatprep.subr.mxu0 0.0
          %1928 = vmatpush1.msra.mxu0 %v729
          %1929 = vmatprep.subr.mxu0 0.0
          %1930 = vmatpush1.msra.mxu0 %v730
          %1931 = vmatprep.subr.mxu0 0.0
          %1932 = vmatpush1.msra.mxu0 %v731
          %1933 = vmatprep.subr.mxu0 0.0
          %1934 = vmatpush1.msra.mxu0 %v732
          %1935 = vmatprep.subr.mxu0 0.0
          %1936 = vmatpush1.msra.mxu0 %v733
          %1937 = vmatprep.subr.mxu0 0.0
          %1938 = vmatpush1.msra.mxu0 %v734
          %1939 = vmatprep.subr.mxu0 0.0
          %1940 = vmatpush1.msra.mxu0 %v735
          %1941 = vmatprep.subr.mxu0 0.0
          %1942 = vmatpush1.msra.mxu0 %v736
          %1943 = vmatprep.subr.mxu0 0.0
          %1944 = vmatpush1.msra.mxu0 %v737
          %1945 = vmatprep.subr.mxu0 0.0
          %1946 = vmatpush1.msra.mxu0 %v738
          %1947 = vmatprep.subr.mxu0 0.0
          %1948 = vmatpush1.msra.mxu0 %v739
          %1949 = vmatprep.subr.mxu0 0.0
          %1950 = vmatpush1.msra.mxu0 %v740
          %1951 = vmatprep.subr.mxu0 0.0
          %1952 = vmatpush1.msra.mxu0 %v741
          %1953 = vmatprep.subr.mxu0 0.0
          %1954 = vmatpush1.msra.mxu0 %v742
          %1955 = vmatprep.subr.mxu0 0.0
          %1956 = vmatpush1.msra.mxu0 0.0
          %1957 = vmatprep.subr.mxu0 0.0
          %1958 = vmatpush1.msra.mxu0 0.0
          %1959 = vmatprep.subr.mxu0 0.0
          %1960 = vmatpush1.msra.mxu0 0.0
          %1961 = vmatprep.subr.mxu0 0.0
          %1962 = vmatpush1.msra.mxu0 0.0
          %1963 = vmatprep.subr.mxu0 0.0
          %1964 = vmatpush1.msra.mxu0 0.0
          %1965 = vmatprep.subr.mxu0 0.0
          %1966 = vmatpush1.msra.mxu0 0.0
          %1967 = vmatprep.subr.mxu0 0.0
          %1968 = vmatpush1.msra.mxu0 0.0
          %1969 = vmatprep.subr.mxu0 0.0
          %1970 = vmatpush1.msra.mxu0 0.0
          %1971 = vmatprep.subr.mxu0 0.0
          %1972 = vmatpush1.msra.mxu0 0.0
          %1973 = vmatprep.subr.mxu0 0.0
          %1974 = vmatpush1.msra.mxu0 0.0
          %1975 = vmatprep.subr.mxu0 0.0
          %1976 = vmatpush1.msra.mxu0 0.0
          %1977 = vmatprep.subr.mxu0 0.0
          %1978 = vmatpush1.msra.mxu0 0.0
          %1979 = vmatprep.subr.mxu0 0.0
          %1980 = vmatpush1.msra.mxu0 0.0
          %1981 = vmatprep.subr.mxu0 0.0
          %1982 = vmatpush1.msra.mxu0 0.0
          %1983 = vmatprep.subr.mxu0 0.0
          %1984 = vmatpush1.msra.mxu0 0.0
          %1985 = vmatprep.subr.mxu0 0.0
          %1986 = vmatpush1.msra.mxu0 0.0
          %1987 = vmatprep.mubr.f32.mxu0 0.0
          %1988 = vmatmul.mubr.f32.gmra.mrb[0].mxu0 %v1907
          %v1989 = vpop.f32.mrb[0].mxu0
          %v1990 = vadd.f32 0.0, %v1989
          %v1991 = vpop.f32.mrb[0].mxu0
          %1992 = vdwg.mxu0
          %v1993 = vadd.f32 %v1922, %v1990
          %v1994 = vtanh.pop %v1993
          %v1995 = vld [vmem:[%s1921 + $0x8] sm:$0xff]
          %1996 = vmatprep.subr.mxu0 0.0
          %1997 = vmatpush1.msra.mxu0 %v727
          %1998 = vmatprep.subr.mxu0 0.0
          %1999 = vmatpush1.msra.mxu0 %v728
          %2000 = vmatprep.subr.mxu0 0.0
          %2001 = vmatpush1.msra.mxu0 %v729
          %2002 = vmatprep.subr.mxu0 0.0
          %2003 = vmatpush1.msra.mxu0 %v730
          %2004 = vmatprep.subr.mxu0 0.0
          %2005 = vmatpush1.msra.mxu0 %v731
          %2006 = vmatprep.subr.mxu0 0.0
          %2007 = vmatpush1.msra.mxu0 %v732
          %2008 = vmatprep.subr.mxu0 0.0
          %2009 = vmatpush1.msra.mxu0 %v733
          %2010 = vmatprep.subr.mxu0 0.0
          %2011 = vmatpush1.msra.mxu0 %v734
          %2012 = vmatprep.subr.mxu0 0.0
          %2013 = vmatpush1.msra.mxu0 %v735
          %2014 = vmatprep.subr.mxu0 0.0
          %2015 = vmatpush1.msra.mxu0 %v736
          %2016 = vmatprep.subr.mxu0 0.0
          %2017 = vmatpush1.msra.mxu0 %v737
          %2018 = vmatprep.subr.mxu0 0.0
          %2019 = vmatpush1.msra.mxu0 %v738
          %2020 = vmatprep.subr.mxu0 0.0
          %2021 = vmatpush1.msra.mxu0 %v739
          %2022 = vmatprep.subr.mxu0 0.0
          %2023 = vmatpush1.msra.mxu0 %v740
          %2024 = vmatprep.subr.mxu0 0.0
          %2025 = vmatpush1.msra.mxu0 %v741
          %2026 = vmatprep.subr.mxu0 0.0
          %2027 = vmatpush1.msra.mxu0 %v742
          %2028 = vmatprep.subr.mxu0 0.0
          %2029 = vmatpush1.msra.mxu0 0.0
          %2030 = vmatprep.subr.mxu0 0.0
          %2031 = vmatpush1.msra.mxu0 0.0
          %2032 = vmatprep.subr.mxu0 0.0
          %2033 = vmatpush1.msra.mxu0 0.0
          %2034 = vmatprep.subr.mxu0 0.0
          %2035 = vmatpush1.msra.mxu0 0.0
          %2036 = vmatprep.subr.mxu0 0.0
          %2037 = vmatpush1.msra.mxu0 0.0
          %2038 = vmatprep.subr.mxu0 0.0
          %2039 = vmatpush1.msra.mxu0 0.0
          %2040 = vmatprep.subr.mxu0 0.0
          %2041 = vmatpush1.msra.mxu0 0.0
          %2042 = vmatprep.subr.mxu0 0.0
          %2043 = vmatpush1.msra.mxu0 0.0
          %2044 = vmatprep.subr.mxu0 0.0
          %2045 = vmatpush1.msra.mxu0 0.0
          %2046 = vmatprep.subr.mxu0 0.0
          %2047 = vmatpush1.msra.mxu0 0.0
          %2048 = vmatprep.subr.mxu0 0.0
          %2049 = vmatpush1.msra.mxu0 0.0
          %2050 = vmatprep.subr.mxu0 0.0
          %2051 = vmatpush1.msra.mxu0 0.0
          %2052 = vmatprep.subr.mxu0 0.0
          %2053 = vmatpush1.msra.mxu0 0.0
          %2054 = vmatprep.subr.mxu0 0.0
          %2055 = vmatpush1.msra.mxu0 0.0
          %2056 = vmatprep.subr.mxu0 0.0
          %2057 = vmatpush1.msra.mxu0 0.0
          %2058 = vmatprep.subr.mxu0 0.0
          %2059 = vmatpush1.msra.mxu0 0.0
          %2060 = vmatprep.mubr.f32.mxu0 0.0
          %2061 = vmatmul.mubr.f32.gmra.mrb[0].mxu0 %v1917
          %v2062 = vpop.f32.mrb[0].mxu0
          %v2063 = vadd.f32 0.0, %v2062
          %v2064 = vpop.f32.mrb[0].mxu0
          %2065 = vdwg.mxu0
          %v2066 = vadd.f32 %v1995, %v2063
          %v2067 = vtanh.pop %v2066
          %v2068 = vstv %s1920
          %vm2069 = vcmp.lt.s32.totalorder %v2068, %v745
          %v2070 = vsel %vm2069, 1, 0
          %2071 = vset.pattern.permute.xlu0 0
          %2072 = vperm.xlu0 %2071, %v2070
          %v2073 = vpop.permute.xlu0 %2072
          %vm2074 = vcmp.eq.s32.totalorder %v2073, 1
          %v2075 = vsel %vm2074, %v1994, %v1907
          %v2076 = vsel %vm2074, %v1994, 0.0
          %s2077 = scalar_lea.vmem %s433, 112 [#allocation7]
          %2078 = vst [vmem:[%s2077] sm:$0xff] %v2076
          %vm2079 = vcmp.lt.s32.totalorder %v2068, %v746
          %v2080 = vsel %vm2079, 1, 0
          %2081 = vset.pattern.permute.xlu0 0
          %2082 = vperm.xlu0 %2081, %v2080
          %v2083 = vpop.permute.xlu0 %2082
          %vm2084 = vcmp.eq.s32.totalorder %v2083, 1
          %v2085 = vsel %vm2084, %v2067, %v1917
          %v2086 = vsel %vm2084, %v2067, 0.0
          %2087 = vst [vmem:[%s2077 + $0x8] sm:$0xff] %v2086
          %2088 = vst [vmem:[#allocation2] sm:$0xff] %v2075
          %2089 = vst [vmem:[#allocation2 + $0x8] sm:$0xff] %v2085
        $region94: #{tpu_custom_call.1} parent=77 // pred_fallthru
          _
        %p2090 = scmp.eq.s32.totalorder %s37, 4
        // Predicated region
        $region95: #{tpu_custom_call.1} parent=77 // pred_check
          %p2091 = pneg %p2090
        $region96: #{tpu_custom_call.1} parent=77 // pred_check_branch
          %2093 = sbr.rel (%p2091) target = $region98
        $region97: #{tpu_custom_call.1} parent=77 // pred_region
          %v2094 = vld [vmem:[#allocation2] sm:$0xff]
          %v2095 = vld [vmem:[#allocation2 + $0x8] sm:$0xff]
          %2096 = vst [vmem:[%s440] sm:$0xff] %v2094
          %2097 = vst [vmem:[%s440 + $0x8] sm:$0xff] %v2095
        $region98: #{tpu_custom_call.1} parent=77 // pred_fallthru
          _
        %s2098 = sand.u32 %s197, 1
        %s2099 = scalar_lea.sflag [#allocation8], %s2098
        %s2100 = sand.u32 %s197, 1
        %s2101 = smul.addr %s2100, 128
        %s2102 = scalar_lea.vmem [#allocation7], %s2101
        %s2103 = sand.u32 %s223, 1
        %s2104 = scalar_lea.sflag [#allocation10], %s2103
        %s2105 = sand.u32 %s223, 1
        %s2106 = smul.addr %s2105, 16
        %s2107 = scalar_lea.vmem [#allocation9], %s2106
        // Predicated region
        $region99: #{tpu_custom_call.1} parent=77 // pred_check
          %p2108 = pneg %p207
        $region100: #{tpu_custom_call.1} parent=77 // pred_check_branch
          %2110 = sbr.rel (%p2108) target = $region102
        $region101: #{tpu_custom_call.1} parent=77 // pred_region
          #allocation12 [shape = 'u32[6]{0}', space=smem, size = 0x18, scoped, tag = 'DMA stride descriptor']
          %s2111 = smul.u32 8, %s37
          %s2112 = smul.u32 2, %s36
          %s2114 = ssub.s32 2048, 2048
          %2115 = vsyncadd %s2099, %s2114
          %s2116 = smul.addr %s2111, 4
          %s2117 = sadd.s32 %s2112, %s2116
          %s2118 = smul.addr %s2117, 128
          %s2119 = scalar_lea.hbm %s7, %s2118
          %s2121 = sshll.u32 1, 14
          %s2122 = sxor.u32 4294967295, %s2121
          %s2125 = sshll.u32 7, 18
          %s2126 = sxor.u32 4294967295, %s2125
          %s2127 = sand.u32 0, %s2126
          %s2129 = sor.u32 %s2127, 0
          %s2131 = sshll.u32 3, 24
          %s2132 = sxor.u32 4294967295, %s2131
          %s2133 = sand.u32 %s2129, %s2132
          %s2135 = sor.u32 %s2133, 0
          %s2136 = sshll.u32 %s2102, 4
          %s2137 = int_to_ptr.vmem [resolvable:$true] %s2136
          %2143 = sst [smem:[#allocation12]] 256
          %s2144 = scalar_lea.smem [#allocation12], 1
          %2145 = sst [smem:[%s2144]] 512
          %s2146 = scalar_lea.smem [#allocation12], 2
          %2147 = sst [smem:[%s2146]] 2
          %s2148 = scalar_lea.smem [#allocation12], 3
          %2149 = sst [smem:[%s2148]] 128
          %s2150 = scalar_lea.smem [#allocation12], 4
          %2151 = sst [smem:[%s2150]] 128
          %s2152 = scalar_lea.smem [#allocation12], 5
          %2153 = sst [smem:[%s2152]] 8
          %2155 = dma.general %s2137, 2048, %s2119, %s2099, [#allocation11], [#allocation12], %s2135, 0
        $region102: #{tpu_custom_call.1} parent=77 // pred_fallthru
          _
        // Predicated region
        $region103: #{tpu_custom_call.1} parent=77 // pred_check
          %p2156 = pneg %p233
        $region104: #{tpu_custom_call.1} parent=77 // pred_check_branch
          %2158 = sbr.rel (%p2156) target = $region106
        $region105: #{tpu_custom_call.1} parent=77 // pred_region
          %s2159 = smul.u32 2, %s36
          %s2161 = ssub.s32 256, 256
          %2162 = vsyncadd %s2104, %s2161
          %s2163 = smul.addr %s2159, 128
          %s2164 = scalar_lea.hbm %s8, %s2163
          %s2165 = sshll.u32 %s2107, 4
          %s2166 = int_to_ptr.vmem [resolvable:$true] %s2165
          %2171 = dma.vmem_to_hbm [thread:$0]  %s2166, 256, %s2164, %s2104, 128, 128, 8
        $region106: #{tpu_custom_call.1} parent=77 // pred_fallthru
          _
      $region78: #{tpu_custom_call.1} parent=5 // pred_fallthru
        _
      %p2172 = scmp.le.s32.totalorder 2, %s27
      // Predicated region
      $region107: #{tpu_custom_call.1} parent=5 // pred_check
        %p2173 = pneg %p2172
      $region108: #{tpu_custom_call.1} parent=5 // pred_check_branch
        %2175 = sbr.rel (%p2173) target = $region110
      $region109: #{tpu_custom_call.1} parent=5 // pred_region
        %s2176 = ssub.s32 %s27, 2
        // Predicated region
        $region111: #{tpu_custom_call.1} parent=109 // pred_check
          %p2177 = pneg %p213
        $region112: #{tpu_custom_call.1} parent=109 // pred_check_branch
          %2179 = sbr.rel (%p2177) target = $region114
        $region113: #{tpu_custom_call.1} parent=109 // pred_region
          %s2180 = sand.u32 %s198, 1
          %s2181 = scalar_lea.sflag [#allocation8], %s2180
          %s2182 = sand.u32 %s198, 1
          %s2183 = smul.addr %s2182, 128
          %s2184 = scalar_lea.vmem [#allocation7], %s2183
          %2185 = dma.done %s2181, 2048
        $region114: #{tpu_custom_call.1} parent=109 // pred_fallthru
          _
        // Predicated region
        $region115: #{tpu_custom_call.1} parent=109 // pred_check
          %p2186 = pneg %p239
        $region116: #{tpu_custom_call.1} parent=109 // pred_check_branch
          %2188 = sbr.rel (%p2186) target = $region118
        $region117: #{tpu_custom_call.1} parent=109 // pred_region
          %s2189 = sand.u32 %s224, 1
          %s2190 = scalar_lea.sflag [#allocation10], %s2189
          %s2191 = sand.u32 %s224, 1
          %s2192 = smul.addr %s2191, 16
          %s2193 = scalar_lea.vmem [#allocation9], %s2192
          %2194 = dma.done %s2190, 256
        $region118: #{tpu_custom_call.1} parent=109 // pred_fallthru
          _
      $region110: #{tpu_custom_call.1} parent=5 // pred_fallthru
        _
    $region6: #{tpu_custom_call.1} parent=1 // loop_footer
      %s31 = sadd.s32 1, %s27
    $region7: #{tpu_custom_call.1} parent=1 // loop_footer_branch
      %26 = sbr.rel target = $region3
    $region8: #{tpu_custom_call.1} parent=1 // loop_exit
      _
    %2195 = vsyncpa [#allocation8], 1
    %s2196 = scalar_lea.sflag [#allocation8], 1
    %2197 = vsyncpa %s2196, 1
    %2198 = vsyncpa [#allocation10], 1
    %s2199 = scalar_lea.sflag [#allocation10], 1
    %2200 = vsyncpa %s2199, 1

</llo_original>
